<compile_context>
chip_gen: v6e
topology: v6e:2x2x1
jax: 0.10.0
libtpu: 0.0.40
codegen_flags: <defaults>
</compile_context>

<pallas_src>
import jax
import jax.numpy as jnp
from jax.experimental import pallas as pl
from jax.experimental.pallas import tpu as pltpu


HIDDEN_PAD = 256  # 200 -> 256 (multiple of 128 lanes / MXU width)


# ----------------------------- kernel ---------------------------------------


def _softplus(x):
    # numerically stable softplus, matches F.softplus
    return jnp.maximum(x, 0.0) + jnp.log1p(jnp.exp(-jnp.abs(x)))


def _swish(h):
    return h * (1.0 / (1.0 + jnp.exp(-h)))


def ensemble_kernel(x_ref, w1_ref, wh_ref, w5_ref, b14_ref, b5_ref, lv_ref, out_ref):
    """Single invocation: all E members' 5-layer MLPs run back-to-back in VMEM.

    x_ref   : (E, B, in_dim)
    w1_ref  : (E, in_dim, Hp)
    wh_ref  : (E, Hp, 3*Hp)      layers 2..4 concatenated along lanes
    w5_ref  : (E, Hp, 2*half)
    b14_ref : (E, 4, Hp)         biases of layers 1..4 (zero padded)
    b5_ref  : (E, 2*half)
    lv_ref  : (2, 2*half)        row 0 = tiled max_logvar, row 1 = tiled min_logvar
    out_ref : (E, B, 2*half)     [:half] = mean, [half:] = var
    """
    E, B, _ = x_ref.shape
    Hp = w1_ref.shape[2]
    OUT = out_ref.shape[2]
    half = OUT // 2

    max_lv = lv_ref[0:1, :]  # (1, OUT)
    min_lv = lv_ref[1:2, :]  # (1, OUT)
    col = jax.lax.broadcasted_iota(jnp.int32, (B, OUT), 1)
    is_var = col >= half  # full-tile mask instead of lane-offset slicing

    for e in range(E):  # static unroll, E known at trace time
        h = x_ref[e]  # (B, in_dim)

        # layer 1
        h = _swish(
            jnp.dot(h, w1_ref[e], preferred_element_type=jnp.float32)
            + b14_ref[e, 0:1, :]
        )
        # layers 2..4 (weights are 256-lane-aligned slices of the packed slab)
        for l in range(3):
            w = wh_ref[e, :, l * Hp : (l + 1) * Hp]
            h = _swish(
                jnp.dot(h, w, preferred_element_type=jnp.float32)
                + b14_ref[e, l + 1 : l + 2, :]
            )
        # layer 5 (identity activation)
        ret = (
            jnp.dot(h, w5_ref[e], preferred_element_type=jnp.float32)
            + b5_ref[e : e + 1, :]
        )  # (B, OUT)

        # logvar soft-clamp + exp over the full tile; mean columns are masked
        # back in with `where` (clamp keeps masked-out exp() finite).
        logvar = max_lv - _softplus(max_lv - ret)
        logvar = min_lv + _softplus(logvar - min_lv)
        out_ref[e] = jnp.where(is_var, jnp.exp(logvar), ret)


# ----------------------------- packing / wrapper ------------------------------


def pack_ensemble_params(params, max_logvar, min_logvar, hidden_pad=HIDDEN_PAD):
    """One-time packing: pad hidden 200->hidden_pad with zeros and build slabs."""
    (w1, b1), (w2, b2), (w3, b3), (w4, b4), (w5, b5) = params
    Hp = hidden_pad

    def pad_w(w, rows_to, cols_to):
        _, r, c = w.shape
        return jnp.pad(w, ((0, 0), (0, rows_to - r), (0, cols_to - c)))

    def pad_b(b, to):
        return jnp.pad(b, ((0, 0), (0, to - b.shape[-1])))

    in_dim = w1.shape[1]
    out_dim = w5.shape[2]

    w1p = pad_w(w1, in_dim, Hp)                                        # (E, in_dim, Hp)
    whp = jnp.concatenate([pad_w(w, Hp, Hp) for w in (w2, w3, w4)], -1)  # (E, Hp, 3Hp)
    w5p = pad_w(w5, Hp, out_dim)                                       # (E, Hp, out_dim)
    b14 = jnp.stack([pad_b(b, Hp) for b in (b1, b2, b3, b4)], axis=1)  # (E, 4, Hp)
    lv = jnp.concatenate(
        [jnp.tile(max_logvar, (1, 2)), jnp.tile(min_logvar, (1, 2))], axis=0
    )  # (2, out_dim)
    return (w1p, whp, w5p, b14, b5, lv)


def ensemble_forward(x, packed):
    """x: (E, B, state+action). Returns (mean, var), each (E, B, (state+1))."""
    w1p, whp, w5p, b14, b5, lv = packed
    E, B, _ = x.shape
    out_dim = w5p.shape[-1]
    half = out_dim // 2

    vmem = pl.BlockSpec(memory_space=pltpu.MemorySpace.VMEM)
    out = pl.pallas_call(
        ensemble_kernel,
        out_shape=jax.ShapeDtypeStruct((E, B, out_dim), jnp.float32),
        in_specs=[vmem] * 7,
        out_specs=vmem,
    )(x, w1p, whp, w5p, b14, b5, lv)

    return out[:, :, :half], out[:, :, half:]


# ----------------------------- param init ------------------------------------


def init_ensemble_params(key, state_dim, action_dim, ensemble_size, hidden=200):
    """Mimics init_weights: truncated normal (±2σ), σ = 1/(2 sqrt(in_dim)); bias 0."""
    out_dim = (state_dim + 1) * 2
    dims = [state_dim + action_dim, hidden, hidden, hidden, hidden, out_dim]
    params = []
    for i in range(5):
        key, wk = jax.random.split(key)
        din, dout = dims[i], dims[i + 1]
        std = 1.0 / (2.0 * jnp.sqrt(float(din)))
        w = std * jax.random.truncated_normal(
            wk, -2.0, 2.0, (ensemble_size, din, dout), dtype=jnp.float32
        )
        b = jnp.zeros((ensemble_size, dout), dtype=jnp.float32)
        params.append((w, b))
    max_logvar = jnp.ones((1, out_dim // 2), dtype=jnp.float32) / 2.0
    min_logvar = -jnp.ones((1, out_dim // 2), dtype=jnp.float32) * 10.0
    return params, max_logvar, min_logvar


# ----------------------------- reference (pure JAX) ---------------------------


def ensemble_forward_ref(x, params, max_logvar, min_logvar):
    h = x
    for i, (w, b) in enumerate(params):
        h = jnp.einsum("ebi,eio->ebo", h, w) + b[:, None, :]
        if i < 4:
            h = h * jax.nn.sigmoid(h)
    half = max_logvar.shape[-1]
    mean = h[:, :, :half]
    raw = h[:, :, half:]
    logvar = max_logvar - jax.nn.softplus(max_logvar - raw)
    logvar = min_logvar + jax.nn.softplus(logvar - min_logvar)
    return mean, jnp.exp(logvar)


# ----------------------------- main -------------------------------------------


if __name__ == "__main__":
    key = jax.random.PRNGKey(0)

    state_dim = 11
    action_dim = 3
    ensemble_size = 5
    batch = 8  # NOTE: for real PETS particle counts use B >= 128 for MXU util.

    key, pkey, xkey = jax.random.split(key, 3)
    params, max_logvar, min_logvar = init_ensemble_params(
        pkey, state_dim, action_dim, ensemble_size
    )
    x = jax.random.normal(
        xkey, (ensemble_size, batch, state_dim + action_dim), dtype=jnp.float32
    )

    packed = pack_ensemble_params(params, max_logvar, min_logvar)
    packed = jax.block_until_ready(packed)  # one-time packing, not per-forward

    mean, var = ensemble_forward(x, packed)
    jax.block_until_ready((mean, var))

    mean_ref, var_ref = ensemble_forward_ref(x, params, max_logvar, min_logvar)
    assert mean.shape == (ensemble_size, batch, state_dim + 1)
    assert var.shape == (ensemble_size, batch, state_dim + 1)
    assert jnp.allclose(mean, mean_ref, atol=1e-4, rtol=1e-4)
    assert jnp.allclose(var, var_ref, atol=1e-4, rtol=1e-4)

    print("KERNEL_OK")
</pallas_src>

<mosaic_0001>
module attributes {stable_mosaic.version = 11 : i64} {
  func.func @ensemble_kernel(%arg0: memref<5x8x14xf32, #tpu.memory_space<vmem>>, %arg1: memref<5x14x256xf32, #tpu.memory_space<vmem>>, %arg2: memref<5x256x768xf32, #tpu.memory_space<vmem>>, %arg3: memref<5x256x24xf32, #tpu.memory_space<vmem>>, %arg4: memref<5x4x256xf32, #tpu.memory_space<vmem>>, %arg5: memref<5x24xf32, #tpu.memory_space<vmem>>, %arg6: memref<2x24xf32, #tpu.memory_space<vmem>>, %arg7: memref<5x8x24xf32, #tpu.memory_space<vmem>>) attributes {dimension_semantics = [], scalar_prefetch = 0 : i64, scratch_operands = 0 : i64, tpu.core_type = #tpu.core_type<tc>} {
    %c0 = arith.constant 0 : index
    %c0_0 = arith.constant 0 : index
    %0 = vector.load %arg6[%c0, %c0_0] : memref<2x24xf32, #tpu.memory_space<vmem>>, vector<1x24xf32>
    %c1 = arith.constant 1 : index
    %c0_1 = arith.constant 0 : index
    %1 = vector.load %arg6[%c1, %c0_1] : memref<2x24xf32, #tpu.memory_space<vmem>>, vector<1x24xf32>
    %2 = tpu.iota {dimensions = array<i32: 1>} : vector<8x24xi32>
    %c12_i32 = arith.constant 12 : i32
    %3 = vector.broadcast %c12_i32 : i32 to vector<8x24xi32>
    %4 = arith.cmpi sge, %2, %3 : vector<8x24xi32>
    %c0_2 = arith.constant 0 : index
    %c0_3 = arith.constant 0 : index
    %c0_4 = arith.constant 0 : index
    %5 = vector.load %arg0[%c0_2, %c0_3, %c0_4] : memref<5x8x14xf32, #tpu.memory_space<vmem>>, vector<1x8x14xf32>
    %6 = vector.shape_cast %5 : vector<1x8x14xf32> to vector<8x14xf32>
    %c0_5 = arith.constant 0 : index
    %c0_6 = arith.constant 0 : index
    %c0_7 = arith.constant 0 : index
    %7 = vector.load %arg1[%c0_5, %c0_6, %c0_7] : memref<5x14x256xf32, #tpu.memory_space<vmem>>, vector<1x14x256xf32>
    %8 = vector.shape_cast %7 : vector<1x14x256xf32> to vector<14x256xf32>
    %cst = arith.constant dense<0.000000e+00> : vector<8x256xf32>
    %9 = tpu.matmul %6, %8, %cst {dimension_numbers = #tpu.dot_dimension_numbers<[1], [0], [0], [1], [0, 0, 1, 1], [], []>} : vector<8x14xf32>, vector<14x256xf32>, vector<8x256xf32> -> vector<8x256xf32>
    %c0_8 = arith.constant 0 : index
    %c0_9 = arith.constant 0 : index
    %c0_10 = arith.constant 0 : index
    %10 = vector.load %arg4[%c0_8, %c0_9, %c0_10] : memref<5x4x256xf32, #tpu.memory_space<vmem>>, vector<1x1x256xf32>
    %11 = vector.shape_cast %10 : vector<1x1x256xf32> to vector<1x256xf32>
    %12 = vector.broadcast %11 : vector<1x256xf32> to vector<8x256xf32>
    %13 = arith.addf %9, %12 : vector<8x256xf32>
    %cst_11 = arith.constant 0.000000e+00 : f32
    %14 = vector.broadcast %cst_11 : f32 to vector<8x256xf32>
    %15 = arith.subf %14, %13 : vector<8x256xf32>
    %16 = math.exp %15 : vector<8x256xf32>
    %cst_12 = arith.constant 1.000000e+00 : f32
    %17 = vector.broadcast %cst_12 : f32 to vector<8x256xf32>
    %18 = arith.addf %17, %16 : vector<8x256xf32>
    %cst_13 = arith.constant 1.000000e+00 : f32
    %19 = vector.broadcast %cst_13 : f32 to vector<8x256xf32>
    %20 = arith.divf %19, %18 : vector<8x256xf32>
    %21 = arith.mulf %13, %20 : vector<8x256xf32>
    %c0_14 = arith.constant 0 : index
    %c0_15 = arith.constant 0 : index
    %c0_16 = arith.constant 0 : index
    %22 = vector.load %arg2[%c0_14, %c0_15, %c0_16] : memref<5x256x768xf32, #tpu.memory_space<vmem>>, vector<1x256x256xf32>
    %23 = vector.shape_cast %22 : vector<1x256x256xf32> to vector<256x256xf32>
    %cst_17 = arith.constant dense<0.000000e+00> : vector<8x256xf32>
    %24 = tpu.matmul %21, %23, %cst_17 {dimension_numbers = #tpu.dot_dimension_numbers<[1], [0], [0], [1], [0, 0, 1, 1], [], []>} : vector<8x256xf32>, vector<256x256xf32>, vector<8x256xf32> -> vector<8x256xf32>
    %c0_18 = arith.constant 0 : index
    %c1_19 = arith.constant 1 : index
    %c0_20 = arith.constant 0 : index
    %25 = vector.load %arg4[%c0_18, %c1_19, %c0_20] : memref<5x4x256xf32, #tpu.memory_space<vmem>>, vector<1x1x256xf32>
    %26 = vector.shape_cast %25 : vector<1x1x256xf32> to vector<1x256xf32>
    %27 = vector.broadcast %26 : vector<1x256xf32> to vector<8x256xf32>
    %28 = arith.addf %24, %27 : vector<8x256xf32>
    %cst_21 = arith.constant 0.000000e+00 : f32
    %29 = vector.broadcast %cst_21 : f32 to vector<8x256xf32>
    %30 = arith.subf %29, %28 : vector<8x256xf32>
    %31 = math.exp %30 : vector<8x256xf32>
    %cst_22 = arith.constant 1.000000e+00 : f32
    %32 = vector.broadcast %cst_22 : f32 to vector<8x256xf32>
    %33 = arith.addf %32, %31 : vector<8x256xf32>
    %cst_23 = arith.constant 1.000000e+00 : f32
    %34 = vector.broadcast %cst_23 : f32 to vector<8x256xf32>
    %35 = arith.divf %34, %33 : vector<8x256xf32>
    %36 = arith.mulf %28, %35 : vector<8x256xf32>
    %c0_24 = arith.constant 0 : index
    %c0_25 = arith.constant 0 : index
    %c256 = arith.constant 256 : index
    %37 = vector.load %arg2[%c0_24, %c0_25, %c256] : memref<5x256x768xf32, #tpu.memory_space<vmem>>, vector<1x256x256xf32>
    %38 = vector.shape_cast %37 : vector<1x256x256xf32> to vector<256x256xf32>
    %cst_26 = arith.constant dense<0.000000e+00> : vector<8x256xf32>
    %39 = tpu.matmul %36, %38, %cst_26 {dimension_numbers = #tpu.dot_dimension_numbers<[1], [0], [0], [1], [0, 0, 1, 1], [], []>} : vector<8x256xf32>, vector<256x256xf32>, vector<8x256xf32> -> vector<8x256xf32>
    %c0_27 = arith.constant 0 : index
    %c2 = arith.constant 2 : index
    %c0_28 = arith.constant 0 : index
    %40 = vector.load %arg4[%c0_27, %c2, %c0_28] : memref<5x4x256xf32, #tpu.memory_space<vmem>>, vector<1x1x256xf32>
    %41 = vector.shape_cast %40 : vector<1x1x256xf32> to vector<1x256xf32>
    %42 = vector.broadcast %41 : vector<1x256xf32> to vector<8x256xf32>
    %43 = arith.addf %39, %42 : vector<8x256xf32>
    %cst_29 = arith.constant 0.000000e+00 : f32
    %44 = vector.broadcast %cst_29 : f32 to vector<8x256xf32>
    %45 = arith.subf %44, %43 : vector<8x256xf32>
    %46 = math.exp %45 : vector<8x256xf32>
    %cst_30 = arith.constant 1.000000e+00 : f32
    %47 = vector.broadcast %cst_30 : f32 to vector<8x256xf32>
    %48 = arith.addf %47, %46 : vector<8x256xf32>
    %cst_31 = arith.constant 1.000000e+00 : f32
    %49 = vector.broadcast %cst_31 : f32 to vector<8x256xf32>
    %50 = arith.divf %49, %48 : vector<8x256xf32>
    %51 = arith.mulf %43, %50 : vector<8x256xf32>
    %c0_32 = arith.constant 0 : index
    %c0_33 = arith.constant 0 : index
    %c512 = arith.constant 512 : index
    %52 = vector.load %arg2[%c0_32, %c0_33, %c512] : memref<5x256x768xf32, #tpu.memory_space<vmem>>, vector<1x256x256xf32>
    %53 = vector.shape_cast %52 : vector<1x256x256xf32> to vector<256x256xf32>
    %cst_34 = arith.constant dense<0.000000e+00> : vector<8x256xf32>
    %54 = tpu.matmul %51, %53, %cst_34 {dimension_numbers = #tpu.dot_dimension_numbers<[1], [0], [0], [1], [0, 0, 1, 1], [], []>} : vector<8x256xf32>, vector<256x256xf32>, vector<8x256xf32> -> vector<8x256xf32>
    %c0_35 = arith.constant 0 : index
    %c3 = arith.constant 3 : index
    %c0_36 = arith.constant 0 : index
    %55 = vector.load %arg4[%c0_35, %c3, %c0_36] : memref<5x4x256xf32, #tpu.memory_space<vmem>>, vector<1x1x256xf32>
    %56 = vector.shape_cast %55 : vector<1x1x256xf32> to vector<1x256xf32>
    %57 = vector.broadcast %56 : vector<1x256xf32> to vector<8x256xf32>
    %58 = arith.addf %54, %57 : vector<8x256xf32>
    %cst_37 = arith.constant 0.000000e+00 : f32
    %59 = vector.broadcast %cst_37 : f32 to vector<8x256xf32>
    %60 = arith.subf %59, %58 : vector<8x256xf32>
    %61 = math.exp %60 : vector<8x256xf32>
    %cst_38 = arith.constant 1.000000e+00 : f32
    %62 = vector.broadcast %cst_38 : f32 to vector<8x256xf32>
    %63 = arith.addf %62, %61 : vector<8x256xf32>
    %cst_39 = arith.constant 1.000000e+00 : f32
    %64 = vector.broadcast %cst_39 : f32 to vector<8x256xf32>
    %65 = arith.divf %64, %63 : vector<8x256xf32>
    %66 = arith.mulf %58, %65 : vector<8x256xf32>
    %c0_40 = arith.constant 0 : index
    %c0_41 = arith.constant 0 : index
    %c0_42 = arith.constant 0 : index
    %67 = vector.load %arg3[%c0_40, %c0_41, %c0_42] : memref<5x256x24xf32, #tpu.memory_space<vmem>>, vector<1x256x24xf32>
    %68 = vector.shape_cast %67 : vector<1x256x24xf32> to vector<256x24xf32>
    %cst_43 = arith.constant dense<0.000000e+00> : vector<8x24xf32>
    %69 = tpu.matmul %66, %68, %cst_43 {dimension_numbers = #tpu.dot_dimension_numbers<[1], [0], [0], [1], [0, 0, 1, 1], [], []>} : vector<8x256xf32>, vector<256x24xf32>, vector<8x24xf32> -> vector<8x24xf32>
    %c0_44 = arith.constant 0 : index
    %c0_45 = arith.constant 0 : index
    %70 = vector.load %arg5[%c0_44, %c0_45] : memref<5x24xf32, #tpu.memory_space<vmem>>, vector<1x24xf32>
    %71 = vector.broadcast %70 : vector<1x24xf32> to vector<8x24xf32>
    %72 = arith.addf %69, %71 : vector<8x24xf32>
    %73 = vector.broadcast %0 : vector<1x24xf32> to vector<8x24xf32>
    %74 = arith.subf %73, %72 : vector<8x24xf32>
    %cst_46 = arith.constant 0.000000e+00 : f32
    %75 = vector.broadcast %cst_46 : f32 to vector<8x24xf32>
    %76 = arith.maximumf %74, %75 : vector<8x24xf32>
    %77 = math.absf %74 : vector<8x24xf32>
    %cst_47 = arith.constant 0.000000e+00 : f32
    %78 = vector.broadcast %cst_47 : f32 to vector<8x24xf32>
    %79 = arith.subf %78, %77 : vector<8x24xf32>
    %80 = math.exp %79 : vector<8x24xf32>
    %81 = math.log1p %80 : vector<8x24xf32>
    %82 = arith.addf %76, %81 : vector<8x24xf32>
    %83 = vector.broadcast %0 : vector<1x24xf32> to vector<8x24xf32>
    %84 = arith.subf %83, %82 : vector<8x24xf32>
    %85 = vector.broadcast %1 : vector<1x24xf32> to vector<8x24xf32>
    %86 = arith.subf %84, %85 : vector<8x24xf32>
    %cst_48 = arith.constant 0.000000e+00 : f32
    %87 = vector.broadcast %cst_48 : f32 to vector<8x24xf32>
    %88 = arith.maximumf %86, %87 : vector<8x24xf32>
    %89 = math.absf %86 : vector<8x24xf32>
    %cst_49 = arith.constant 0.000000e+00 : f32
    %90 = vector.broadcast %cst_49 : f32 to vector<8x24xf32>
    %91 = arith.subf %90, %89 : vector<8x24xf32>
    %92 = math.exp %91 : vector<8x24xf32>
    %93 = math.log1p %92 : vector<8x24xf32>
    %94 = arith.addf %88, %93 : vector<8x24xf32>
    %95 = vector.broadcast %1 : vector<1x24xf32> to vector<8x24xf32>
    %96 = arith.addf %95, %94 : vector<8x24xf32>
    %97 = math.exp %96 : vector<8x24xf32>
    %98 = arith.select %4, %97, %72 : vector<8x24xi1>, vector<8x24xf32>
    %c0_50 = arith.constant 0 : index
    %c0_51 = arith.constant 0 : index
    %c0_52 = arith.constant 0 : index
    %99 = vector.load %arg7[%c0_50, %c0_51, %c0_52] : memref<5x8x24xf32, #tpu.memory_space<vmem>>, vector<1x8x24xf32>
    %100 = vector.shape_cast %99 : vector<1x8x24xf32> to vector<8x24xf32>
    %101 = vector.shape_cast %98 : vector<8x24xf32> to vector<1x8x24xf32>
    tpu.vector_store %arg7[%c0_50, %c0_51, %c0_52], %101 {strides = array<i32>} : memref<5x8x24xf32, #tpu.memory_space<vmem>>, vector<1x8x24xf32>,
    %c1_53 = arith.constant 1 : index
    %c0_54 = arith.constant 0 : index
    %c0_55 = arith.constant 0 : index
    %102 = vector.load %arg0[%c1_53, %c0_54, %c0_55] : memref<5x8x14xf32, #tpu.memory_space<vmem>>, vector<1x8x14xf32>
    %103 = vector.shape_cast %102 : vector<1x8x14xf32> to vector<8x14xf32>
    %c1_56 = arith.constant 1 : index
    %c0_57 = arith.constant 0 : index
    %c0_58 = arith.constant 0 : index
    %104 = vector.load %arg1[%c1_56, %c0_57, %c0_58] : memref<5x14x256xf32, #tpu.memory_space<vmem>>, vector<1x14x256xf32>
    %105 = vector.shape_cast %104 : vector<1x14x256xf32> to vector<14x256xf32>
    %cst_59 = arith.constant dense<0.000000e+00> : vector<8x256xf32>
    %106 = tpu.matmul %103, %105, %cst_59 {dimension_numbers = #tpu.dot_dimension_numbers<[1], [0], [0], [1], [0, 0, 1, 1], [], []>} : vector<8x14xf32>, vector<14x256xf32>, vector<8x256xf32> -> vector<8x256xf32>
    %c1_60 = arith.constant 1 : index
    %c0_61 = arith.constant 0 : index
    %c0_62 = arith.constant 0 : index
    %107 = vector.load %arg4[%c1_60, %c0_61, %c0_62] : memref<5x4x256xf32, #tpu.memory_space<vmem>>, vector<1x1x256xf32>
    %108 = vector.shape_cast %107 : vector<1x1x256xf32> to vector<1x256xf32>
    %109 = vector.broadcast %108 : vector<1x256xf32> to vector<8x256xf32>
    %110 = arith.addf %106, %109 : vector<8x256xf32>
    %cst_63 = arith.constant 0.000000e+00 : f32
    %111 = vector.broadcast %cst_63 : f32 to vector<8x256xf32>
    %112 = arith.subf %111, %110 : vector<8x256xf32>
    %113 = math.exp %112 : vector<8x256xf32>
    %cst_64 = arith.constant 1.000000e+00 : f32
    %114 = vector.broadcast %cst_64 : f32 to vector<8x256xf32>
    %115 = arith.addf %114, %113 : vector<8x256xf32>
    %cst_65 = arith.constant 1.000000e+00 : f32
    %116 = vector.broadcast %cst_65 : f32 to vector<8x256xf32>
    %117 = arith.divf %116, %115 : vector<8x256xf32>
    %118 = arith.mulf %110, %117 : vector<8x256xf32>
    %c1_66 = arith.constant 1 : index
    %c0_67 = arith.constant 0 : index
    %c0_68 = arith.constant 0 : index
    %119 = vector.load %arg2[%c1_66, %c0_67, %c0_68] : memref<5x256x768xf32, #tpu.memory_space<vmem>>, vector<1x256x256xf32>
    %120 = vector.shape_cast %119 : vector<1x256x256xf32> to vector<256x256xf32>
    %cst_69 = arith.constant dense<0.000000e+00> : vector<8x256xf32>
    %121 = tpu.matmul %118, %120, %cst_69 {dimension_numbers = #tpu.dot_dimension_numbers<[1], [0], [0], [1], [0, 0, 1, 1], [], []>} : vector<8x256xf32>, vector<256x256xf32>, vector<8x256xf32> -> vector<8x256xf32>
    %c1_70 = arith.constant 1 : index
    %c1_71 = arith.constant 1 : index
    %c0_72 = arith.constant 0 : index
    %122 = vector.load %arg4[%c1_70, %c1_71, %c0_72] : memref<5x4x256xf32, #tpu.memory_space<vmem>>, vector<1x1x256xf32>
    %123 = vector.shape_cast %122 : vector<1x1x256xf32> to vector<1x256xf32>
    %124 = vector.broadcast %123 : vector<1x256xf32> to vector<8x256xf32>
    %125 = arith.addf %121, %124 : vector<8x256xf32>
    %cst_73 = arith.constant 0.000000e+00 : f32
    %126 = vector.broadcast %cst_73 : f32 to vector<8x256xf32>
    %127 = arith.subf %126, %125 : vector<8x256xf32>
    %128 = math.exp %127 : vector<8x256xf32>
    %cst_74 = arith.constant 1.000000e+00 : f32
    %129 = vector.broadcast %cst_74 : f32 to vector<8x256xf32>
    %130 = arith.addf %129, %128 : vector<8x256xf32>
    %cst_75 = arith.constant 1.000000e+00 : f32
    %131 = vector.broadcast %cst_75 : f32 to vector<8x256xf32>
    %132 = arith.divf %131, %130 : vector<8x256xf32>
    %133 = arith.mulf %125, %132 : vector<8x256xf32>
    %c1_76 = arith.constant 1 : index
    %c0_77 = arith.constant 0 : index
    %c256_78 = arith.constant 256 : index
    %134 = vector.load %arg2[%c1_76, %c0_77, %c256_78] : memref<5x256x768xf32, #tpu.memory_space<vmem>>, vector<1x256x256xf32>
    %135 = vector.shape_cast %134 : vector<1x256x256xf32> to vector<256x256xf32>
    %cst_79 = arith.constant dense<0.000000e+00> : vector<8x256xf32>
    %136 = tpu.matmul %133, %135, %cst_79 {dimension_numbers = #tpu.dot_dimension_numbers<[1], [0], [0], [1], [0, 0, 1, 1], [], []>} : vector<8x256xf32>, vector<256x256xf32>, vector<8x256xf32> -> vector<8x256xf32>
    %c1_80 = arith.constant 1 : index
    %c2_81 = arith.constant 2 : index
    %c0_82 = arith.constant 0 : index
    %137 = vector.load %arg4[%c1_80, %c2_81, %c0_82] : memref<5x4x256xf32, #tpu.memory_space<vmem>>, vector<1x1x256xf32>
    %138 = vector.shape_cast %137 : vector<1x1x256xf32> to vector<1x256xf32>
    %139 = vector.broadcast %138 : vector<1x256xf32> to vector<8x256xf32>
    %140 = arith.addf %136, %139 : vector<8x256xf32>
    %cst_83 = arith.constant 0.000000e+00 : f32
    %141 = vector.broadcast %cst_83 : f32 to vector<8x256xf32>
    %142 = arith.subf %141, %140 : vector<8x256xf32>
    %143 = math.exp %142 : vector<8x256xf32>
    %cst_84 = arith.constant 1.000000e+00 : f32
    %144 = vector.broadcast %cst_84 : f32 to vector<8x256xf32>
    %145 = arith.addf %144, %143 : vector<8x256xf32>
    %cst_85 = arith.constant 1.000000e+00 : f32
    %146 = vector.broadcast %cst_85 : f32 to vector<8x256xf32>
    %147 = arith.divf %146, %145 : vector<8x256xf32>
    %148 = arith.mulf %140, %147 : vector<8x256xf32>
    %c1_86 = arith.constant 1 : index
    %c0_87 = arith.constant 0 : index
    %c512_88 = arith.constant 512 : index
    %149 = vector.load %arg2[%c1_86, %c0_87, %c512_88] : memref<5x256x768xf32, #tpu.memory_space<vmem>>, vector<1x256x256xf32>
    %150 = vector.shape_cast %149 : vector<1x256x256xf32> to vector<256x256xf32>
    %cst_89 = arith.constant dense<0.000000e+00> : vector<8x256xf32>
    %151 = tpu.matmul %148, %150, %cst_89 {dimension_numbers = #tpu.dot_dimension_numbers<[1], [0], [0], [1], [0, 0, 1, 1], [], []>} : vector<8x256xf32>, vector<256x256xf32>, vector<8x256xf32> -> vector<8x256xf32>
    %c1_90 = arith.constant 1 : index
    %c3_91 = arith.constant 3 : index
    %c0_92 = arith.constant 0 : index
    %152 = vector.load %arg4[%c1_90, %c3_91, %c0_92] : memref<5x4x256xf32, #tpu.memory_space<vmem>>, vector<1x1x256xf32>
    %153 = vector.shape_cast %152 : vector<1x1x256xf32> to vector<1x256xf32>
    %154 = vector.broadcast %153 : vector<1x256xf32> to vector<8x256xf32>
    %155 = arith.addf %151, %154 : vector<8x256xf32>
    %cst_93 = arith.constant 0.000000e+00 : f32
    %156 = vector.broadcast %cst_93 : f32 to vector<8x256xf32>
    %157 = arith.subf %156, %155 : vector<8x256xf32>
    %158 = math.exp %157 : vector<8x256xf32>
    %cst_94 = arith.constant 1.000000e+00 : f32
    %159 = vector.broadcast %cst_94 : f32 to vector<8x256xf32>
    %160 = arith.addf %159, %158 : vector<8x256xf32>
    %cst_95 = arith.constant 1.000000e+00 : f32
    %161 = vector.broadcast %cst_95 : f32 to vector<8x256xf32>
    %162 = arith.divf %161, %160 : vector<8x256xf32>
    %163 = arith.mulf %155, %162 : vector<8x256xf32>
    %c1_96 = arith.constant 1 : index
    %c0_97 = arith.constant 0 : index
    %c0_98 = arith.constant 0 : index
    %164 = vector.load %arg3[%c1_96, %c0_97, %c0_98] : memref<5x256x24xf32, #tpu.memory_space<vmem>>, vector<1x256x24xf32>
    %165 = vector.shape_cast %164 : vector<1x256x24xf32> to vector<256x24xf32>
    %cst_99 = arith.constant dense<0.000000e+00> : vector<8x24xf32>
    %166 = tpu.matmul %163, %165, %cst_99 {dimension_numbers = #tpu.dot_dimension_numbers<[1], [0], [0], [1], [0, 0, 1, 1], [], []>} : vector<8x256xf32>, vector<256x24xf32>, vector<8x24xf32> -> vector<8x24xf32>
    %c1_100 = arith.constant 1 : index
    %c0_101 = arith.constant 0 : index
    %167 = vector.load %arg5[%c1_100, %c0_101] : memref<5x24xf32, #tpu.memory_space<vmem>>, vector<1x24xf32>
    %168 = vector.broadcast %167 : vector<1x24xf32> to vector<8x24xf32>
    %169 = arith.addf %166, %168 : vector<8x24xf32>
    %170 = vector.broadcast %0 : vector<1x24xf32> to vector<8x24xf32>
    %171 = arith.subf %170, %169 : vector<8x24xf32>
    %cst_102 = arith.constant 0.000000e+00 : f32
    %172 = vector.broadcast %cst_102 : f32 to vector<8x24xf32>
    %173 = arith.maximumf %171, %172 : vector<8x24xf32>
    %174 = math.absf %171 : vector<8x24xf32>
    %cst_103 = arith.constant 0.000000e+00 : f32
    %175 = vector.broadcast %cst_103 : f32 to vector<8x24xf32>
    %176 = arith.subf %175, %174 : vector<8x24xf32>
    %177 = math.exp %176 : vector<8x24xf32>
    %178 = math.log1p %177 : vector<8x24xf32>
    %179 = arith.addf %173, %178 : vector<8x24xf32>
    %180 = vector.broadcast %0 : vector<1x24xf32> to vector<8x24xf32>
    %181 = arith.subf %180, %179 : vector<8x24xf32>
    %182 = vector.broadcast %1 : vector<1x24xf32> to vector<8x24xf32>
    %183 = arith.subf %181, %182 : vector<8x24xf32>
    %cst_104 = arith.constant 0.000000e+00 : f32
    %184 = vector.broadcast %cst_104 : f32 to vector<8x24xf32>
    %185 = arith.maximumf %183, %184 : vector<8x24xf32>
    %186 = math.absf %183 : vector<8x24xf32>
    %cst_105 = arith.constant 0.000000e+00 : f32
    %187 = vector.broadcast %cst_105 : f32 to vector<8x24xf32>
    %188 = arith.subf %187, %186 : vector<8x24xf32>
    %189 = math.exp %188 : vector<8x24xf32>
    %190 = math.log1p %189 : vector<8x24xf32>
    %191 = arith.addf %185, %190 : vector<8x24xf32>
    %192 = vector.broadcast %1 : vector<1x24xf32> to vector<8x24xf32>
    %193 = arith.addf %192, %191 : vector<8x24xf32>
    %194 = math.exp %193 : vector<8x24xf32>
    %195 = arith.select %4, %194, %169 : vector<8x24xi1>, vector<8x24xf32>
    %c1_106 = arith.constant 1 : index
    %c0_107 = arith.constant 0 : index
    %c0_108 = arith.constant 0 : index
    %196 = vector.load %arg7[%c1_106, %c0_107, %c0_108] : memref<5x8x24xf32, #tpu.memory_space<vmem>>, vector<1x8x24xf32>
    %197 = vector.shape_cast %196 : vector<1x8x24xf32> to vector<8x24xf32>
    %198 = vector.shape_cast %195 : vector<8x24xf32> to vector<1x8x24xf32>
    tpu.vector_store %arg7[%c1_106, %c0_107, %c0_108], %198 {strides = array<i32>} : memref<5x8x24xf32, #tpu.memory_space<vmem>>, vector<1x8x24xf32>,
    %c2_109 = arith.constant 2 : index
    %c0_110 = arith.constant 0 : index
    %c0_111 = arith.constant 0 : index
    %199 = vector.load %arg0[%c2_109, %c0_110, %c0_111] : memref<5x8x14xf32, #tpu.memory_space<vmem>>, vector<1x8x14xf32>
    %200 = vector.shape_cast %199 : vector<1x8x14xf32> to vector<8x14xf32>
    %c2_112 = arith.constant 2 : index
    %c0_113 = arith.constant 0 : index
    %c0_114 = arith.constant 0 : index
    %201 = vector.load %arg1[%c2_112, %c0_113, %c0_114] : memref<5x14x256xf32, #tpu.memory_space<vmem>>, vector<1x14x256xf32>
    %202 = vector.shape_cast %201 : vector<1x14x256xf32> to vector<14x256xf32>
    %cst_115 = arith.constant dense<0.000000e+00> : vector<8x256xf32>
    %203 = tpu.matmul %200, %202, %cst_115 {dimension_numbers = #tpu.dot_dimension_numbers<[1], [0], [0], [1], [0, 0, 1, 1], [], []>} : vector<8x14xf32>, vector<14x256xf32>, vector<8x256xf32> -> vector<8x256xf32>
    %c2_116 = arith.constant 2 : index
    %c0_117 = arith.constant 0 : index
    %c0_118 = arith.constant 0 : index
    %204 = vector.load %arg4[%c2_116, %c0_117, %c0_118] : memref<5x4x256xf32, #tpu.memory_space<vmem>>, vector<1x1x256xf32>
    %205 = vector.shape_cast %204 : vector<1x1x256xf32> to vector<1x256xf32>
    %206 = vector.broadcast %205 : vector<1x256xf32> to vector<8x256xf32>
    %207 = arith.addf %203, %206 : vector<8x256xf32>
    %cst_119 = arith.constant 0.000000e+00 : f32
    %208 = vector.broadcast %cst_119 : f32 to vector<8x256xf32>
    %209 = arith.subf %208, %207 : vector<8x256xf32>
    %210 = math.exp %209 : vector<8x256xf32>
    %cst_120 = arith.constant 1.000000e+00 : f32
    %211 = vector.broadcast %cst_120 : f32 to vector<8x256xf32>
    %212 = arith.addf %211, %210 : vector<8x256xf32>
    %cst_121 = arith.constant 1.000000e+00 : f32
    %213 = vector.broadcast %cst_121 : f32 to vector<8x256xf32>
    %214 = arith.divf %213, %212 : vector<8x256xf32>
    %215 = arith.mulf %207, %214 : vector<8x256xf32>
    %c2_122 = arith.constant 2 : index
    %c0_123 = arith.constant 0 : index
    %c0_124 = arith.constant 0 : index
    %216 = vector.load %arg2[%c2_122, %c0_123, %c0_124] : memref<5x256x768xf32, #tpu.memory_space<vmem>>, vector<1x256x256xf32>
    %217 = vector.shape_cast %216 : vector<1x256x256xf32> to vector<256x256xf32>
    %cst_125 = arith.constant dense<0.000000e+00> : vector<8x256xf32>
    %218 = tpu.matmul %215, %217, %cst_125 {dimension_numbers = #tpu.dot_dimension_numbers<[1], [0], [0], [1], [0, 0, 1, 1], [], []>} : vector<8x256xf32>, vector<256x256xf32>, vector<8x256xf32> -> vector<8x256xf32>
    %c2_126 = arith.constant 2 : index
    %c1_127 = arith.constant 1 : index
    %c0_128 = arith.constant 0 : index
    %219 = vector.load %arg4[%c2_126, %c1_127, %c0_128] : memref<5x4x256xf32, #tpu.memory_space<vmem>>, vector<1x1x256xf32>
    %220 = vector.shape_cast %219 : vector<1x1x256xf32> to vector<1x256xf32>
    %221 = vector.broadcast %220 : vector<1x256xf32> to vector<8x256xf32>
    %222 = arith.addf %218, %221 : vector<8x256xf32>
    %cst_129 = arith.constant 0.000000e+00 : f32
    %223 = vector.broadcast %cst_129 : f32 to vector<8x256xf32>
    %224 = arith.subf %223, %222 : vector<8x256xf32>
    %225 = math.exp %224 : vector<8x256xf32>
    %cst_130 = arith.constant 1.000000e+00 : f32
    %226 = vector.broadcast %cst_130 : f32 to vector<8x256xf32>
    %227 = arith.addf %226, %225 : vector<8x256xf32>
    %cst_131 = arith.constant 1.000000e+00 : f32
    %228 = vector.broadcast %cst_131 : f32 to vector<8x256xf32>
    %229 = arith.divf %228, %227 : vector<8x256xf32>
    %230 = arith.mulf %222, %229 : vector<8x256xf32>
    %c2_132 = arith.constant 2 : index
    %c0_133 = arith.constant 0 : index
    %c256_134 = arith.constant 256 : index
    %231 = vector.load %arg2[%c2_132, %c0_133, %c256_134] : memref<5x256x768xf32, #tpu.memory_space<vmem>>, vector<1x256x256xf32>
    %232 = vector.shape_cast %231 : vector<1x256x256xf32> to vector<256x256xf32>
    %cst_135 = arith.constant dense<0.000000e+00> : vector<8x256xf32>
    %233 = tpu.matmul %230, %232, %cst_135 {dimension_numbers = #tpu.dot_dimension_numbers<[1], [0], [0], [1], [0, 0, 1, 1], [], []>} : vector<8x256xf32>, vector<256x256xf32>, vector<8x256xf32> -> vector<8x256xf32>
    %c2_136 = arith.constant 2 : index
    %c2_137 = arith.constant 2 : index
    %c0_138 = arith.constant 0 : index
    %234 = vector.load %arg4[%c2_136, %c2_137, %c0_138] : memref<5x4x256xf32, #tpu.memory_space<vmem>>, vector<1x1x256xf32>
    %235 = vector.shape_cast %234 : vector<1x1x256xf32> to vector<1x256xf32>
    %236 = vector.broadcast %235 : vector<1x256xf32> to vector<8x256xf32>
    %237 = arith.addf %233, %236 : vector<8x256xf32>
    %cst_139 = arith.constant 0.000000e+00 : f32
    %238 = vector.broadcast %cst_139 : f32 to vector<8x256xf32>
    %239 = arith.subf %238, %237 : vector<8x256xf32>
    %240 = math.exp %239 : vector<8x256xf32>
    %cst_140 = arith.constant 1.000000e+00 : f32
    %241 = vector.broadcast %cst_140 : f32 to vector<8x256xf32>
    %242 = arith.addf %241, %240 : vector<8x256xf32>
    %cst_141 = arith.constant 1.000000e+00 : f32
    %243 = vector.broadcast %cst_141 : f32 to vector<8x256xf32>
    %244 = arith.divf %243, %242 : vector<8x256xf32>
    %245 = arith.mulf %237, %244 : vector<8x256xf32>
    %c2_142 = arith.constant 2 : index
    %c0_143 = arith.constant 0 : index
    %c512_144 = arith.constant 512 : index
    %246 = vector.load %arg2[%c2_142, %c0_143, %c512_144] : memref<5x256x768xf32, #tpu.memory_space<vmem>>, vector<1x256x256xf32>
    %247 = vector.shape_cast %246 : vector<1x256x256xf32> to vector<256x256xf32>
    %cst_145 = arith.constant dense<0.000000e+00> : vector<8x256xf32>
    %248 = tpu.matmul %245, %247, %cst_145 {dimension_numbers = #tpu.dot_dimension_numbers<[1], [0], [0], [1], [0, 0, 1, 1], [], []>} : vector<8x256xf32>, vector<256x256xf32>, vector<8x256xf32> -> vector<8x256xf32>
    %c2_146 = arith.constant 2 : index
    %c3_147 = arith.constant 3 : index
    %c0_148 = arith.constant 0 : index
    %249 = vector.load %arg4[%c2_146, %c3_147, %c0_148] : memref<5x4x256xf32, #tpu.memory_space<vmem>>, vector<1x1x256xf32>
    %250 = vector.shape_cast %249 : vector<1x1x256xf32> to vector<1x256xf32>
    %251 = vector.broadcast %250 : vector<1x256xf32> to vector<8x256xf32>
    %252 = arith.addf %248, %251 : vector<8x256xf32>
    %cst_149 = arith.constant 0.000000e+00 : f32
    %253 = vector.broadcast %cst_149 : f32 to vector<8x256xf32>
    %254 = arith.subf %253, %252 : vector<8x256xf32>
    %255 = math.exp %254 : vector<8x256xf32>
    %cst_150 = arith.constant 1.000000e+00 : f32
    %256 = vector.broadcast %cst_150 : f32 to vector<8x256xf32>
    %257 = arith.addf %256, %255 : vector<8x256xf32>
    %cst_151 = arith.constant 1.000000e+00 : f32
    %258 = vector.broadcast %cst_151 : f32 to vector<8x256xf32>
    %259 = arith.divf %258, %257 : vector<8x256xf32>
    %260 = arith.mulf %252, %259 : vector<8x256xf32>
    %c2_152 = arith.constant 2 : index
    %c0_153 = arith.constant 0 : index
    %c0_154 = arith.constant 0 : index
    %261 = vector.load %arg3[%c2_152, %c0_153, %c0_154] : memref<5x256x24xf32, #tpu.memory_space<vmem>>, vector<1x256x24xf32>
    %262 = vector.shape_cast %261 : vector<1x256x24xf32> to vector<256x24xf32>
    %cst_155 = arith.constant dense<0.000000e+00> : vector<8x24xf32>
    %263 = tpu.matmul %260, %262, %cst_155 {dimension_numbers = #tpu.dot_dimension_numbers<[1], [0], [0], [1], [0, 0, 1, 1], [], []>} : vector<8x256xf32>, vector<256x24xf32>, vector<8x24xf32> -> vector<8x24xf32>
    %c2_156 = arith.constant 2 : index
    %c0_157 = arith.constant 0 : index
    %264 = vector.load %arg5[%c2_156, %c0_157] : memref<5x24xf32, #tpu.memory_space<vmem>>, vector<1x24xf32>
    %265 = vector.broadcast %264 : vector<1x24xf32> to vector<8x24xf32>
    %266 = arith.addf %263, %265 : vector<8x24xf32>
    %267 = vector.broadcast %0 : vector<1x24xf32> to vector<8x24xf32>
    %268 = arith.subf %267, %266 : vector<8x24xf32>
    %cst_158 = arith.constant 0.000000e+00 : f32
    %269 = vector.broadcast %cst_158 : f32 to vector<8x24xf32>
    %270 = arith.maximumf %268, %269 : vector<8x24xf32>
    %271 = math.absf %268 : vector<8x24xf32>
    %cst_159 = arith.constant 0.000000e+00 : f32
    %272 = vector.broadcast %cst_159 : f32 to vector<8x24xf32>
    %273 = arith.subf %272, %271 : vector<8x24xf32>
    %274 = math.exp %273 : vector<8x24xf32>
    %275 = math.log1p %274 : vector<8x24xf32>
    %276 = arith.addf %270, %275 : vector<8x24xf32>
    %277 = vector.broadcast %0 : vector<1x24xf32> to vector<8x24xf32>
    %278 = arith.subf %277, %276 : vector<8x24xf32>
    %279 = vector.broadcast %1 : vector<1x24xf32> to vector<8x24xf32>
    %280 = arith.subf %278, %279 : vector<8x24xf32>
    %cst_160 = arith.constant 0.000000e+00 : f32
    %281 = vector.broadcast %cst_160 : f32 to vector<8x24xf32>
    %282 = arith.maximumf %280, %281 : vector<8x24xf32>
    %283 = math.absf %280 : vector<8x24xf32>
    %cst_161 = arith.constant 0.000000e+00 : f32
    %284 = vector.broadcast %cst_161 : f32 to vector<8x24xf32>
    %285 = arith.subf %284, %283 : vector<8x24xf32>
    %286 = math.exp %285 : vector<8x24xf32>
    %287 = math.log1p %286 : vector<8x24xf32>
    %288 = arith.addf %282, %287 : vector<8x24xf32>
    %289 = vector.broadcast %1 : vector<1x24xf32> to vector<8x24xf32>
    %290 = arith.addf %289, %288 : vector<8x24xf32>
    %291 = math.exp %290 : vector<8x24xf32>
    %292 = arith.select %4, %291, %266 : vector<8x24xi1>, vector<8x24xf32>
    %c2_162 = arith.constant 2 : index
    %c0_163 = arith.constant 0 : index
    %c0_164 = arith.constant 0 : index
    %293 = vector.load %arg7[%c2_162, %c0_163, %c0_164] : memref<5x8x24xf32, #tpu.memory_space<vmem>>, vector<1x8x24xf32>
    %294 = vector.shape_cast %293 : vector<1x8x24xf32> to vector<8x24xf32>
    %295 = vector.shape_cast %292 : vector<8x24xf32> to vector<1x8x24xf32>
    tpu.vector_store %arg7[%c2_162, %c0_163, %c0_164], %295 {strides = array<i32>} : memref<5x8x24xf32, #tpu.memory_space<vmem>>, vector<1x8x24xf32>,
    %c3_165 = arith.constant 3 : index
    %c0_166 = arith.constant 0 : index
    %c0_167 = arith.constant 0 : index
    %296 = vector.load %arg0[%c3_165, %c0_166, %c0_167] : memref<5x8x14xf32, #tpu.memory_space<vmem>>, vector<1x8x14xf32>
    %297 = vector.shape_cast %296 : vector<1x8x14xf32> to vector<8x14xf32>
    %c3_168 = arith.constant 3 : index
    %c0_169 = arith.constant 0 : index
    %c0_170 = arith.constant 0 : index
    %298 = vector.load %arg1[%c3_168, %c0_169, %c0_170] : memref<5x14x256xf32, #tpu.memory_space<vmem>>, vector<1x14x256xf32>
    %299 = vector.shape_cast %298 : vector<1x14x256xf32> to vector<14x256xf32>
    %cst_171 = arith.constant dense<0.000000e+00> : vector<8x256xf32>
    %300 = tpu.matmul %297, %299, %cst_171 {dimension_numbers = #tpu.dot_dimension_numbers<[1], [0], [0], [1], [0, 0, 1, 1], [], []>} : vector<8x14xf32>, vector<14x256xf32>, vector<8x256xf32> -> vector<8x256xf32>
    %c3_172 = arith.constant 3 : index
    %c0_173 = arith.constant 0 : index
    %c0_174 = arith.constant 0 : index
    %301 = vector.load %arg4[%c3_172, %c0_173, %c0_174] : memref<5x4x256xf32, #tpu.memory_space<vmem>>, vector<1x1x256xf32>
    %302 = vector.shape_cast %301 : vector<1x1x256xf32> to vector<1x256xf32>
    %303 = vector.broadcast %302 : vector<1x256xf32> to vector<8x256xf32>
    %304 = arith.addf %300, %303 : vector<8x256xf32>
    %cst_175 = arith.constant 0.000000e+00 : f32
    %305 = vector.broadcast %cst_175 : f32 to vector<8x256xf32>
    %306 = arith.subf %305, %304 : vector<8x256xf32>
    %307 = math.exp %306 : vector<8x256xf32>
    %cst_176 = arith.constant 1.000000e+00 : f32
    %308 = vector.broadcast %cst_176 : f32 to vector<8x256xf32>
    %309 = arith.addf %308, %307 : vector<8x256xf32>
    %cst_177 = arith.constant 1.000000e+00 : f32
    %310 = vector.broadcast %cst_177 : f32 to vector<8x256xf32>
    %311 = arith.divf %310, %309 : vector<8x256xf32>
    %312 = arith.mulf %304, %311 : vector<8x256xf32>
    %c3_178 = arith.constant 3 : index
    %c0_179 = arith.constant 0 : index
    %c0_180 = arith.constant 0 : index
    %313 = vector.load %arg2[%c3_178, %c0_179, %c0_180] : memref<5x256x768xf32, #tpu.memory_space<vmem>>, vector<1x256x256xf32>
    %314 = vector.shape_cast %313 : vector<1x256x256xf32> to vector<256x256xf32>
    %cst_181 = arith.constant dense<0.000000e+00> : vector<8x256xf32>
    %315 = tpu.matmul %312, %314, %cst_181 {dimension_numbers = #tpu.dot_dimension_numbers<[1], [0], [0], [1], [0, 0, 1, 1], [], []>} : vector<8x256xf32>, vector<256x256xf32>, vector<8x256xf32> -> vector<8x256xf32>
    %c3_182 = arith.constant 3 : index
    %c1_183 = arith.constant 1 : index
    %c0_184 = arith.constant 0 : index
    %316 = vector.load %arg4[%c3_182, %c1_183, %c0_184] : memref<5x4x256xf32, #tpu.memory_space<vmem>>, vector<1x1x256xf32>
    %317 = vector.shape_cast %316 : vector<1x1x256xf32> to vector<1x256xf32>
    %318 = vector.broadcast %317 : vector<1x256xf32> to vector<8x256xf32>
    %319 = arith.addf %315, %318 : vector<8x256xf32>
    %cst_185 = arith.constant 0.000000e+00 : f32
    %320 = vector.broadcast %cst_185 : f32 to vector<8x256xf32>
    %321 = arith.subf %320, %319 : vector<8x256xf32>
    %322 = math.exp %321 : vector<8x256xf32>
    %cst_186 = arith.constant 1.000000e+00 : f32
    %323 = vector.broadcast %cst_186 : f32 to vector<8x256xf32>
    %324 = arith.addf %323, %322 : vector<8x256xf32>
    %cst_187 = arith.constant 1.000000e+00 : f32
    %325 = vector.broadcast %cst_187 : f32 to vector<8x256xf32>
    %326 = arith.divf %325, %324 : vector<8x256xf32>
    %327 = arith.mulf %319, %326 : vector<8x256xf32>
    %c3_188 = arith.constant 3 : index
    %c0_189 = arith.constant 0 : index
    %c256_190 = arith.constant 256 : index
    %328 = vector.load %arg2[%c3_188, %c0_189, %c256_190] : memref<5x256x768xf32, #tpu.memory_space<vmem>>, vector<1x256x256xf32>
    %329 = vector.shape_cast %328 : vector<1x256x256xf32> to vector<256x256xf32>
    %cst_191 = arith.constant dense<0.000000e+00> : vector<8x256xf32>
    %330 = tpu.matmul %327, %329, %cst_191 {dimension_numbers = #tpu.dot_dimension_numbers<[1], [0], [0], [1], [0, 0, 1, 1], [], []>} : vector<8x256xf32>, vector<256x256xf32>, vector<8x256xf32> -> vector<8x256xf32>
    %c3_192 = arith.constant 3 : index
    %c2_193 = arith.constant 2 : index
    %c0_194 = arith.constant 0 : index
    %331 = vector.load %arg4[%c3_192, %c2_193, %c0_194] : memref<5x4x256xf32, #tpu.memory_space<vmem>>, vector<1x1x256xf32>
    %332 = vector.shape_cast %331 : vector<1x1x256xf32> to vector<1x256xf32>
    %333 = vector.broadcast %332 : vector<1x256xf32> to vector<8x256xf32>
    %334 = arith.addf %330, %333 : vector<8x256xf32>
    %cst_195 = arith.constant 0.000000e+00 : f32
    %335 = vector.broadcast %cst_195 : f32 to vector<8x256xf32>
    %336 = arith.subf %335, %334 : vector<8x256xf32>
    %337 = math.exp %336 : vector<8x256xf32>
    %cst_196 = arith.constant 1.000000e+00 : f32
    %338 = vector.broadcast %cst_196 : f32 to vector<8x256xf32>
    %339 = arith.addf %338, %337 : vector<8x256xf32>
    %cst_197 = arith.constant 1.000000e+00 : f32
    %340 = vector.broadcast %cst_197 : f32 to vector<8x256xf32>
    %341 = arith.divf %340, %339 : vector<8x256xf32>
    %342 = arith.mulf %334, %341 : vector<8x256xf32>
    %c3_198 = arith.constant 3 : index
    %c0_199 = arith.constant 0 : index
    %c512_200 = arith.constant 512 : index
    %343 = vector.load %arg2[%c3_198, %c0_199, %c512_200] : memref<5x256x768xf32, #tpu.memory_space<vmem>>, vector<1x256x256xf32>
    %344 = vector.shape_cast %343 : vector<1x256x256xf32> to vector<256x256xf32>
    %cst_201 = arith.constant dense<0.000000e+00> : vector<8x256xf32>
    %345 = tpu.matmul %342, %344, %cst_201 {dimension_numbers = #tpu.dot_dimension_numbers<[1], [0], [0], [1], [0, 0, 1, 1], [], []>} : vector<8x256xf32>, vector<256x256xf32>, vector<8x256xf32> -> vector<8x256xf32>
    %c3_202 = arith.constant 3 : index
    %c3_203 = arith.constant 3 : index
    %c0_204 = arith.constant 0 : index
    %346 = vector.load %arg4[%c3_202, %c3_203, %c0_204] : memref<5x4x256xf32, #tpu.memory_space<vmem>>, vector<1x1x256xf32>
    %347 = vector.shape_cast %346 : vector<1x1x256xf32> to vector<1x256xf32>
    %348 = vector.broadcast %347 : vector<1x256xf32> to vector<8x256xf32>
    %349 = arith.addf %345, %348 : vector<8x256xf32>
    %cst_205 = arith.constant 0.000000e+00 : f32
    %350 = vector.broadcast %cst_205 : f32 to vector<8x256xf32>
    %351 = arith.subf %350, %349 : vector<8x256xf32>
    %352 = math.exp %351 : vector<8x256xf32>
    %cst_206 = arith.constant 1.000000e+00 : f32
    %353 = vector.broadcast %cst_206 : f32 to vector<8x256xf32>
    %354 = arith.addf %353, %352 : vector<8x256xf32>
    %cst_207 = arith.constant 1.000000e+00 : f32
    %355 = vector.broadcast %cst_207 : f32 to vector<8x256xf32>
    %356 = arith.divf %355, %354 : vector<8x256xf32>
    %357 = arith.mulf %349, %356 : vector<8x256xf32>
    %c3_208 = arith.constant 3 : index
    %c0_209 = arith.constant 0 : index
    %c0_210 = arith.constant 0 : index
    %358 = vector.load %arg3[%c3_208, %c0_209, %c0_210] : memref<5x256x24xf32, #tpu.memory_space<vmem>>, vector<1x256x24xf32>
    %359 = vector.shape_cast %358 : vector<1x256x24xf32> to vector<256x24xf32>
    %cst_211 = arith.constant dense<0.000000e+00> : vector<8x24xf32>
    %360 = tpu.matmul %357, %359, %cst_211 {dimension_numbers = #tpu.dot_dimension_numbers<[1], [0], [0], [1], [0, 0, 1, 1], [], []>} : vector<8x256xf32>, vector<256x24xf32>, vector<8x24xf32> -> vector<8x24xf32>
    %c3_212 = arith.constant 3 : index
    %c0_213 = arith.constant 0 : index
    %361 = vector.load %arg5[%c3_212, %c0_213] : memref<5x24xf32, #tpu.memory_space<vmem>>, vector<1x24xf32>
    %362 = vector.broadcast %361 : vector<1x24xf32> to vector<8x24xf32>
    %363 = arith.addf %360, %362 : vector<8x24xf32>
    %364 = vector.broadcast %0 : vector<1x24xf32> to vector<8x24xf32>
    %365 = arith.subf %364, %363 : vector<8x24xf32>
    %cst_214 = arith.constant 0.000000e+00 : f32
    %366 = vector.broadcast %cst_214 : f32 to vector<8x24xf32>
    %367 = arith.maximumf %365, %366 : vector<8x24xf32>
    %368 = math.absf %365 : vector<8x24xf32>
    %cst_215 = arith.constant 0.000000e+00 : f32
    %369 = vector.broadcast %cst_215 : f32 to vector<8x24xf32>
    %370 = arith.subf %369, %368 : vector<8x24xf32>
    %371 = math.exp %370 : vector<8x24xf32>
    %372 = math.log1p %371 : vector<8x24xf32>
    %373 = arith.addf %367, %372 : vector<8x24xf32>
    %374 = vector.broadcast %0 : vector<1x24xf32> to vector<8x24xf32>
    %375 = arith.subf %374, %373 : vector<8x24xf32>
    %376 = vector.broadcast %1 : vector<1x24xf32> to vector<8x24xf32>
    %377 = arith.subf %375, %376 : vector<8x24xf32>
    %cst_216 = arith.constant 0.000000e+00 : f32
    %378 = vector.broadcast %cst_216 : f32 to vector<8x24xf32>
    %379 = arith.maximumf %377, %378 : vector<8x24xf32>
    %380 = math.absf %377 : vector<8x24xf32>
    %cst_217 = arith.constant 0.000000e+00 : f32
    %381 = vector.broadcast %cst_217 : f32 to vector<8x24xf32>
    %382 = arith.subf %381, %380 : vector<8x24xf32>
    %383 = math.exp %382 : vector<8x24xf32>
    %384 = math.log1p %383 : vector<8x24xf32>
    %385 = arith.addf %379, %384 : vector<8x24xf32>
    %386 = vector.broadcast %1 : vector<1x24xf32> to vector<8x24xf32>
    %387 = arith.addf %386, %385 : vector<8x24xf32>
    %388 = math.exp %387 : vector<8x24xf32>
    %389 = arith.select %4, %388, %363 : vector<8x24xi1>, vector<8x24xf32>
    %c3_218 = arith.constant 3 : index
    %c0_219 = arith.constant 0 : index
    %c0_220 = arith.constant 0 : index
    %390 = vector.load %arg7[%c3_218, %c0_219, %c0_220] : memref<5x8x24xf32, #tpu.memory_space<vmem>>, vector<1x8x24xf32>
    %391 = vector.shape_cast %390 : vector<1x8x24xf32> to vector<8x24xf32>
    %392 = vector.shape_cast %389 : vector<8x24xf32> to vector<1x8x24xf32>
    tpu.vector_store %arg7[%c3_218, %c0_219, %c0_220], %392 {strides = array<i32>} : memref<5x8x24xf32, #tpu.memory_space<vmem>>, vector<1x8x24xf32>,
    %c4 = arith.constant 4 : index
    %c0_221 = arith.constant 0 : index
    %c0_222 = arith.constant 0 : index
    %393 = vector.load %arg0[%c4, %c0_221, %c0_222] : memref<5x8x14xf32, #tpu.memory_space<vmem>>, vector<1x8x14xf32>
    %394 = vector.shape_cast %393 : vector<1x8x14xf32> to vector<8x14xf32>
    %c4_223 = arith.constant 4 : index
    %c0_224 = arith.constant 0 : index
    %c0_225 = arith.constant 0 : index
    %395 = vector.load %arg1[%c4_223, %c0_224, %c0_225] : memref<5x14x256xf32, #tpu.memory_space<vmem>>, vector<1x14x256xf32>
    %396 = vector.shape_cast %395 : vector<1x14x256xf32> to vector<14x256xf32>
    %cst_226 = arith.constant dense<0.000000e+00> : vector<8x256xf32>
    %397 = tpu.matmul %394, %396, %cst_226 {dimension_numbers = #tpu.dot_dimension_numbers<[1], [0], [0], [1], [0, 0, 1, 1], [], []>} : vector<8x14xf32>, vector<14x256xf32>, vector<8x256xf32> -> vector<8x256xf32>
    %c4_227 = arith.constant 4 : index
    %c0_228 = arith.constant 0 : index
    %c0_229 = arith.constant 0 : index
    %398 = vector.load %arg4[%c4_227, %c0_228, %c0_229] : memref<5x4x256xf32, #tpu.memory_space<vmem>>, vector<1x1x256xf32>
    %399 = vector.shape_cast %398 : vector<1x1x256xf32> to vector<1x256xf32>
    %400 = vector.broadcast %399 : vector<1x256xf32> to vector<8x256xf32>
    %401 = arith.addf %397, %400 : vector<8x256xf32>
    %cst_230 = arith.constant 0.000000e+00 : f32
    %402 = vector.broadcast %cst_230 : f32 to vector<8x256xf32>
    %403 = arith.subf %402, %401 : vector<8x256xf32>
    %404 = math.exp %403 : vector<8x256xf32>
    %cst_231 = arith.constant 1.000000e+00 : f32
    %405 = vector.broadcast %cst_231 : f32 to vector<8x256xf32>
    %406 = arith.addf %405, %404 : vector<8x256xf32>
    %cst_232 = arith.constant 1.000000e+00 : f32
    %407 = vector.broadcast %cst_232 : f32 to vector<8x256xf32>
    %408 = arith.divf %407, %406 : vector<8x256xf32>
    %409 = arith.mulf %401, %408 : vector<8x256xf32>
    %c4_233 = arith.constant 4 : index
    %c0_234 = arith.constant 0 : index
    %c0_235 = arith.constant 0 : index
    %410 = vector.load %arg2[%c4_233, %c0_234, %c0_235] : memref<5x256x768xf32, #tpu.memory_space<vmem>>, vector<1x256x256xf32>
    %411 = vector.shape_cast %410 : vector<1x256x256xf32> to vector<256x256xf32>
    %cst_236 = arith.constant dense<0.000000e+00> : vector<8x256xf32>
    %412 = tpu.matmul %409, %411, %cst_236 {dimension_numbers = #tpu.dot_dimension_numbers<[1], [0], [0], [1], [0, 0, 1, 1], [], []>} : vector<8x256xf32>, vector<256x256xf32>, vector<8x256xf32> -> vector<8x256xf32>
    %c4_237 = arith.constant 4 : index
    %c1_238 = arith.constant 1 : index
    %c0_239 = arith.constant 0 : index
    %413 = vector.load %arg4[%c4_237, %c1_238, %c0_239] : memref<5x4x256xf32, #tpu.memory_space<vmem>>, vector<1x1x256xf32>
    %414 = vector.shape_cast %413 : vector<1x1x256xf32> to vector<1x256xf32>
    %415 = vector.broadcast %414 : vector<1x256xf32> to vector<8x256xf32>
    %416 = arith.addf %412, %415 : vector<8x256xf32>
    %cst_240 = arith.constant 0.000000e+00 : f32
    %417 = vector.broadcast %cst_240 : f32 to vector<8x256xf32>
    %418 = arith.subf %417, %416 : vector<8x256xf32>
    %419 = math.exp %418 : vector<8x256xf32>
    %cst_241 = arith.constant 1.000000e+00 : f32
    %420 = vector.broadcast %cst_241 : f32 to vector<8x256xf32>
    %421 = arith.addf %420, %419 : vector<8x256xf32>
    %cst_242 = arith.constant 1.000000e+00 : f32
    %422 = vector.broadcast %cst_242 : f32 to vector<8x256xf32>
    %423 = arith.divf %422, %421 : vector<8x256xf32>
    %424 = arith.mulf %416, %423 : vector<8x256xf32>
    %c4_243 = arith.constant 4 : index
    %c0_244 = arith.constant 0 : index
    %c256_245 = arith.constant 256 : index
    %425 = vector.load %arg2[%c4_243, %c0_244, %c256_245] : memref<5x256x768xf32, #tpu.memory_space<vmem>>, vector<1x256x256xf32>
    %426 = vector.shape_cast %425 : vector<1x256x256xf32> to vector<256x256xf32>
    %cst_246 = arith.constant dense<0.000000e+00> : vector<8x256xf32>
    %427 = tpu.matmul %424, %426, %cst_246 {dimension_numbers = #tpu.dot_dimension_numbers<[1], [0], [0], [1], [0, 0, 1, 1], [], []>} : vector<8x256xf32>, vector<256x256xf32>, vector<8x256xf32> -> vector<8x256xf32>
    %c4_247 = arith.constant 4 : index
    %c2_248 = arith.constant 2 : index
    %c0_249 = arith.constant 0 : index
    %428 = vector.load %arg4[%c4_247, %c2_248, %c0_249] : memref<5x4x256xf32, #tpu.memory_space<vmem>>, vector<1x1x256xf32>
    %429 = vector.shape_cast %428 : vector<1x1x256xf32> to vector<1x256xf32>
    %430 = vector.broadcast %429 : vector<1x256xf32> to vector<8x256xf32>
    %431 = arith.addf %427, %430 : vector<8x256xf32>
    %cst_250 = arith.constant 0.000000e+00 : f32
    %432 = vector.broadcast %cst_250 : f32 to vector<8x256xf32>
    %433 = arith.subf %432, %431 : vector<8x256xf32>
    %434 = math.exp %433 : vector<8x256xf32>
    %cst_251 = arith.constant 1.000000e+00 : f32
    %435 = vector.broadcast %cst_251 : f32 to vector<8x256xf32>
    %436 = arith.addf %435, %434 : vector<8x256xf32>
    %cst_252 = arith.constant 1.000000e+00 : f32
    %437 = vector.broadcast %cst_252 : f32 to vector<8x256xf32>
    %438 = arith.divf %437, %436 : vector<8x256xf32>
    %439 = arith.mulf %431, %438 : vector<8x256xf32>
    %c4_253 = arith.constant 4 : index
    %c0_254 = arith.constant 0 : index
    %c512_255 = arith.constant 512 : index
    %440 = vector.load %arg2[%c4_253, %c0_254, %c512_255] : memref<5x256x768xf32, #tpu.memory_space<vmem>>, vector<1x256x256xf32>
    %441 = vector.shape_cast %440 : vector<1x256x256xf32> to vector<256x256xf32>
    %cst_256 = arith.constant dense<0.000000e+00> : vector<8x256xf32>
    %442 = tpu.matmul %439, %441, %cst_256 {dimension_numbers = #tpu.dot_dimension_numbers<[1], [0], [0], [1], [0, 0, 1, 1], [], []>} : vector<8x256xf32>, vector<256x256xf32>, vector<8x256xf32> -> vector<8x256xf32>
    %c4_257 = arith.constant 4 : index
    %c3_258 = arith.constant 3 : index
    %c0_259 = arith.constant 0 : index
    %443 = vector.load %arg4[%c4_257, %c3_258, %c0_259] : memref<5x4x256xf32, #tpu.memory_space<vmem>>, vector<1x1x256xf32>
    %444 = vector.shape_cast %443 : vector<1x1x256xf32> to vector<1x256xf32>
    %445 = vector.broadcast %444 : vector<1x256xf32> to vector<8x256xf32>
    %446 = arith.addf %442, %445 : vector<8x256xf32>
    %cst_260 = arith.constant 0.000000e+00 : f32
    %447 = vector.broadcast %cst_260 : f32 to vector<8x256xf32>
    %448 = arith.subf %447, %446 : vector<8x256xf32>
    %449 = math.exp %448 : vector<8x256xf32>
    %cst_261 = arith.constant 1.000000e+00 : f32
    %450 = vector.broadcast %cst_261 : f32 to vector<8x256xf32>
    %451 = arith.addf %450, %449 : vector<8x256xf32>
    %cst_262 = arith.constant 1.000000e+00 : f32
    %452 = vector.broadcast %cst_262 : f32 to vector<8x256xf32>
    %453 = arith.divf %452, %451 : vector<8x256xf32>
    %454 = arith.mulf %446, %453 : vector<8x256xf32>
    %c4_263 = arith.constant 4 : index
    %c0_264 = arith.constant 0 : index
    %c0_265 = arith.constant 0 : index
    %455 = vector.load %arg3[%c4_263, %c0_264, %c0_265] : memref<5x256x24xf32, #tpu.memory_space<vmem>>, vector<1x256x24xf32>
    %456 = vector.shape_cast %455 : vector<1x256x24xf32> to vector<256x24xf32>
    %cst_266 = arith.constant dense<0.000000e+00> : vector<8x24xf32>
    %457 = tpu.matmul %454, %456, %cst_266 {dimension_numbers = #tpu.dot_dimension_numbers<[1], [0], [0], [1], [0, 0, 1, 1], [], []>} : vector<8x256xf32>, vector<256x24xf32>, vector<8x24xf32> -> vector<8x24xf32>
    %c4_267 = arith.constant 4 : index
    %c0_268 = arith.constant 0 : index
    %458 = vector.load %arg5[%c4_267, %c0_268] : memref<5x24xf32, #tpu.memory_space<vmem>>, vector<1x24xf32>
    %459 = vector.broadcast %458 : vector<1x24xf32> to vector<8x24xf32>
    %460 = arith.addf %457, %459 : vector<8x24xf32>
    %461 = vector.broadcast %0 : vector<1x24xf32> to vector<8x24xf32>
    %462 = arith.subf %461, %460 : vector<8x24xf32>
    %cst_269 = arith.constant 0.000000e+00 : f32
    %463 = vector.broadcast %cst_269 : f32 to vector<8x24xf32>
    %464 = arith.maximumf %462, %463 : vector<8x24xf32>
    %465 = math.absf %462 : vector<8x24xf32>
    %cst_270 = arith.constant 0.000000e+00 : f32
    %466 = vector.broadcast %cst_270 : f32 to vector<8x24xf32>
    %467 = arith.subf %466, %465 : vector<8x24xf32>
    %468 = math.exp %467 : vector<8x24xf32>
    %469 = math.log1p %468 : vector<8x24xf32>
    %470 = arith.addf %464, %469 : vector<8x24xf32>
    %471 = vector.broadcast %0 : vector<1x24xf32> to vector<8x24xf32>
    %472 = arith.subf %471, %470 : vector<8x24xf32>
    %473 = vector.broadcast %1 : vector<1x24xf32> to vector<8x24xf32>
    %474 = arith.subf %472, %473 : vector<8x24xf32>
    %cst_271 = arith.constant 0.000000e+00 : f32
    %475 = vector.broadcast %cst_271 : f32 to vector<8x24xf32>
    %476 = arith.maximumf %474, %475 : vector<8x24xf32>
    %477 = math.absf %474 : vector<8x24xf32>
    %cst_272 = arith.constant 0.000000e+00 : f32
    %478 = vector.broadcast %cst_272 : f32 to vector<8x24xf32>
    %479 = arith.subf %478, %477 : vector<8x24xf32>
    %480 = math.exp %479 : vector<8x24xf32>
    %481 = math.log1p %480 : vector<8x24xf32>
    %482 = arith.addf %476, %481 : vector<8x24xf32>
    %483 = vector.broadcast %1 : vector<1x24xf32> to vector<8x24xf32>
    %484 = arith.addf %483, %482 : vector<8x24xf32>
    %485 = math.exp %484 : vector<8x24xf32>
    %486 = arith.select %4, %485, %460 : vector<8x24xi1>, vector<8x24xf32>
    %c4_273 = arith.constant 4 : index
    %c0_274 = arith.constant 0 : index
    %c0_275 = arith.constant 0 : index
    %487 = vector.load %arg7[%c4_273, %c0_274, %c0_275] : memref<5x8x24xf32, #tpu.memory_space<vmem>>, vector<1x8x24xf32>
    %488 = vector.shape_cast %487 : vector<1x8x24xf32> to vector<8x24xf32>
    %489 = vector.shape_cast %486 : vector<8x24xf32> to vector<1x8x24xf32>
    tpu.vector_store %arg7[%c4_273, %c0_274, %c0_275], %489 {strides = array<i32>} : memref<5x8x24xf32, #tpu.memory_space<vmem>>, vector<1x8x24xf32>,
    return
  }
}

</mosaic_0001>

<llo_original>
// kernel: tpu_custom_call.1
$region0: #{tpu_custom_call.1}
  #allocation0 [shape = 'u32[]', space=smem, size = 0x4, offset = 0x4, fixed_abs, tag = 'smem constant byte address 0x4 - core index']
  #allocation1 [shape = 'u32[144,128]{1,0:T(1,128)}', space=vmem, size = 0x12000, scoped, tag = 'internal scratch']
  %s0 = inlined_call_operand.hbm [shape: f32[5,8,14], index: 0, kind: input, shape index: {}]
  %s1 = inlined_call_operand.hbm [shape: f32[5,14,256], index: 1, kind: input, shape index: {}]
  %s2 = inlined_call_operand.hbm [shape: f32[5,256,768], index: 2, kind: input, shape index: {}]
  %s3 = inlined_call_operand.vmem [shape: f32[5,256,24], index: 3, kind: input, shape index: {}]
  %s4 = inlined_call_operand.hbm [shape: f32[5,4,256], index: 4, kind: input, shape index: {}]
  %s5 = inlined_call_operand.hbm [shape: f32[5,24], index: 5, kind: input, shape index: {}]
  %s6 = inlined_call_operand.hbm [shape: f32[2,24], index: 6, kind: input, shape index: {}]
  %s7 = inlined_call_operand.hbm [shape: f32[5,8,24], index: 7, kind: output, shape index: {}]
  %s8 = sld [smem:[#allocation0]]
  $region62: #{tpu_custom_call.1} parent=0
    _
  %s10 = ssub.s32 1, %s8
  %s11 = scalar_select 0, %s10, %s8
  $region1: #{tpu_custom_call.1} parent=0
    #allocation2 [shape = 'u8[20480]{0}', space=vmem, size = 0x5000, scoped, tag = 'input window, operand 0, single buffered']
    #allocation3 [shape = 's32[1]{0}', space=sflag, size = 0x4, scoped, tag = 'scoped memory for tpu_custom_call.1']
    #allocation4 [shape = 's32[1]{0}', space=sflag, size = 0x4, scoped, tag = 'scoped memory for tpu_custom_call.1']
    #allocation5 [shape = 'u8[81920]{0}', space=vmem, size = 0x14000, scoped, tag = 'input window, operand 1, single buffered']
    #allocation6 [shape = 's32[1]{0}', space=sflag, size = 0x4, scoped, tag = 'scoped memory for tpu_custom_call.1']
    #allocation7 [shape = 'u8[3932160]{0}', space=vmem, size = 0x3c0000, scoped, tag = 'input window, operand 2, single buffered']
    #allocation8 [shape = 'u8[20480]{0}', space=vmem, size = 0x5000, scoped, tag = 'input window, operand 4, single buffered']
    #allocation9 [shape = 's32[1]{0}', space=sflag, size = 0x4, scoped, tag = 'scoped memory for tpu_custom_call.1']
    #allocation10 [shape = 'u8[4096]{0}', space=vmem, size = 0x1000, scoped, tag = 'input window, operand 5, single buffered']
    #allocation11 [shape = 'u8[1024]{0}', space=vmem, size = 0x400, scoped, tag = 'input window, operand 6, single buffered']
    #allocation12 [shape = 's32[1]{0}', space=sflag, size = 0x4, scoped, tag = 'scoped memory for tpu_custom_call.1']
    #allocation13 [shape = 'u8[20480]{0}', space=vmem, size = 0x5000, scoped, tag = 'output window, operand 0, single buffered']
    %12 = vsyncpa [#allocation3], 0
    %13 = vsyncpa [#allocation6], 0
    %14 = vsyncpa [#allocation9], 0
    %15 = vsyncpa [#allocation12], 0
    %16 = vsyncpa [#allocation4], 0
    // Predicated region
    $region2: #{tpu_custom_call.1} parent=1 // pred_check
      _
    $region3: #{tpu_custom_call.1} parent=1 // pred_check_branch
      %18 = sbr.rel (0) target = $region5
    $region4: #{tpu_custom_call.1} parent=1 // pred_region
      %s20 = ssub.s32 640, 640
      %21 = vsyncadd [#allocation3], %s20
      %s22 = sshll.u32 [#allocation2], 4
      %s23 = int_to_ptr.vmem [resolvable:$true] %s22
      %28 = dma.hbm_to_vmem [thread:$0]  %s0, 640, %s23, [#allocation3], 128, 128, 8
    $region5: #{tpu_custom_call.1} parent=1 // pred_fallthru
      _
    // Predicated region
    $region6: #{tpu_custom_call.1} parent=1 // pred_check
      _
    $region7: #{tpu_custom_call.1} parent=1 // pred_check_branch
      %30 = sbr.rel (0) target = $region9
    $region8: #{tpu_custom_call.1} parent=1 // pred_region
      %s32 = ssub.s32 2560, 2560
      %33 = vsyncadd [#allocation6], %s32
      %s34 = sshll.u32 [#allocation5], 4
      %s35 = int_to_ptr.vmem [resolvable:$true] %s34
      %40 = dma.hbm_to_vmem [thread:$0]  %s1, 2560, %s35, [#allocation6], 256, 256, 16
    $region9: #{tpu_custom_call.1} parent=1 // pred_fallthru
      _
    // Predicated region
    $region10: #{tpu_custom_call.1} parent=1 // pred_check
      _
    $region11: #{tpu_custom_call.1} parent=1 // pred_check_branch
      %42 = sbr.rel (0) target = $region13
    $region12: #{tpu_custom_call.1} parent=1 // pred_region
      %s44 = ssub.s32 122880, 122880
      %45 = vsyncadd [#allocation6], %s44
      %s46 = sshll.u32 [#allocation7], 4
      %s47 = int_to_ptr.vmem [resolvable:$true] %s46
      %52 = dma.hbm_to_vmem [thread:$0]  %s2, 122880, %s47, [#allocation6], 768, 768, 48
    $region13: #{tpu_custom_call.1} parent=1 // pred_fallthru
      _
    // Predicated region
    $region14: #{tpu_custom_call.1} parent=1 // pred_check
      _
    $region15: #{tpu_custom_call.1} parent=1 // pred_check_branch
      %54 = sbr.rel (0) target = $region17
    $region16: #{tpu_custom_call.1} parent=1 // pred_region
      _
    $region17: #{tpu_custom_call.1} parent=1 // pred_fallthru
      _
    // Predicated region
    $region18: #{tpu_custom_call.1} parent=1 // pred_check
      _
    $region19: #{tpu_custom_call.1} parent=1 // pred_check_branch
      %56 = sbr.rel (0) target = $region21
    $region20: #{tpu_custom_call.1} parent=1 // pred_region
      %s58 = ssub.s32 640, 640
      %59 = vsyncadd [#allocation9], %s58
      %s60 = sshll.u32 [#allocation8], 4
      %s61 = int_to_ptr.vmem [resolvable:$true] %s60
      %66 = dma.hbm_to_vmem [thread:$0]  %s4, 640, %s61, [#allocation9], 128, 128, 8
    $region21: #{tpu_custom_call.1} parent=1 // pred_fallthru
      _
    // Predicated region
    $region22: #{tpu_custom_call.1} parent=1 // pred_check
      _
    $region23: #{tpu_custom_call.1} parent=1 // pred_check_branch
      %68 = sbr.rel (0) target = $region25
    $region24: #{tpu_custom_call.1} parent=1 // pred_region
      %s70 = ssub.s32 128, 128
      %71 = vsyncadd [#allocation9], %s70
      %s73 = sshll.u32 [#allocation10], 4
      %s74 = int_to_ptr.vmem [resolvable:$true] %s73
      %76 = dma.hbm_to_vmem [thread:$0]  %s5, 128, %s74, [#allocation9]
    $region25: #{tpu_custom_call.1} parent=1 // pred_fallthru
      _
    // Predicated region
    $region26: #{tpu_custom_call.1} parent=1 // pred_check
      _
    $region27: #{tpu_custom_call.1} parent=1 // pred_check_branch
      %78 = sbr.rel (0) target = $region29
    $region28: #{tpu_custom_call.1} parent=1 // pred_region
      %s80 = ssub.s32 32, 32
      %81 = vsyncadd [#allocation12], %s80
      %s83 = sshll.u32 [#allocation11], 4
      %s84 = int_to_ptr.vmem [resolvable:$true] %s83
      %86 = dma.hbm_to_vmem [thread:$0]  %s6, 32, %s84, [#allocation12]
    $region29: #{tpu_custom_call.1} parent=1 // pred_fallthru
      _
    // Predicated region
    $region30: #{tpu_custom_call.1} parent=1 // pred_check
      _
    $region31: #{tpu_custom_call.1} parent=1 // pred_check_branch
      %88 = sbr.rel (0) target = $region33
    $region32: #{tpu_custom_call.1} parent=1 // pred_region
      %89 = dma.done [#allocation3], 640
    $region33: #{tpu_custom_call.1} parent=1 // pred_fallthru
      _
    // Predicated region
    $region34: #{tpu_custom_call.1} parent=1 // pred_check
      _
    $region35: #{tpu_custom_call.1} parent=1 // pred_check_branch
      %91 = sbr.rel (0) target = $region37
    $region36: #{tpu_custom_call.1} parent=1 // pred_region
      %92 = dma.done [#allocation6], 2560
    $region37: #{tpu_custom_call.1} parent=1 // pred_fallthru
      _
    // Predicated region
    $region38: #{tpu_custom_call.1} parent=1 // pred_check
      _
    $region39: #{tpu_custom_call.1} parent=1 // pred_check_branch
      %94 = sbr.rel (0) target = $region41
    $region40: #{tpu_custom_call.1} parent=1 // pred_region
      %95 = dma.done [#allocation6], 122880
    $region41: #{tpu_custom_call.1} parent=1 // pred_fallthru
      _
    // Predicated region
    $region42: #{tpu_custom_call.1} parent=1 // pred_check
      _
    $region43: #{tpu_custom_call.1} parent=1 // pred_check_branch
      %97 = sbr.rel (0) target = $region45
    $region44: #{tpu_custom_call.1} parent=1 // pred_region
      %98 = dma.done [#allocation9], 640
    $region45: #{tpu_custom_call.1} parent=1 // pred_fallthru
      _
    // Predicated region
    $region46: #{tpu_custom_call.1} parent=1 // pred_check
      _
    $region47: #{tpu_custom_call.1} parent=1 // pred_check_branch
      %100 = sbr.rel (0) target = $region49
    $region48: #{tpu_custom_call.1} parent=1 // pred_region
      %101 = dma.done [#allocation9], 128
    $region49: #{tpu_custom_call.1} parent=1 // pred_fallthru
      _
    // Predicated region
    $region50: #{tpu_custom_call.1} parent=1 // pred_check
      _
    $region51: #{tpu_custom_call.1} parent=1 // pred_check_branch
      %103 = sbr.rel (0) target = $region53
    $region52: #{tpu_custom_call.1} parent=1 // pred_region
      %104 = dma.done [#allocation12], 32
    $region53: #{tpu_custom_call.1} parent=1 // pred_fallthru
      _
    %v105 = vld [vmem:[#allocation11] sm:$0x1]
    %v106 = vld [vmem:[#allocation11 + $0x1] sm:$0x1]
    %v107 = vlaneseq
    %v108 = vand.u32 %v107, 127
    %vm109 = vcmp.ge.s32.totalorder %v108, 12
    %v110 = vld [vmem:[#allocation2] sm:$0xff]
    %v111 = vld [vmem:[#allocation5] sm:$0xff]
    %v112 = vld [vmem:[#allocation5 + $0x8] sm:$0xff]
    %v113 = vld [vmem:[#allocation5 + $0x10] sm:$0x3f]
    %v114 = vld [vmem:[#allocation5 + $0x18] sm:$0x3f]
    %v115 = vld [vmem:[#allocation8] ss:$4 sm:$0x3]
    %v117 = vlaneseq
    %v118 = vshrl.u32 %v117, 7
    %v119 = vsub.s32 0, %v118
    %v120 = vrot.slane %v115, %v119
    %v121 = vlaneseq
    %v122 = vshrl.u32 %v121, 7
    %v123 = vsub.s32 1, %v122
    %v124 = vrot.slane %v115, %v123
    %vm127 = vcmask 113664
    %v129 = vsel %vm127, %v110, 0
    %vm131 = vcmask 1045504
    %v133 = vsel %vm131, %v113, 0
    %v136 = vsel %vm131, %v114, 0
    %138 = vmatprep.subr.mxu0 0.0
    %139 = vmatpush1.msra.mxu0 0.0
    %140 = vmatprep.subr.mxu0 0.0
    %141 = vmatpush1.msra.mxu0 0.0
    %142 = vmatprep.subr.mxu0 0.0
    %143 = vmatpush1.msra.mxu0 0.0
    %144 = vmatprep.subr.mxu0 0.0
    %145 = vmatpush1.msra.mxu0 0.0
    %146 = vmatprep.subr.mxu0 0.0
    %147 = vmatpush1.msra.mxu0 0.0
    %148 = vmatprep.subr.mxu0 0.0
    %149 = vmatpush1.msra.mxu0 0.0
    %150 = vmatprep.subr.mxu0 0.0
    %151 = vmatpush1.msra.mxu0 0.0
    %152 = vmatprep.subr.mxu0 0.0
    %153 = vmatpush1.msra.mxu0 0.0
    %154 = vmatprep.subr.mxu0 0.0
    %155 = vmatpush1.msra.mxu0 0.0
    %156 = vmatprep.subr.mxu0 0.0
    %157 = vmatpush1.msra.mxu0 0.0
    %158 = vmatprep.subr.mxu0 0.0
    %159 = vmatpush1.msra.mxu0 0.0
    %160 = vmatprep.subr.mxu0 0.0
    %161 = vmatpush1.msra.mxu0 0.0
    %162 = vmatprep.subr.mxu0 0.0
    %163 = vmatpush1.msra.mxu0 0.0
    %164 = vmatprep.subr.mxu0 0.0
    %165 = vmatpush1.msra.mxu0 0.0
    %166 = vmatprep.subr.mxu0 %v136
    %167 = vmatpush1.msra.mxu0 %v133
    %168 = vmatprep.subr.mxu0 %v112
    %169 = vmatpush1.msra.mxu0 %v111
    %170 = vmatprep.subr.mxu0 0.0
    %171 = vmatpush2.msra.mxu0 0.0
    %172 = vmatprep.subr.mxu0 0.0
    %173 = vmatpush2.msra.mxu0 0.0
    %174 = vmatprep.subr.mxu0 0.0
    %175 = vmatpush2.msra.mxu0 0.0
    %176 = vmatprep.subr.mxu0 0.0
    %177 = vmatpush2.msra.mxu0 0.0
    %178 = vmatprep.subr.mxu0 0.0
    %179 = vmatpush2.msra.mxu0 0.0
    %180 = vmatprep.subr.mxu0 0.0
    %181 = vmatpush2.msra.mxu0 0.0
    %182 = vmatprep.subr.mxu0 0.0
    %183 = vmatpush2.msra.mxu0 0.0
    %184 = vmatprep.subr.mxu0 0.0
    %185 = vmatpush2.msra.mxu0 0.0
    %186 = vmatprep.subr.mxu0 0.0
    %187 = vmatpush2.msra.mxu0 0.0
    %188 = vmatprep.subr.mxu0 0.0
    %189 = vmatpush2.msra.mxu0 0.0
    %190 = vmatprep.subr.mxu0 0.0
    %191 = vmatpush2.msra.mxu0 0.0
    %192 = vmatprep.subr.mxu0 0.0
    %193 = vmatpush2.msra.mxu0 0.0
    %194 = vmatprep.subr.mxu0 0.0
    %195 = vmatpush2.msra.mxu0 0.0
    %196 = vmatprep.subr.mxu0 0.0
    %197 = vmatpush2.msra.mxu0 0.0
    %198 = vmatprep.subr.mxu0 0.0
    %199 = vmatpush2.msra.mxu0 0.0
    %200 = vmatprep.subr.mxu0 0.0
    %201 = vmatpush2.msra.mxu0 0.0
    %202 = vmatprep.mubr.f32.mxu0 0.0
    %203 = vmatmul.mubr.f32.gmra.mxu0 %v129
    %v204 = vpop.f32.mrf.mxu0
    %v205 = vadd.f32 %v120, %v204
    %v206 = vpop.f32.mrf.mxu0
    %v207 = vadd.f32 %v124, %v206
    %208 = vdwg.mxu0
    %v209 = vsub.f32 0.0, %v205
    %v210 = vsub.f32 0.0, %v207
    %v211 = vmul.f32 %v209, 1.442695
    %v212 = vpow.pop %v211
    %v213 = vmul.f32 %v210, 1.442695
    %v214 = vpow.pop %v213
    %v215 = vadd.f32 %v212, 1.0
    %v216 = vadd.f32 %v214, 1.0
    %v217 = vrcp.pop %v215
    %v218 = vmul.f32 1.0, %v217
    %v219 = vrcp.pop %v216
    %v220 = vmul.f32 1.0, %v219
    %v221 = vmul.f32 %v205, %v218
    %v222 = vmul.f32 %v207, %v220
    %v223 = vld [vmem:[#allocation7] sm:$0xff]
    %v224 = vld [vmem:[#allocation7 + $0x8] sm:$0xff]
    %v225 = vld [vmem:[#allocation7 + $0x30] sm:$0xff]
    %v226 = vld [vmem:[#allocation7 + $0x38] sm:$0xff]
    %v227 = vld [vmem:[#allocation7 + $0x60] sm:$0xff]
    %v228 = vld [vmem:[#allocation7 + $0x68] sm:$0xff]
    %v229 = vld [vmem:[#allocation7 + $0x90] sm:$0xff]
    %v230 = vld [vmem:[#allocation7 + $0x98] sm:$0xff]
    %v231 = vld [vmem:[#allocation7 + $0xc0] sm:$0xff]
    %v232 = vld [vmem:[#allocation7 + $0xc8] sm:$0xff]
    %v233 = vld [vmem:[#allocation7 + $0xf0] sm:$0xff]
    %v234 = vld [vmem:[#allocation7 + $0xf8] sm:$0xff]
    %v235 = vld [vmem:[#allocation7 + $0x120] sm:$0xff]
    %v236 = vld [vmem:[#allocation7 + $0x128] sm:$0xff]
    %v237 = vld [vmem:[#allocation7 + $0x150] sm:$0xff]
    %v238 = vld [vmem:[#allocation7 + $0x158] sm:$0xff]
    %v239 = vld [vmem:[#allocation7 + $0x180] sm:$0xff]
    %v240 = vld [vmem:[#allocation7 + $0x188] sm:$0xff]
    %v241 = vld [vmem:[#allocation7 + $0x1b0] sm:$0xff]
    %v242 = vld [vmem:[#allocation7 + $0x1b8] sm:$0xff]
    %v243 = vld [vmem:[#allocation7 + $0x1e0] sm:$0xff]
    %v244 = vld [vmem:[#allocation7 + $0x1e8] sm:$0xff]
    %v245 = vld [vmem:[#allocation7 + $0x210] sm:$0xff]
    %v246 = vld [vmem:[#allocation7 + $0x218] sm:$0xff]
    %v247 = vld [vmem:[#allocation7 + $0x240] sm:$0xff]
    %v248 = vld [vmem:[#allocation7 + $0x248] sm:$0xff]
    %v249 = vld [vmem:[#allocation7 + $0x270] sm:$0xff]
    %v250 = vld [vmem:[#allocation7 + $0x278] sm:$0xff]
    %v251 = vld [vmem:[#allocation7 + $0x2a0] sm:$0xff]
    %v252 = vld [vmem:[#allocation7 + $0x2a8] sm:$0xff]
    %v253 = vld [vmem:[#allocation7 + $0x2d0] sm:$0xff]
    %v254 = vld [vmem:[#allocation7 + $0x2d8] sm:$0xff]
    %v255 = vld [vmem:[#allocation7 + $0x300] sm:$0xff]
    %v256 = vld [vmem:[#allocation7 + $0x308] sm:$0xff]
    %v257 = vld [vmem:[#allocation7 + $0x330] sm:$0xff]
    %v258 = vld [vmem:[#allocation7 + $0x338] sm:$0xff]
    %v259 = vld [vmem:[#allocation7 + $0x360] sm:$0xff]
    %v260 = vld [vmem:[#allocation7 + $0x368] sm:$0xff]
    %v261 = vld [vmem:[#allocation7 + $0x390] sm:$0xff]
    %v262 = vld [vmem:[#allocation7 + $0x398] sm:$0xff]
    %v263 = vld [vmem:[#allocation7 + $0x3c0] sm:$0xff]
    %v264 = vld [vmem:[#allocation7 + $0x3c8] sm:$0xff]
    %v265 = vld [vmem:[#allocation7 + $0x3f0] sm:$0xff]
    %v266 = vld [vmem:[#allocation7 + $0x3f8] sm:$0xff]
    %v267 = vld [vmem:[#allocation7 + $0x420] sm:$0xff]
    %v268 = vld [vmem:[#allocation7 + $0x428] sm:$0xff]
    %v269 = vld [vmem:[#allocation7 + $0x450] sm:$0xff]
    %v270 = vld [vmem:[#allocation7 + $0x458] sm:$0xff]
    %v271 = vld [vmem:[#allocation7 + $0x480] sm:$0xff]
    %v272 = vld [vmem:[#allocation7 + $0x488] sm:$0xff]
    %v273 = vld [vmem:[#allocation7 + $0x4b0] sm:$0xff]
    %v274 = vld [vmem:[#allocation7 + $0x4b8] sm:$0xff]
    %v275 = vld [vmem:[#allocation7 + $0x4e0] sm:$0xff]
    %v276 = vld [vmem:[#allocation7 + $0x4e8] sm:$0xff]
    %v277 = vld [vmem:[#allocation7 + $0x510] sm:$0xff]
    %v278 = vld [vmem:[#allocation7 + $0x518] sm:$0xff]
    %v279 = vld [vmem:[#allocation7 + $0x540] sm:$0xff]
    %v280 = vld [vmem:[#allocation7 + $0x548] sm:$0xff]
    %v281 = vld [vmem:[#allocation7 + $0x570] sm:$0xff]
    %v282 = vld [vmem:[#allocation7 + $0x578] sm:$0xff]
    %v283 = vld [vmem:[#allocation7 + $0x5a0] sm:$0xff]
    %v284 = vld [vmem:[#allocation7 + $0x5a8] sm:$0xff]
    %v285 = vld [vmem:[#allocation7 + $0x5d0] sm:$0xff]
    %v286 = vld [vmem:[#allocation7 + $0x5d8] sm:$0xff]
    %s287 = scalar_lea.vmem [#allocation8], 1
    %v288 = vld [vmem:[%s287] ss:$4 sm:$0x3]
    %v290 = vlaneseq
    %v291 = vshrl.u32 %v290, 7
    %v292 = vsub.s32 0, %v291
    %v293 = vrot.slane %v288, %v292
    %v294 = vlaneseq
    %v295 = vshrl.u32 %v294, 7
    %v296 = vsub.s32 1, %v295
    %v297 = vrot.slane %v288, %v296
    %300 = vmatprep.subr.mxu0 %v254
    %301 = vmatpush1.msra.mxu0 %v253
    %302 = vmatprep.subr.mxu0 %v252
    %303 = vmatpush1.msra.mxu0 %v251
    %304 = vmatprep.subr.mxu0 %v250
    %305 = vmatpush1.msra.mxu0 %v249
    %306 = vmatprep.subr.mxu0 %v248
    %307 = vmatpush1.msra.mxu0 %v247
    %308 = vmatprep.subr.mxu0 %v246
    %309 = vmatpush1.msra.mxu0 %v245
    %310 = vmatprep.subr.mxu0 %v244
    %311 = vmatpush1.msra.mxu0 %v243
    %312 = vmatprep.subr.mxu0 %v242
    %313 = vmatpush1.msra.mxu0 %v241
    %314 = vmatprep.subr.mxu0 %v240
    %315 = vmatpush1.msra.mxu0 %v239
    %316 = vmatprep.subr.mxu0 %v238
    %317 = vmatpush1.msra.mxu0 %v237
    %318 = vmatprep.subr.mxu0 %v236
    %319 = vmatpush1.msra.mxu0 %v235
    %320 = vmatprep.subr.mxu0 %v234
    %321 = vmatpush1.msra.mxu0 %v233
    %322 = vmatprep.subr.mxu0 %v232
    %323 = vmatpush1.msra.mxu0 %v231
    %324 = vmatprep.subr.mxu0 %v230
    %325 = vmatpush1.msra.mxu0 %v229
    %326 = vmatprep.subr.mxu0 %v228
    %327 = vmatpush1.msra.mxu0 %v227
    %328 = vmatprep.subr.mxu0 %v226
    %329 = vmatpush1.msra.mxu0 %v225
    %330 = vmatprep.subr.mxu0 %v224
    %331 = vmatpush1.msra.mxu0 %v223
    %332 = vmatprep.subr.mxu0 %v286
    %333 = vmatpush2.msra.mxu0 %v285
    %334 = vmatprep.subr.mxu0 %v284
    %335 = vmatpush2.msra.mxu0 %v283
    %336 = vmatprep.subr.mxu0 %v282
    %337 = vmatpush2.msra.mxu0 %v281
    %338 = vmatprep.subr.mxu0 %v280
    %339 = vmatpush2.msra.mxu0 %v279
    %340 = vmatprep.subr.mxu0 %v278
    %341 = vmatpush2.msra.mxu0 %v277
    %342 = vmatprep.subr.mxu0 %v276
    %343 = vmatpush2.msra.mxu0 %v275
    %344 = vmatprep.subr.mxu0 %v274
    %345 = vmatpush2.msra.mxu0 %v273
    %346 = vmatprep.subr.mxu0 %v272
    %347 = vmatpush2.msra.mxu0 %v271
    %348 = vmatprep.subr.mxu0 %v270
    %349 = vmatpush2.msra.mxu0 %v269
    %350 = vmatprep.subr.mxu0 %v268
    %351 = vmatpush2.msra.mxu0 %v267
    %352 = vmatprep.subr.mxu0 %v266
    %353 = vmatpush2.msra.mxu0 %v265
    %354 = vmatprep.subr.mxu0 %v264
    %355 = vmatpush2.msra.mxu0 %v263
    %356 = vmatprep.subr.mxu0 %v262
    %357 = vmatpush2.msra.mxu0 %v261
    %358 = vmatprep.subr.mxu0 %v260
    %359 = vmatpush2.msra.mxu0 %v259
    %360 = vmatprep.subr.mxu0 %v258
    %361 = vmatpush2.msra.mxu0 %v257
    %362 = vmatprep.subr.mxu0 %v256
    %363 = vmatpush2.msra.mxu0 %v255
    %364 = vmatprep.mubr.f32.mxu0 %v222
    %365 = vmatmul.mubr.f32.gmra.mxu0 %v221
    %v366 = vpop.f32.mrf.mxu0
    %v367 = vadd.f32 %v293, %v366
    %v368 = vpop.f32.mrf.mxu0
    %v369 = vadd.f32 %v297, %v368
    %370 = vdwg.mxu0
    %v371 = vsub.f32 0.0, %v367
    %v372 = vsub.f32 0.0, %v369
    %v373 = vmul.f32 %v371, 1.442695
    %v374 = vpow.pop %v373
    %v375 = vmul.f32 %v372, 1.442695
    %v376 = vpow.pop %v375
    %v377 = vadd.f32 %v374, 1.0
    %v378 = vadd.f32 %v376, 1.0
    %v379 = vrcp.pop %v377
    %v380 = vmul.f32 1.0, %v379
    %v381 = vrcp.pop %v378
    %v382 = vmul.f32 1.0, %v381
    %v383 = vmul.f32 %v367, %v380
    %v384 = vmul.f32 %v369, %v382
    %v385 = vld [vmem:[#allocation7 + $0x10] sm:$0xff]
    %v386 = vld [vmem:[#allocation7 + $0x18] sm:$0xff]
    %v387 = vld [vmem:[#allocation7 + $0x40] sm:$0xff]
    %v388 = vld [vmem:[#allocation7 + $0x48] sm:$0xff]
    %v389 = vld [vmem:[#allocation7 + $0x70] sm:$0xff]
    %v390 = vld [vmem:[#allocation7 + $0x78] sm:$0xff]
    %v391 = vld [vmem:[#allocation7 + $0xa0] sm:$0xff]
    %v392 = vld [vmem:[#allocation7 + $0xa8] sm:$0xff]
    %v393 = vld [vmem:[#allocation7 + $0xd0] sm:$0xff]
    %v394 = vld [vmem:[#allocation7 + $0xd8] sm:$0xff]
    %v395 = vld [vmem:[#allocation7 + $0x100] sm:$0xff]
    %v396 = vld [vmem:[#allocation7 + $0x108] sm:$0xff]
    %v397 = vld [vmem:[#allocation7 + $0x130] sm:$0xff]
    %v398 = vld [vmem:[#allocation7 + $0x138] sm:$0xff]
    %v399 = vld [vmem:[#allocation7 + $0x160] sm:$0xff]
    %v400 = vld [vmem:[#allocation7 + $0x168] sm:$0xff]
    %v401 = vld [vmem:[#allocation7 + $0x190] sm:$0xff]
    %v402 = vld [vmem:[#allocation7 + $0x198] sm:$0xff]
    %v403 = vld [vmem:[#allocation7 + $0x1c0] sm:$0xff]
    %v404 = vld [vmem:[#allocation7 + $0x1c8] sm:$0xff]
    %v405 = vld [vmem:[#allocation7 + $0x1f0] sm:$0xff]
    %v406 = vld [vmem:[#allocation7 + $0x1f8] sm:$0xff]
    %v407 = vld [vmem:[#allocation7 + $0x220] sm:$0xff]
    %v408 = vld [vmem:[#allocation7 + $0x228] sm:$0xff]
    %v409 = vld [vmem:[#allocation7 + $0x250] sm:$0xff]
    %v410 = vld [vmem:[#allocation7 + $0x258] sm:$0xff]
    %v411 = vld [vmem:[#allocation7 + $0x280] sm:$0xff]
    %v412 = vld [vmem:[#allocation7 + $0x288] sm:$0xff]
    %v413 = vld [vmem:[#allocation7 + $0x2b0] sm:$0xff]
    %v414 = vld [vmem:[#allocation7 + $0x2b8] sm:$0xff]
    %v415 = vld [vmem:[#allocation7 + $0x2e0] sm:$0xff]
    %v416 = vld [vmem:[#allocation7 + $0x2e8] sm:$0xff]
    %v417 = vld [vmem:[#allocation7 + $0x310] sm:$0xff]
    %v418 = vld [vmem:[#allocation7 + $0x318] sm:$0xff]
    %v419 = vld [vmem:[#allocation7 + $0x340] sm:$0xff]
    %v420 = vld [vmem:[#allocation7 + $0x348] sm:$0xff]
    %v421 = vld [vmem:[#allocation7 + $0x370] sm:$0xff]
    %v422 = vld [vmem:[#allocation7 + $0x378] sm:$0xff]
    %v423 = vld [vmem:[#allocation7 + $0x3a0] sm:$0xff]
    %v424 = vld [vmem:[#allocation7 + $0x3a8] sm:$0xff]
    %v425 = vld [vmem:[#allocation7 + $0x3d0] sm:$0xff]
    %v426 = vld [vmem:[#allocation7 + $0x3d8] sm:$0xff]
    %v427 = vld [vmem:[#allocation7 + $0x400] sm:$0xff]
    %v428 = vld [vmem:[#allocation7 + $0x408] sm:$0xff]
    %v429 = vld [vmem:[#allocation7 + $0x430] sm:$0xff]
    %v430 = vld [vmem:[#allocation7 + $0x438] sm:$0xff]
    %v431 = vld [vmem:[#allocation7 + $0x460] sm:$0xff]
    %v432 = vld [vmem:[#allocation7 + $0x468] sm:$0xff]
    %v433 = vld [vmem:[#allocation7 + $0x490] sm:$0xff]
    %v434 = vld [vmem:[#allocation7 + $0x498] sm:$0xff]
    %v435 = vld [vmem:[#allocation7 + $0x4c0] sm:$0xff]
    %v436 = vld [vmem:[#allocation7 + $0x4c8] sm:$0xff]
    %v437 = vld [vmem:[#allocation7 + $0x4f0] sm:$0xff]
    %v438 = vld [vmem:[#allocation7 + $0x4f8] sm:$0xff]
    %v439 = vld [vmem:[#allocation7 + $0x520] sm:$0xff]
    %v440 = vld [vmem:[#allocation7 + $0x528] sm:$0xff]
    %v441 = vld [vmem:[#allocation7 + $0x550] sm:$0xff]
    %v442 = vld [vmem:[#allocation7 + $0x558] sm:$0xff]
    %v443 = vld [vmem:[#allocation7 + $0x580] sm:$0xff]
    %v444 = vld [vmem:[#allocation7 + $0x588] sm:$0xff]
    %v445 = vld [vmem:[#allocation7 + $0x5b0] sm:$0xff]
    %v446 = vld [vmem:[#allocation7 + $0x5b8] sm:$0xff]
    %v447 = vld [vmem:[#allocation7 + $0x5e0] sm:$0xff]
    %v448 = vld [vmem:[#allocation7 + $0x5e8] sm:$0xff]
    %s449 = scalar_lea.vmem [#allocation8], 2
    %v450 = vld [vmem:[%s449] ss:$4 sm:$0x3]
    %v452 = vlaneseq
    %v453 = vshrl.u32 %v452, 7
    %v454 = vsub.s32 0, %v453
    %v455 = vrot.slane %v450, %v454
    %v456 = vlaneseq
    %v457 = vshrl.u32 %v456, 7
    %v458 = vsub.s32 1, %v457
    %v459 = vrot.slane %v450, %v458
    %462 = vmatprep.subr.mxu0 %v416
    %463 = vmatpush1.msra.mxu0 %v415
    %464 = vmatprep.subr.mxu0 %v414
    %465 = vmatpush1.msra.mxu0 %v413
    %466 = vmatprep.subr.mxu0 %v412
    %467 = vmatpush1.msra.mxu0 %v411
    %468 = vmatprep.subr.mxu0 %v410
    %469 = vmatpush1.msra.mxu0 %v409
    %470 = vmatprep.subr.mxu0 %v408
    %471 = vmatpush1.msra.mxu0 %v407
    %472 = vmatprep.subr.mxu0 %v406
    %473 = vmatpush1.msra.mxu0 %v405
    %474 = vmatprep.subr.mxu0 %v404
    %475 = vmatpush1.msra.mxu0 %v403
    %476 = vmatprep.subr.mxu0 %v402
    %477 = vmatpush1.msra.mxu0 %v401
    %478 = vmatprep.subr.mxu0 %v400
    %479 = vmatpush1.msra.mxu0 %v399
    %480 = vmatprep.subr.mxu0 %v398
    %481 = vmatpush1.msra.mxu0 %v397
    %482 = vmatprep.subr.mxu0 %v396
    %483 = vmatpush1.msra.mxu0 %v395
    %484 = vmatprep.subr.mxu0 %v394
    %485 = vmatpush1.msra.mxu0 %v393
    %486 = vmatprep.subr.mxu0 %v392
    %487 = vmatpush1.msra.mxu0 %v391
    %488 = vmatprep.subr.mxu0 %v390
    %489 = vmatpush1.msra.mxu0 %v389
    %490 = vmatprep.subr.mxu0 %v388
    %491 = vmatpush1.msra.mxu0 %v387
    %492 = vmatprep.subr.mxu0 %v386
    %493 = vmatpush1.msra.mxu0 %v385
    %494 = vmatprep.subr.mxu0 %v448
    %495 = vmatpush2.msra.mxu0 %v447
    %496 = vmatprep.subr.mxu0 %v446
    %497 = vmatpush2.msra.mxu0 %v445
    %498 = vmatprep.subr.mxu0 %v444
    %499 = vmatpush2.msra.mxu0 %v443
    %500 = vmatprep.subr.mxu0 %v442
    %501 = vmatpush2.msra.mxu0 %v441
    %502 = vmatprep.subr.mxu0 %v440
    %503 = vmatpush2.msra.mxu0 %v439
    %504 = vmatprep.subr.mxu0 %v438
    %505 = vmatpush2.msra.mxu0 %v437
    %506 = vmatprep.subr.mxu0 %v436
    %507 = vmatpush2.msra.mxu0 %v435
    %508 = vmatprep.subr.mxu0 %v434
    %509 = vmatpush2.msra.mxu0 %v433
    %510 = vmatprep.subr.mxu0 %v432
    %511 = vmatpush2.msra.mxu0 %v431
    %512 = vmatprep.subr.mxu0 %v430
    %513 = vmatpush2.msra.mxu0 %v429
    %514 = vmatprep.subr.mxu0 %v428
    %515 = vmatpush2.msra.mxu0 %v427
    %516 = vmatprep.subr.mxu0 %v426
    %517 = vmatpush2.msra.mxu0 %v425
    %518 = vmatprep.subr.mxu0 %v424
    %519 = vmatpush2.msra.mxu0 %v423
    %520 = vmatprep.subr.mxu0 %v422
    %521 = vmatpush2.msra.mxu0 %v421
    %522 = vmatprep.subr.mxu0 %v420
    %523 = vmatpush2.msra.mxu0 %v419
    %524 = vmatprep.subr.mxu0 %v418
    %525 = vmatpush2.msra.mxu0 %v417
    %526 = vmatprep.mubr.f32.mxu0 %v384
    %527 = vmatmul.mubr.f32.gmra.mxu0 %v383
    %v528 = vpop.f32.mrf.mxu0
    %v529 = vadd.f32 %v455, %v528
    %v530 = vpop.f32.mrf.mxu0
    %v531 = vadd.f32 %v459, %v530
    %532 = vdwg.mxu0
    %v533 = vsub.f32 0.0, %v529
    %v534 = vsub.f32 0.0, %v531
    %v535 = vmul.f32 %v533, 1.442695
    %v536 = vpow.pop %v535
    %v537 = vmul.f32 %v534, 1.442695
    %v538 = vpow.pop %v537
    %v539 = vadd.f32 %v536, 1.0
    %v540 = vadd.f32 %v538, 1.0
    %v541 = vrcp.pop %v539
    %v542 = vmul.f32 1.0, %v541
    %v543 = vrcp.pop %v540
    %v544 = vmul.f32 1.0, %v543
    %v545 = vmul.f32 %v529, %v542
    %v546 = vmul.f32 %v531, %v544
    %v547 = vld [vmem:[#allocation7 + $0x20] sm:$0xff]
    %v548 = vld [vmem:[#allocation7 + $0x28] sm:$0xff]
    %v549 = vld [vmem:[#allocation7 + $0x50] sm:$0xff]
    %v550 = vld [vmem:[#allocation7 + $0x58] sm:$0xff]
    %v551 = vld [vmem:[#allocation7 + $0x80] sm:$0xff]
    %v552 = vld [vmem:[#allocation7 + $0x88] sm:$0xff]
    %v553 = vld [vmem:[#allocation7 + $0xb0] sm:$0xff]
    %v554 = vld [vmem:[#allocation7 + $0xb8] sm:$0xff]
    %v555 = vld [vmem:[#allocation7 + $0xe0] sm:$0xff]
    %v556 = vld [vmem:[#allocation7 + $0xe8] sm:$0xff]
    %v557 = vld [vmem:[#allocation7 + $0x110] sm:$0xff]
    %v558 = vld [vmem:[#allocation7 + $0x118] sm:$0xff]
    %v559 = vld [vmem:[#allocation7 + $0x140] sm:$0xff]
    %v560 = vld [vmem:[#allocation7 + $0x148] sm:$0xff]
    %v561 = vld [vmem:[#allocation7 + $0x170] sm:$0xff]
    %v562 = vld [vmem:[#allocation7 + $0x178] sm:$0xff]
    %v563 = vld [vmem:[#allocation7 + $0x1a0] sm:$0xff]
    %v564 = vld [vmem:[#allocation7 + $0x1a8] sm:$0xff]
    %v565 = vld [vmem:[#allocation7 + $0x1d0] sm:$0xff]
    %v566 = vld [vmem:[#allocation7 + $0x1d8] sm:$0xff]
    %v567 = vld [vmem:[#allocation7 + $0x200] sm:$0xff]
    %v568 = vld [vmem:[#allocation7 + $0x208] sm:$0xff]
    %v569 = vld [vmem:[#allocation7 + $0x230] sm:$0xff]
    %v570 = vld [vmem:[#allocation7 + $0x238] sm:$0xff]
    %v571 = vld [vmem:[#allocation7 + $0x260] sm:$0xff]
    %v572 = vld [vmem:[#allocation7 + $0x268] sm:$0xff]
    %v573 = vld [vmem:[#allocation7 + $0x290] sm:$0xff]
    %v574 = vld [vmem:[#allocation7 + $0x298] sm:$0xff]
    %v575 = vld [vmem:[#allocation7 + $0x2c0] sm:$0xff]
    %v576 = vld [vmem:[#allocation7 + $0x2c8] sm:$0xff]
    %v577 = vld [vmem:[#allocation7 + $0x2f0] sm:$0xff]
    %v578 = vld [vmem:[#allocation7 + $0x2f8] sm:$0xff]
    %v579 = vld [vmem:[#allocation7 + $0x320] sm:$0xff]
    %v580 = vld [vmem:[#allocation7 + $0x328] sm:$0xff]
    %v581 = vld [vmem:[#allocation7 + $0x350] sm:$0xff]
    %v582 = vld [vmem:[#allocation7 + $0x358] sm:$0xff]
    %v583 = vld [vmem:[#allocation7 + $0x380] sm:$0xff]
    %v584 = vld [vmem:[#allocation7 + $0x388] sm:$0xff]
    %v585 = vld [vmem:[#allocation7 + $0x3b0] sm:$0xff]
    %v586 = vld [vmem:[#allocation7 + $0x3b8] sm:$0xff]
    %v587 = vld [vmem:[#allocation7 + $0x3e0] sm:$0xff]
    %v588 = vld [vmem:[#allocation7 + $0x3e8] sm:$0xff]
    %v589 = vld [vmem:[#allocation7 + $0x410] sm:$0xff]
    %v590 = vld [vmem:[#allocation7 + $0x418] sm:$0xff]
    %v591 = vld [vmem:[#allocation7 + $0x440] sm:$0xff]
    %v592 = vld [vmem:[#allocation7 + $0x448] sm:$0xff]
    %v593 = vld [vmem:[#allocation7 + $0x470] sm:$0xff]
    %v594 = vld [vmem:[#allocation7 + $0x478] sm:$0xff]
    %v595 = vld [vmem:[#allocation7 + $0x4a0] sm:$0xff]
    %v596 = vld [vmem:[#allocation7 + $0x4a8] sm:$0xff]
    %v597 = vld [vmem:[#allocation7 + $0x4d0] sm:$0xff]
    %v598 = vld [vmem:[#allocation7 + $0x4d8] sm:$0xff]
    %v599 = vld [vmem:[#allocation7 + $0x500] sm:$0xff]
    %v600 = vld [vmem:[#allocation7 + $0x508] sm:$0xff]
    %v601 = vld [vmem:[#allocation7 + $0x530] sm:$0xff]
    %v602 = vld [vmem:[#allocation7 + $0x538] sm:$0xff]
    %v603 = vld [vmem:[#allocation7 + $0x560] sm:$0xff]
    %v604 = vld [vmem:[#allocation7 + $0x568] sm:$0xff]
    %v605 = vld [vmem:[#allocation7 + $0x590] sm:$0xff]
    %v606 = vld [vmem:[#allocation7 + $0x598] sm:$0xff]
    %v607 = vld [vmem:[#allocation7 + $0x5c0] sm:$0xff]
    %v608 = vld [vmem:[#allocation7 + $0x5c8] sm:$0xff]
    %v609 = vld [vmem:[#allocation7 + $0x5f0] sm:$0xff]
    %v610 = vld [vmem:[#allocation7 + $0x5f8] sm:$0xff]
    %s611 = scalar_lea.vmem [#allocation8], 3
    %v612 = vld [vmem:[%s611] ss:$4 sm:$0x3]
    %v614 = vlaneseq
    %v615 = vshrl.u32 %v614, 7
    %v616 = vsub.s32 0, %v615
    %v617 = vrot.slane %v612, %v616
    %v618 = vlaneseq
    %v619 = vshrl.u32 %v618, 7
    %v620 = vsub.s32 1, %v619
    %v621 = vrot.slane %v612, %v620
    %624 = vmatprep.subr.mxu0 %v578
    %625 = vmatpush1.msra.mxu0 %v577
    %626 = vmatprep.subr.mxu0 %v576
    %627 = vmatpush1.msra.mxu0 %v575
    %628 = vmatprep.subr.mxu0 %v574
    %629 = vmatpush1.msra.mxu0 %v573
    %630 = vmatprep.subr.mxu0 %v572
    %631 = vmatpush1.msra.mxu0 %v571
    %632 = vmatprep.subr.mxu0 %v570
    %633 = vmatpush1.msra.mxu0 %v569
    %634 = vmatprep.subr.mxu0 %v568
    %635 = vmatpush1.msra.mxu0 %v567
    %636 = vmatprep.subr.mxu0 %v566
    %637 = vmatpush1.msra.mxu0 %v565
    %638 = vmatprep.subr.mxu0 %v564
    %639 = vmatpush1.msra.mxu0 %v563
    %640 = vmatprep.subr.mxu0 %v562
    %641 = vmatpush1.msra.mxu0 %v561
    %642 = vmatprep.subr.mxu0 %v560
    %643 = vmatpush1.msra.mxu0 %v559
    %644 = vmatprep.subr.mxu0 %v558
    %645 = vmatpush1.msra.mxu0 %v557
    %646 = vmatprep.subr.mxu0 %v556
    %647 = vmatpush1.msra.mxu0 %v555
    %648 = vmatprep.subr.mxu0 %v554
    %649 = vmatpush1.msra.mxu0 %v553
    %650 = vmatprep.subr.mxu0 %v552
    %651 = vmatpush1.msra.mxu0 %v551
    %652 = vmatprep.subr.mxu0 %v550
    %653 = vmatpush1.msra.mxu0 %v549
    %654 = vmatprep.subr.mxu0 %v548
    %655 = vmatpush1.msra.mxu0 %v547
    %656 = vmatprep.subr.mxu0 %v610
    %657 = vmatpush2.msra.mxu0 %v609
    %658 = vmatprep.subr.mxu0 %v608
    %659 = vmatpush2.msra.mxu0 %v607
    %660 = vmatprep.subr.mxu0 %v606
    %661 = vmatpush2.msra.mxu0 %v605
    %662 = vmatprep.subr.mxu0 %v604
    %663 = vmatpush2.msra.mxu0 %v603
    %664 = vmatprep.subr.mxu0 %v602
    %665 = vmatpush2.msra.mxu0 %v601
    %666 = vmatprep.subr.mxu0 %v600
    %667 = vmatpush2.msra.mxu0 %v599
    %668 = vmatprep.subr.mxu0 %v598
    %669 = vmatpush2.msra.mxu0 %v597
    %670 = vmatprep.subr.mxu0 %v596
    %671 = vmatpush2.msra.mxu0 %v595
    %672 = vmatprep.subr.mxu0 %v594
    %673 = vmatpush2.msra.mxu0 %v593
    %674 = vmatprep.subr.mxu0 %v592
    %675 = vmatpush2.msra.mxu0 %v591
    %676 = vmatprep.subr.mxu0 %v590
    %677 = vmatpush2.msra.mxu0 %v589
    %678 = vmatprep.subr.mxu0 %v588
    %679 = vmatpush2.msra.mxu0 %v587
    %680 = vmatprep.subr.mxu0 %v586
    %681 = vmatpush2.msra.mxu0 %v585
    %682 = vmatprep.subr.mxu0 %v584
    %683 = vmatpush2.msra.mxu0 %v583
    %684 = vmatprep.subr.mxu0 %v582
    %685 = vmatpush2.msra.mxu0 %v581
    %686 = vmatprep.subr.mxu0 %v580
    %687 = vmatpush2.msra.mxu0 %v579
    %688 = vmatprep.mubr.f32.mxu0 %v546
    %689 = vmatmul.mubr.f32.gmra.mxu0 %v545
    %v690 = vpop.f32.mrf.mxu0
    %v691 = vadd.f32 %v617, %v690
    %v692 = vpop.f32.mrf.mxu0
    %v693 = vadd.f32 %v621, %v692
    %694 = vdwg.mxu0
    %v695 = vsub.f32 0.0, %v691
    %v696 = vsub.f32 0.0, %v693
    %v697 = vmul.f32 %v695, 1.442695
    %v698 = vpow.pop %v697
    %v699 = vmul.f32 %v696, 1.442695
    %v700 = vpow.pop %v699
    %v701 = vadd.f32 %v698, 1.0
    %v702 = vadd.f32 %v700, 1.0
    %v703 = vrcp.pop %v701
    %v704 = vmul.f32 1.0, %v703
    %v705 = vrcp.pop %v702
    %v706 = vmul.f32 1.0, %v705
    %v707 = vmul.f32 %v691, %v704
    %v708 = vmul.f32 %v693, %v706
    %v709 = vld [vmem:[%s3] sm:$0xff]
    %v710 = vld [vmem:[%s3 + $0x8] sm:$0xff]
    %v711 = vld [vmem:[%s3 + $0x10] sm:$0xff]
    %v712 = vld [vmem:[%s3 + $0x18] sm:$0xff]
    %v713 = vld [vmem:[%s3 + $0x20] sm:$0xff]
    %v714 = vld [vmem:[%s3 + $0x28] sm:$0xff]
    %v715 = vld [vmem:[%s3 + $0x30] sm:$0xff]
    %v716 = vld [vmem:[%s3 + $0x38] sm:$0xff]
    %v717 = vld [vmem:[%s3 + $0x40] sm:$0xff]
    %v718 = vld [vmem:[%s3 + $0x48] sm:$0xff]
    %v719 = vld [vmem:[%s3 + $0x50] sm:$0xff]
    %v720 = vld [vmem:[%s3 + $0x58] sm:$0xff]
    %v721 = vld [vmem:[%s3 + $0x60] sm:$0xff]
    %v722 = vld [vmem:[%s3 + $0x68] sm:$0xff]
    %v723 = vld [vmem:[%s3 + $0x70] sm:$0xff]
    %v724 = vld [vmem:[%s3 + $0x78] sm:$0xff]
    %v725 = vld [vmem:[%s3 + $0x80] sm:$0xff]
    %v726 = vld [vmem:[%s3 + $0x88] sm:$0xff]
    %v727 = vld [vmem:[%s3 + $0x90] sm:$0xff]
    %v728 = vld [vmem:[%s3 + $0x98] sm:$0xff]
    %v729 = vld [vmem:[%s3 + $0xa0] sm:$0xff]
    %v730 = vld [vmem:[%s3 + $0xa8] sm:$0xff]
    %v731 = vld [vmem:[%s3 + $0xb0] sm:$0xff]
    %v732 = vld [vmem:[%s3 + $0xb8] sm:$0xff]
    %v733 = vld [vmem:[%s3 + $0xc0] sm:$0xff]
    %v734 = vld [vmem:[%s3 + $0xc8] sm:$0xff]
    %v735 = vld [vmem:[%s3 + $0xd0] sm:$0xff]
    %v736 = vld [vmem:[%s3 + $0xd8] sm:$0xff]
    %v737 = vld [vmem:[%s3 + $0xe0] sm:$0xff]
    %v738 = vld [vmem:[%s3 + $0xe8] sm:$0xff]
    %v739 = vld [vmem:[%s3 + $0xf0] sm:$0xff]
    %v740 = vld [vmem:[%s3 + $0xf8] sm:$0xff]
    %v741 = vld [vmem:[#allocation10] sm:$0x1]
    %v742 = vlaneseq
    %v743 = vshrl.u32 %v742, 7
    %v744 = vsub.s32 0, %v743
    %v745 = vrot.slane %v741, %v744
    %746 = vmatprep.subr.mxu0 0.0
    %747 = vmatpush1.msra.mxu0 %v724
    %748 = vmatprep.subr.mxu0 0.0
    %749 = vmatpush1.msra.mxu0 %v723
    %750 = vmatprep.subr.mxu0 0.0
    %751 = vmatpush1.msra.mxu0 %v722
    %752 = vmatprep.subr.mxu0 0.0
    %753 = vmatpush1.msra.mxu0 %v721
    %754 = vmatprep.subr.mxu0 0.0
    %755 = vmatpush1.msra.mxu0 %v720
    %756 = vmatprep.subr.mxu0 0.0
    %757 = vmatpush1.msra.mxu0 %v719
    %758 = vmatprep.subr.mxu0 0.0
    %759 = vmatpush1.msra.mxu0 %v718
    %760 = vmatprep.subr.mxu0 0.0
    %761 = vmatpush1.msra.mxu0 %v717
    %762 = vmatprep.subr.mxu0 0.0
    %763 = vmatpush1.msra.mxu0 %v716
    %764 = vmatprep.subr.mxu0 0.0
    %765 = vmatpush1.msra.mxu0 %v715
    %766 = vmatprep.subr.mxu0 0.0
    %767 = vmatpush1.msra.mxu0 %v714
    %768 = vmatprep.subr.mxu0 0.0
    %769 = vmatpush1.msra.mxu0 %v713
    %770 = vmatprep.subr.mxu0 0.0
    %771 = vmatpush1.msra.mxu0 %v712
    %772 = vmatprep.subr.mxu0 0.0
    %773 = vmatpush1.msra.mxu0 %v711
    %774 = vmatprep.subr.mxu0 0.0
    %775 = vmatpush1.msra.mxu0 %v710
    %776 = vmatprep.subr.mxu0 0.0
    %777 = vmatpush1.msra.mxu0 %v709
    %778 = vmatprep.subr.mxu0 0.0
    %779 = vmatpush2.msra.mxu0 %v740
    %780 = vmatprep.subr.mxu0 0.0
    %781 = vmatpush2.msra.mxu0 %v739
    %782 = vmatprep.subr.mxu0 0.0
    %783 = vmatpush2.msra.mxu0 %v738
    %784 = vmatprep.subr.mxu0 0.0
    %785 = vmatpush2.msra.mxu0 %v737
    %786 = vmatprep.subr.mxu0 0.0
    %787 = vmatpush2.msra.mxu0 %v736
    %788 = vmatprep.subr.mxu0 0.0
    %789 = vmatpush2.msra.mxu0 %v735
    %790 = vmatprep.subr.mxu0 0.0
    %791 = vmatpush2.msra.mxu0 %v734
    %792 = vmatprep.subr.mxu0 0.0
    %793 = vmatpush2.msra.mxu0 %v733
    %794 = vmatprep.subr.mxu0 0.0
    %795 = vmatpush2.msra.mxu0 %v732
    %796 = vmatprep.subr.mxu0 0.0
    %797 = vmatpush2.msra.mxu0 %v731
    %798 = vmatprep.subr.mxu0 0.0
    %799 = vmatpush2.msra.mxu0 %v730
    %800 = vmatprep.subr.mxu0 0.0
    %801 = vmatpush2.msra.mxu0 %v729
    %802 = vmatprep.subr.mxu0 0.0
    %803 = vmatpush2.msra.mxu0 %v728
    %804 = vmatprep.subr.mxu0 0.0
    %805 = vmatpush2.msra.mxu0 %v727
    %806 = vmatprep.subr.mxu0 0.0
    %807 = vmatpush2.msra.mxu0 %v726
    %808 = vmatprep.subr.mxu0 0.0
    %809 = vmatpush2.msra.mxu0 %v725
    %810 = vmatprep.mubr.f32.mxu0 %v708
    %811 = vmatmul.mubr.f32.gmra.mxu0 %v707
    %v812 = vpop.f32.mrf.mxu0
    %v813 = vadd.f32 %v745, %v812
    %v814 = vpop.f32.mrf.mxu0
    %815 = vdwg.mxu0
    %v816 = vlaneseq
    %v817 = vshrl.u32 %v816, 7
    %v818 = vsub.s32 0, %v817
    %v819 = vrot.slane %v105, %v818
    %v820 = vsub.f32 %v819, %v813
    %v821 = vmax.f32 %v820, 0.0
    %v822 = vand.u32 2147483647, %v820
    %v823 = vsub.f32 0.0, %v822
    %v824 = vmul.f32 %v823, 1.442695
    %v825 = vpow.pop %v824
    %v826 = vadd.f32 %v825, 1.0
    %v827 = vlog2.pop %v826
    %v828 = vmul.f32 %v827, 0.6931472
    %v829 = vmul.f32 -0.5, %v825
    %v830 = vadd.f32 %v829, 1.0
    %v831 = vmul.f32 %v830, %v825
    %v832 = vand.u32 2147483647, %v825
    %vm833 = vcmp.lt.f32.partialorder %v832, 0.0004427343
    %v834 = vsel %vm833, %v831, %v828
    %v835 = vadd.f32 %v821, %v834
    %v836 = vsub.f32 %v819, %v835
    %v837 = vlaneseq
    %v838 = vshrl.u32 %v837, 7
    %v839 = vsub.s32 0, %v838
    %v840 = vrot.slane %v106, %v839
    %v841 = vsub.f32 %v836, %v840
    %v842 = vmax.f32 %v841, 0.0
    %v843 = vand.u32 2147483647, %v841
    %v844 = vsub.f32 0.0, %v843
    %v845 = vmul.f32 %v844, 1.442695
    %v846 = vpow.pop %v845
    %v847 = vadd.f32 %v846, 1.0
    %v848 = vlog2.pop %v847
    %v849 = vmul.f32 %v848, 0.6931472
    %v850 = vmul.f32 -0.5, %v846
    %v851 = vadd.f32 %v850, 1.0
    %v852 = vmul.f32 %v851, %v846
    %v853 = vand.u32 2147483647, %v846
    %vm854 = vcmp.lt.f32.partialorder %v853, 0.0004427343
    %v855 = vsel %vm854, %v852, %v849
    %v856 = vadd.f32 %v842, %v855
    %v857 = vadd.f32 %v840, %v856
    %v858 = vmul.f32 %v857, 1.442695
    %v859 = vpow.pop %v858
    %v860 = vsel %vm109, %v859, %v813
    %vm861 = vcmask 195584
    %862 = vst.msk [vmem:[#allocation13] sm:$0xff] %vm861, %v860
    %s863 = scalar_lea.vmem [#allocation2], 8
    %v864 = vld [vmem:[%s863] sm:$0xff]
    %s865 = scalar_lea.vmem [#allocation5], 32
    %v866 = vld [vmem:[%s865] sm:$0xff]
    %v867 = vld [vmem:[%s865 + $0x8] sm:$0xff]
    %v868 = vld [vmem:[%s865 + $0x10] sm:$0x3f]
    %v869 = vld [vmem:[%s865 + $0x18] sm:$0x3f]
    %s870 = scalar_lea.vmem [#allocation8], 8
    %v871 = vld [vmem:[%s870] ss:$4 sm:$0x3]
    %v873 = vlaneseq
    %v874 = vshrl.u32 %v873, 7
    %v875 = vsub.s32 0, %v874
    %v876 = vrot.slane %v871, %v875
    %v877 = vlaneseq
    %v878 = vshrl.u32 %v877, 7
    %v879 = vsub.s32 1, %v878
    %v880 = vrot.slane %v871, %v879
    %v884 = vsel %vm127, %v864, 0
    %v887 = vsel %vm131, %v868, 0
    %v890 = vsel %vm131, %v869, 0
    %892 = vmatprep.subr.mxu0 0.0
    %893 = vmatpush1.msra.mxu0 0.0
    %894 = vmatprep.subr.mxu0 0.0
    %895 = vmatpush1.msra.mxu0 0.0
    %896 = vmatprep.subr.mxu0 0.0
    %897 = vmatpush1.msra.mxu0 0.0
    %898 = vmatprep.subr.mxu0 0.0
    %899 = vmatpush1.msra.mxu0 0.0
    %900 = vmatprep.subr.mxu0 0.0
    %901 = vmatpush1.msra.mxu0 0.0
    %902 = vmatprep.subr.mxu0 0.0
    %903 = vmatpush1.msra.mxu0 0.0
    %904 = vmatprep.subr.mxu0 0.0
    %905 = vmatpush1.msra.mxu0 0.0
    %906 = vmatprep.subr.mxu0 0.0
    %907 = vmatpush1.msra.mxu0 0.0
    %908 = vmatprep.subr.mxu0 0.0
    %909 = vmatpush1.msra.mxu0 0.0
    %910 = vmatprep.subr.mxu0 0.0
    %911 = vmatpush1.msra.mxu0 0.0
    %912 = vmatprep.subr.mxu0 0.0
    %913 = vmatpush1.msra.mxu0 0.0
    %914 = vmatprep.subr.mxu0 0.0
    %915 = vmatpush1.msra.mxu0 0.0
    %916 = vmatprep.subr.mxu0 0.0
    %917 = vmatpush1.msra.mxu0 0.0
    %918 = vmatprep.subr.mxu0 0.0
    %919 = vmatpush1.msra.mxu0 0.0
    %920 = vmatprep.subr.mxu0 %v890
    %921 = vmatpush1.msra.mxu0 %v887
    %922 = vmatprep.subr.mxu0 %v867
    %923 = vmatpush1.msra.mxu0 %v866
    %924 = vmatprep.subr.mxu0 0.0
    %925 = vmatpush2.msra.mxu0 0.0
    %926 = vmatprep.subr.mxu0 0.0
    %927 = vmatpush2.msra.mxu0 0.0
    %928 = vmatprep.subr.mxu0 0.0
    %929 = vmatpush2.msra.mxu0 0.0
    %930 = vmatprep.subr.mxu0 0.0
    %931 = vmatpush2.msra.mxu0 0.0
    %932 = vmatprep.subr.mxu0 0.0
    %933 = vmatpush2.msra.mxu0 0.0
    %934 = vmatprep.subr.mxu0 0.0
    %935 = vmatpush2.msra.mxu0 0.0
    %936 = vmatprep.subr.mxu0 0.0
    %937 = vmatpush2.msra.mxu0 0.0
    %938 = vmatprep.subr.mxu0 0.0
    %939 = vmatpush2.msra.mxu0 0.0
    %940 = vmatprep.subr.mxu0 0.0
    %941 = vmatpush2.msra.mxu0 0.0
    %942 = vmatprep.subr.mxu0 0.0
    %943 = vmatpush2.msra.mxu0 0.0
    %944 = vmatprep.subr.mxu0 0.0
    %945 = vmatpush2.msra.mxu0 0.0
    %946 = vmatprep.subr.mxu0 0.0
    %947 = vmatpush2.msra.mxu0 0.0
    %948 = vmatprep.subr.mxu0 0.0
    %949 = vmatpush2.msra.mxu0 0.0
    %950 = vmatprep.subr.mxu0 0.0
    %951 = vmatpush2.msra.mxu0 0.0
    %952 = vmatprep.subr.mxu0 0.0
    %953 = vmatpush2.msra.mxu0 0.0
    %954 = vmatprep.subr.mxu0 0.0
    %955 = vmatpush2.msra.mxu0 0.0
    %956 = vmatprep.mubr.f32.mxu0 0.0
    %957 = vmatmul.mubr.f32.gmra.mxu0 %v884
    %v958 = vpop.f32.mrf.mxu0
    %v959 = vadd.f32 %v876, %v958
    %v960 = vpop.f32.mrf.mxu0
    %v961 = vadd.f32 %v880, %v960
    %962 = vdwg.mxu0
    %v963 = vsub.f32 0.0, %v959
    %v964 = vsub.f32 0.0, %v961
    %v965 = vmul.f32 %v963, 1.442695
    %v966 = vpow.pop %v965
    %v967 = vmul.f32 %v964, 1.442695
    %v968 = vpow.pop %v967
    %v969 = vadd.f32 %v966, 1.0
    %v970 = vadd.f32 %v968, 1.0
    %v971 = vrcp.pop %v969
    %v972 = vmul.f32 1.0, %v971
    %v973 = vrcp.pop %v970
    %v974 = vmul.f32 1.0, %v973
    %v975 = vmul.f32 %v959, %v972
    %v976 = vmul.f32 %v961, %v974
    %s977 = scalar_lea.vmem [#allocation7], 1536
    %v978 = vld [vmem:[%s977] sm:$0xff]
    %v979 = vld [vmem:[%s977 + $0x8] sm:$0xff]
    %v980 = vld [vmem:[%s977 + $0x30] sm:$0xff]
    %v981 = vld [vmem:[%s977 + $0x38] sm:$0xff]
    %v982 = vld [vmem:[%s977 + $0x60] sm:$0xff]
    %v983 = vld [vmem:[%s977 + $0x68] sm:$0xff]
    %v984 = vld [vmem:[%s977 + $0x90] sm:$0xff]
    %v985 = vld [vmem:[%s977 + $0x98] sm:$0xff]
    %v986 = vld [vmem:[%s977 + $0xc0] sm:$0xff]
    %v987 = vld [vmem:[%s977 + $0xc8] sm:$0xff]
    %v988 = vld [vmem:[%s977 + $0xf0] sm:$0xff]
    %v989 = vld [vmem:[%s977 + $0xf8] sm:$0xff]
    %v990 = vld [vmem:[%s977 + $0x120] sm:$0xff]
    %v991 = vld [vmem:[%s977 + $0x128] sm:$0xff]
    %v992 = vld [vmem:[%s977 + $0x150] sm:$0xff]
    %v993 = vld [vmem:[%s977 + $0x158] sm:$0xff]
    %v994 = vld [vmem:[%s977 + $0x180] sm:$0xff]
    %v995 = vld [vmem:[%s977 + $0x188] sm:$0xff]
    %v996 = vld [vmem:[%s977 + $0x1b0] sm:$0xff]
    %v997 = vld [vmem:[%s977 + $0x1b8] sm:$0xff]
    %v998 = vld [vmem:[%s977 + $0x1e0] sm:$0xff]
    %v999 = vld [vmem:[%s977 + $0x1e8] sm:$0xff]
    %v1000 = vld [vmem:[%s977 + $0x210] sm:$0xff]
    %v1001 = vld [vmem:[%s977 + $0x218] sm:$0xff]
    %v1002 = vld [vmem:[%s977 + $0x240] sm:$0xff]
    %v1003 = vld [vmem:[%s977 + $0x248] sm:$0xff]
    %v1004 = vld [vmem:[%s977 + $0x270] sm:$0xff]
    %v1005 = vld [vmem:[%s977 + $0x278] sm:$0xff]
    %v1006 = vld [vmem:[%s977 + $0x2a0] sm:$0xff]
    %v1007 = vld [vmem:[%s977 + $0x2a8] sm:$0xff]
    %v1008 = vld [vmem:[%s977 + $0x2d0] sm:$0xff]
    %v1009 = vld [vmem:[%s977 + $0x2d8] sm:$0xff]
    %v1010 = vld [vmem:[%s977 + $0x300] sm:$0xff]
    %v1011 = vld [vmem:[%s977 + $0x308] sm:$0xff]
    %v1012 = vld [vmem:[%s977 + $0x330] sm:$0xff]
    %v1013 = vld [vmem:[%s977 + $0x338] sm:$0xff]
    %v1014 = vld [vmem:[%s977 + $0x360] sm:$0xff]
    %v1015 = vld [vmem:[%s977 + $0x368] sm:$0xff]
    %v1016 = vld [vmem:[%s977 + $0x390] sm:$0xff]
    %v1017 = vld [vmem:[%s977 + $0x398] sm:$0xff]
    %v1018 = vld [vmem:[%s977 + $0x3c0] sm:$0xff]
    %v1019 = vld [vmem:[%s977 + $0x3c8] sm:$0xff]
    %v1020 = vld [vmem:[%s977 + $0x3f0] sm:$0xff]
    %v1021 = vld [vmem:[%s977 + $0x3f8] sm:$0xff]
    %v1022 = vld [vmem:[%s977 + $0x420] sm:$0xff]
    %v1023 = vld [vmem:[%s977 + $0x428] sm:$0xff]
    %v1024 = vld [vmem:[%s977 + $0x450] sm:$0xff]
    %v1025 = vld [vmem:[%s977 + $0x458] sm:$0xff]
    %v1026 = vld [vmem:[%s977 + $0x480] sm:$0xff]
    %v1027 = vld [vmem:[%s977 + $0x488] sm:$0xff]
    %v1028 = vld [vmem:[%s977 + $0x4b0] sm:$0xff]
    %v1029 = vld [vmem:[%s977 + $0x4b8] sm:$0xff]
    %v1030 = vld [vmem:[%s977 + $0x4e0] sm:$0xff]
    %v1031 = vld [vmem:[%s977 + $0x4e8] sm:$0xff]
    %v1032 = vld [vmem:[%s977 + $0x510] sm:$0xff]
    %v1033 = vld [vmem:[%s977 + $0x518] sm:$0xff]
    %v1034 = vld [vmem:[%s977 + $0x540] sm:$0xff]
    %v1035 = vld [vmem:[%s977 + $0x548] sm:$0xff]
    %v1036 = vld [vmem:[%s977 + $0x570] sm:$0xff]
    %v1037 = vld [vmem:[%s977 + $0x578] sm:$0xff]
    %v1038 = vld [vmem:[%s977 + $0x5a0] sm:$0xff]
    %v1039 = vld [vmem:[%s977 + $0x5a8] sm:$0xff]
    %v1040 = vld [vmem:[%s977 + $0x5d0] sm:$0xff]
    %v1041 = vld [vmem:[%s977 + $0x5d8] sm:$0xff]
    %s1042 = scalar_lea.vmem %s870, 1 [#allocation8]
    %v1043 = vld [vmem:[%s1042] ss:$4 sm:$0x3]
    %v1045 = vlaneseq
    %v1046 = vshrl.u32 %v1045, 7
    %v1047 = vsub.s32 0, %v1046
    %v1048 = vrot.slane %v1043, %v1047
    %v1049 = vlaneseq
    %v1050 = vshrl.u32 %v1049, 7
    %v1051 = vsub.s32 1, %v1050
    %v1052 = vrot.slane %v1043, %v1051
    %1055 = vmatprep.subr.mxu0 %v1009
    %1056 = vmatpush1.msra.mxu0 %v1008
    %1057 = vmatprep.subr.mxu0 %v1007
    %1058 = vmatpush1.msra.mxu0 %v1006
    %1059 = vmatprep.subr.mxu0 %v1005
    %1060 = vmatpush1.msra.mxu0 %v1004
    %1061 = vmatprep.subr.mxu0 %v1003
    %1062 = vmatpush1.msra.mxu0 %v1002
    %1063 = vmatprep.subr.mxu0 %v1001
    %1064 = vmatpush1.msra.mxu0 %v1000
    %1065 = vmatprep.subr.mxu0 %v999
    %1066 = vmatpush1.msra.mxu0 %v998
    %1067 = vmatprep.subr.mxu0 %v997
    %1068 = vmatpush1.msra.mxu0 %v996
    %1069 = vmatprep.subr.mxu0 %v995
    %1070 = vmatpush1.msra.mxu0 %v994
    %1071 = vmatprep.subr.mxu0 %v993
    %1072 = vmatpush1.msra.mxu0 %v992
    %1073 = vmatprep.subr.mxu0 %v991
    %1074 = vmatpush1.msra.mxu0 %v990
    %1075 = vmatprep.subr.mxu0 %v989
    %1076 = vmatpush1.msra.mxu0 %v988
    %1077 = vmatprep.subr.mxu0 %v987
    %1078 = vmatpush1.msra.mxu0 %v986
    %1079 = vmatprep.subr.mxu0 %v985
    %1080 = vmatpush1.msra.mxu0 %v984
    %1081 = vmatprep.subr.mxu0 %v983
    %1082 = vmatpush1.msra.mxu0 %v982
    %1083 = vmatprep.subr.mxu0 %v981
    %1084 = vmatpush1.msra.mxu0 %v980
    %1085 = vmatprep.subr.mxu0 %v979
    %1086 = vmatpush1.msra.mxu0 %v978
    %1087 = vmatprep.subr.mxu0 %v1041
    %1088 = vmatpush2.msra.mxu0 %v1040
    %1089 = vmatprep.subr.mxu0 %v1039
    %1090 = vmatpush2.msra.mxu0 %v1038
    %1091 = vmatprep.subr.mxu0 %v1037
    %1092 = vmatpush2.msra.mxu0 %v1036
    %1093 = vmatprep.subr.mxu0 %v1035
    %1094 = vmatpush2.msra.mxu0 %v1034
    %1095 = vmatprep.subr.mxu0 %v1033
    %1096 = vmatpush2.msra.mxu0 %v1032
    %1097 = vmatprep.subr.mxu0 %v1031
    %1098 = vmatpush2.msra.mxu0 %v1030
    %1099 = vmatprep.subr.mxu0 %v1029
    %1100 = vmatpush2.msra.mxu0 %v1028
    %1101 = vmatprep.subr.mxu0 %v1027
    %1102 = vmatpush2.msra.mxu0 %v1026
    %1103 = vmatprep.subr.mxu0 %v1025
    %1104 = vmatpush2.msra.mxu0 %v1024
    %1105 = vmatprep.subr.mxu0 %v1023
    %1106 = vmatpush2.msra.mxu0 %v1022
    %1107 = vmatprep.subr.mxu0 %v1021
    %1108 = vmatpush2.msra.mxu0 %v1020
    %1109 = vmatprep.subr.mxu0 %v1019
    %1110 = vmatpush2.msra.mxu0 %v1018
    %1111 = vmatprep.subr.mxu0 %v1017
    %1112 = vmatpush2.msra.mxu0 %v1016
    %1113 = vmatprep.subr.mxu0 %v1015
    %1114 = vmatpush2.msra.mxu0 %v1014
    %1115 = vmatprep.subr.mxu0 %v1013
    %1116 = vmatpush2.msra.mxu0 %v1012
    %1117 = vmatprep.subr.mxu0 %v1011
    %1118 = vmatpush2.msra.mxu0 %v1010
    %1119 = vmatprep.mubr.f32.mxu0 %v976
    %1120 = vmatmul.mubr.f32.gmra.mxu0 %v975
    %v1121 = vpop.f32.mrf.mxu0
    %v1122 = vadd.f32 %v1048, %v1121
    %v1123 = vpop.f32.mrf.mxu0
    %v1124 = vadd.f32 %v1052, %v1123
    %1125 = vdwg.mxu0
    %v1126 = vsub.f32 0.0, %v1122
    %v1127 = vsub.f32 0.0, %v1124
    %v1128 = vmul.f32 %v1126, 1.442695
    %v1129 = vpow.pop %v1128
    %v1130 = vmul.f32 %v1127, 1.442695
    %v1131 = vpow.pop %v1130
    %v1132 = vadd.f32 %v1129, 1.0
    %v1133 = vadd.f32 %v1131, 1.0
    %v1134 = vrcp.pop %v1132
    %v1135 = vmul.f32 1.0, %v1134
    %v1136 = vrcp.pop %v1133
    %v1137 = vmul.f32 1.0, %v1136
    %v1138 = vmul.f32 %v1122, %v1135
    %v1139 = vmul.f32 %v1124, %v1137
    %v1140 = vld [vmem:[%s977 + $0x10] sm:$0xff]
    %v1141 = vld [vmem:[%s977 + $0x18] sm:$0xff]
    %v1142 = vld [vmem:[%s977 + $0x40] sm:$0xff]
    %v1143 = vld [vmem:[%s977 + $0x48] sm:$0xff]
    %v1144 = vld [vmem:[%s977 + $0x70] sm:$0xff]
    %v1145 = vld [vmem:[%s977 + $0x78] sm:$0xff]
    %v1146 = vld [vmem:[%s977 + $0xa0] sm:$0xff]
    %v1147 = vld [vmem:[%s977 + $0xa8] sm:$0xff]
    %v1148 = vld [vmem:[%s977 + $0xd0] sm:$0xff]
    %v1149 = vld [vmem:[%s977 + $0xd8] sm:$0xff]
    %v1150 = vld [vmem:[%s977 + $0x100] sm:$0xff]
    %v1151 = vld [vmem:[%s977 + $0x108] sm:$0xff]
    %v1152 = vld [vmem:[%s977 + $0x130] sm:$0xff]
    %v1153 = vld [vmem:[%s977 + $0x138] sm:$0xff]
    %v1154 = vld [vmem:[%s977 + $0x160] sm:$0xff]
    %v1155 = vld [vmem:[%s977 + $0x168] sm:$0xff]
    %v1156 = vld [vmem:[%s977 + $0x190] sm:$0xff]
    %v1157 = vld [vmem:[%s977 + $0x198] sm:$0xff]
    %v1158 = vld [vmem:[%s977 + $0x1c0] sm:$0xff]
    %v1159 = vld [vmem:[%s977 + $0x1c8] sm:$0xff]
    %v1160 = vld [vmem:[%s977 + $0x1f0] sm:$0xff]
    %v1161 = vld [vmem:[%s977 + $0x1f8] sm:$0xff]
    %v1162 = vld [vmem:[%s977 + $0x220] sm:$0xff]
    %v1163 = vld [vmem:[%s977 + $0x228] sm:$0xff]
    %v1164 = vld [vmem:[%s977 + $0x250] sm:$0xff]
    %v1165 = vld [vmem:[%s977 + $0x258] sm:$0xff]
    %v1166 = vld [vmem:[%s977 + $0x280] sm:$0xff]
    %v1167 = vld [vmem:[%s977 + $0x288] sm:$0xff]
    %v1168 = vld [vmem:[%s977 + $0x2b0] sm:$0xff]
    %v1169 = vld [vmem:[%s977 + $0x2b8] sm:$0xff]
    %v1170 = vld [vmem:[%s977 + $0x2e0] sm:$0xff]
    %v1171 = vld [vmem:[%s977 + $0x2e8] sm:$0xff]
    %v1172 = vld [vmem:[%s977 + $0x310] sm:$0xff]
    %v1173 = vld [vmem:[%s977 + $0x318] sm:$0xff]
    %v1174 = vld [vmem:[%s977 + $0x340] sm:$0xff]
    %v1175 = vld [vmem:[%s977 + $0x348] sm:$0xff]
    %v1176 = vld [vmem:[%s977 + $0x370] sm:$0xff]
    %v1177 = vld [vmem:[%s977 + $0x378] sm:$0xff]
    %v1178 = vld [vmem:[%s977 + $0x3a0] sm:$0xff]
    %v1179 = vld [vmem:[%s977 + $0x3a8] sm:$0xff]
    %v1180 = vld [vmem:[%s977 + $0x3d0] sm:$0xff]
    %v1181 = vld [vmem:[%s977 + $0x3d8] sm:$0xff]
    %v1182 = vld [vmem:[%s977 + $0x400] sm:$0xff]
    %v1183 = vld [vmem:[%s977 + $0x408] sm:$0xff]
    %v1184 = vld [vmem:[%s977 + $0x430] sm:$0xff]
    %v1185 = vld [vmem:[%s977 + $0x438] sm:$0xff]
    %v1186 = vld [vmem:[%s977 + $0x460] sm:$0xff]
    %v1187 = vld [vmem:[%s977 + $0x468] sm:$0xff]
    %v1188 = vld [vmem:[%s977 + $0x490] sm:$0xff]
    %v1189 = vld [vmem:[%s977 + $0x498] sm:$0xff]
    %v1190 = vld [vmem:[%s977 + $0x4c0] sm:$0xff]
    %v1191 = vld [vmem:[%s977 + $0x4c8] sm:$0xff]
    %v1192 = vld [vmem:[%s977 + $0x4f0] sm:$0xff]
    %v1193 = vld [vmem:[%s977 + $0x4f8] sm:$0xff]
    %v1194 = vld [vmem:[%s977 + $0x520] sm:$0xff]
    %v1195 = vld [vmem:[%s977 + $0x528] sm:$0xff]
    %v1196 = vld [vmem:[%s977 + $0x550] sm:$0xff]
    %v1197 = vld [vmem:[%s977 + $0x558] sm:$0xff]
    %v1198 = vld [vmem:[%s977 + $0x580] sm:$0xff]
    %v1199 = vld [vmem:[%s977 + $0x588] sm:$0xff]
    %v1200 = vld [vmem:[%s977 + $0x5b0] sm:$0xff]
    %v1201 = vld [vmem:[%s977 + $0x5b8] sm:$0xff]
    %v1202 = vld [vmem:[%s977 + $0x5e0] sm:$0xff]
    %v1203 = vld [vmem:[%s977 + $0x5e8] sm:$0xff]
    %s1204 = scalar_lea.vmem %s870, 2 [#allocation8]
    %v1205 = vld [vmem:[%s1204] ss:$4 sm:$0x3]
    %v1207 = vlaneseq
    %v1208 = vshrl.u32 %v1207, 7
    %v1209 = vsub.s32 0, %v1208
    %v1210 = vrot.slane %v1205, %v1209
    %v1211 = vlaneseq
    %v1212 = vshrl.u32 %v1211, 7
    %v1213 = vsub.s32 1, %v1212
    %v1214 = vrot.slane %v1205, %v1213
    %1217 = vmatprep.subr.mxu0 %v1171
    %1218 = vmatpush1.msra.mxu0 %v1170
    %1219 = vmatprep.subr.mxu0 %v1169
    %1220 = vmatpush1.msra.mxu0 %v1168
    %1221 = vmatprep.subr.mxu0 %v1167
    %1222 = vmatpush1.msra.mxu0 %v1166
    %1223 = vmatprep.subr.mxu0 %v1165
    %1224 = vmatpush1.msra.mxu0 %v1164
    %1225 = vmatprep.subr.mxu0 %v1163
    %1226 = vmatpush1.msra.mxu0 %v1162
    %1227 = vmatprep.subr.mxu0 %v1161
    %1228 = vmatpush1.msra.mxu0 %v1160
    %1229 = vmatprep.subr.mxu0 %v1159
    %1230 = vmatpush1.msra.mxu0 %v1158
    %1231 = vmatprep.subr.mxu0 %v1157
    %1232 = vmatpush1.msra.mxu0 %v1156
    %1233 = vmatprep.subr.mxu0 %v1155
    %1234 = vmatpush1.msra.mxu0 %v1154
    %1235 = vmatprep.subr.mxu0 %v1153
    %1236 = vmatpush1.msra.mxu0 %v1152
    %1237 = vmatprep.subr.mxu0 %v1151
    %1238 = vmatpush1.msra.mxu0 %v1150
    %1239 = vmatprep.subr.mxu0 %v1149
    %1240 = vmatpush1.msra.mxu0 %v1148
    %1241 = vmatprep.subr.mxu0 %v1147
    %1242 = vmatpush1.msra.mxu0 %v1146
    %1243 = vmatprep.subr.mxu0 %v1145
    %1244 = vmatpush1.msra.mxu0 %v1144
    %1245 = vmatprep.subr.mxu0 %v1143
    %1246 = vmatpush1.msra.mxu0 %v1142
    %1247 = vmatprep.subr.mxu0 %v1141
    %1248 = vmatpush1.msra.mxu0 %v1140
    %1249 = vmatprep.subr.mxu0 %v1203
    %1250 = vmatpush2.msra.mxu0 %v1202
    %1251 = vmatprep.subr.mxu0 %v1201
    %1252 = vmatpush2.msra.mxu0 %v1200
    %1253 = vmatprep.subr.mxu0 %v1199
    %1254 = vmatpush2.msra.mxu0 %v1198
    %1255 = vmatprep.subr.mxu0 %v1197
    %1256 = vmatpush2.msra.mxu0 %v1196
    %1257 = vmatprep.subr.mxu0 %v1195
    %1258 = vmatpush2.msra.mxu0 %v1194
    %1259 = vmatprep.subr.mxu0 %v1193
    %1260 = vmatpush2.msra.mxu0 %v1192
    %1261 = vmatprep.subr.mxu0 %v1191
    %1262 = vmatpush2.msra.mxu0 %v1190
    %1263 = vmatprep.subr.mxu0 %v1189
    %1264 = vmatpush2.msra.mxu0 %v1188
    %1265 = vmatprep.subr.mxu0 %v1187
    %1266 = vmatpush2.msra.mxu0 %v1186
    %1267 = vmatprep.subr.mxu0 %v1185
    %1268 = vmatpush2.msra.mxu0 %v1184
    %1269 = vmatprep.subr.mxu0 %v1183
    %1270 = vmatpush2.msra.mxu0 %v1182
    %1271 = vmatprep.subr.mxu0 %v1181
    %1272 = vmatpush2.msra.mxu0 %v1180
    %1273 = vmatprep.subr.mxu0 %v1179
    %1274 = vmatpush2.msra.mxu0 %v1178
    %1275 = vmatprep.subr.mxu0 %v1177
    %1276 = vmatpush2.msra.mxu0 %v1176
    %1277 = vmatprep.subr.mxu0 %v1175
    %1278 = vmatpush2.msra.mxu0 %v1174
    %1279 = vmatprep.subr.mxu0 %v1173
    %1280 = vmatpush2.msra.mxu0 %v1172
    %1281 = vmatprep.mubr.f32.mxu0 %v1139
    %1282 = vmatmul.mubr.f32.gmra.mxu0 %v1138
    %v1283 = vpop.f32.mrf.mxu0
    %v1284 = vadd.f32 %v1210, %v1283
    %v1285 = vpop.f32.mrf.mxu0
    %v1286 = vadd.f32 %v1214, %v1285
    %1287 = vdwg.mxu0
    %v1288 = vsub.f32 0.0, %v1284
    %v1289 = vsub.f32 0.0, %v1286
    %v1290 = vmul.f32 %v1288, 1.442695
    %v1291 = vpow.pop %v1290
    %v1292 = vmul.f32 %v1289, 1.442695
    %v1293 = vpow.pop %v1292
    %v1294 = vadd.f32 %v1291, 1.0
    %v1295 = vadd.f32 %v1293, 1.0
    %v1296 = vrcp.pop %v1294
    %v1297 = vmul.f32 1.0, %v1296
    %v1298 = vrcp.pop %v1295
    %v1299 = vmul.f32 1.0, %v1298
    %v1300 = vmul.f32 %v1284, %v1297
    %v1301 = vmul.f32 %v1286, %v1299
    %v1302 = vld [vmem:[%s977 + $0x20] sm:$0xff]
    %v1303 = vld [vmem:[%s977 + $0x28] sm:$0xff]
    %v1304 = vld [vmem:[%s977 + $0x50] sm:$0xff]
    %v1305 = vld [vmem:[%s977 + $0x58] sm:$0xff]
    %v1306 = vld [vmem:[%s977 + $0x80] sm:$0xff]
    %v1307 = vld [vmem:[%s977 + $0x88] sm:$0xff]
    %v1308 = vld [vmem:[%s977 + $0xb0] sm:$0xff]
    %v1309 = vld [vmem:[%s977 + $0xb8] sm:$0xff]
    %v1310 = vld [vmem:[%s977 + $0xe0] sm:$0xff]
    %v1311 = vld [vmem:[%s977 + $0xe8] sm:$0xff]
    %v1312 = vld [vmem:[%s977 + $0x110] sm:$0xff]
    %v1313 = vld [vmem:[%s977 + $0x118] sm:$0xff]
    %v1314 = vld [vmem:[%s977 + $0x140] sm:$0xff]
    %v1315 = vld [vmem:[%s977 + $0x148] sm:$0xff]
    %v1316 = vld [vmem:[%s977 + $0x170] sm:$0xff]
    %v1317 = vld [vmem:[%s977 + $0x178] sm:$0xff]
    %v1318 = vld [vmem:[%s977 + $0x1a0] sm:$0xff]
    %v1319 = vld [vmem:[%s977 + $0x1a8] sm:$0xff]
    %v1320 = vld [vmem:[%s977 + $0x1d0] sm:$0xff]
    %v1321 = vld [vmem:[%s977 + $0x1d8] sm:$0xff]
    %v1322 = vld [vmem:[%s977 + $0x200] sm:$0xff]
    %v1323 = vld [vmem:[%s977 + $0x208] sm:$0xff]
    %v1324 = vld [vmem:[%s977 + $0x230] sm:$0xff]
    %v1325 = vld [vmem:[%s977 + $0x238] sm:$0xff]
    %v1326 = vld [vmem:[%s977 + $0x260] sm:$0xff]
    %v1327 = vld [vmem:[%s977 + $0x268] sm:$0xff]
    %v1328 = vld [vmem:[%s977 + $0x290] sm:$0xff]
    %v1329 = vld [vmem:[%s977 + $0x298] sm:$0xff]
    %v1330 = vld [vmem:[%s977 + $0x2c0] sm:$0xff]
    %v1331 = vld [vmem:[%s977 + $0x2c8] sm:$0xff]
    %v1332 = vld [vmem:[%s977 + $0x2f0] sm:$0xff]
    %v1333 = vld [vmem:[%s977 + $0x2f8] sm:$0xff]
    %v1334 = vld [vmem:[%s977 + $0x320] sm:$0xff]
    %v1335 = vld [vmem:[%s977 + $0x328] sm:$0xff]
    %v1336 = vld [vmem:[%s977 + $0x350] sm:$0xff]
    %v1337 = vld [vmem:[%s977 + $0x358] sm:$0xff]
    %v1338 = vld [vmem:[%s977 + $0x380] sm:$0xff]
    %v1339 = vld [vmem:[%s977 + $0x388] sm:$0xff]
    %v1340 = vld [vmem:[%s977 + $0x3b0] sm:$0xff]
    %v1341 = vld [vmem:[%s977 + $0x3b8] sm:$0xff]
    %v1342 = vld [vmem:[%s977 + $0x3e0] sm:$0xff]
    %v1343 = vld [vmem:[%s977 + $0x3e8] sm:$0xff]
    %v1344 = vld [vmem:[%s977 + $0x410] sm:$0xff]
    %v1345 = vld [vmem:[%s977 + $0x418] sm:$0xff]
    %v1346 = vld [vmem:[%s977 + $0x440] sm:$0xff]
    %v1347 = vld [vmem:[%s977 + $0x448] sm:$0xff]
    %v1348 = vld [vmem:[%s977 + $0x470] sm:$0xff]
    %v1349 = vld [vmem:[%s977 + $0x478] sm:$0xff]
    %v1350 = vld [vmem:[%s977 + $0x4a0] sm:$0xff]
    %v1351 = vld [vmem:[%s977 + $0x4a8] sm:$0xff]
    %v1352 = vld [vmem:[%s977 + $0x4d0] sm:$0xff]
    %v1353 = vld [vmem:[%s977 + $0x4d8] sm:$0xff]
    %v1354 = vld [vmem:[%s977 + $0x500] sm:$0xff]
    %v1355 = vld [vmem:[%s977 + $0x508] sm:$0xff]
    %v1356 = vld [vmem:[%s977 + $0x530] sm:$0xff]
    %v1357 = vld [vmem:[%s977 + $0x538] sm:$0xff]
    %v1358 = vld [vmem:[%s977 + $0x560] sm:$0xff]
    %v1359 = vld [vmem:[%s977 + $0x568] sm:$0xff]
    %v1360 = vld [vmem:[%s977 + $0x590] sm:$0xff]
    %v1361 = vld [vmem:[%s977 + $0x598] sm:$0xff]
    %v1362 = vld [vmem:[%s977 + $0x5c0] sm:$0xff]
    %v1363 = vld [vmem:[%s977 + $0x5c8] sm:$0xff]
    %v1364 = vld [vmem:[%s977 + $0x5f0] sm:$0xff]
    %v1365 = vld [vmem:[%s977 + $0x5f8] sm:$0xff]
    %s1366 = scalar_lea.vmem %s870, 3 [#allocation8]
    %v1367 = vld [vmem:[%s1366] ss:$4 sm:$0x3]
    %v1369 = vlaneseq
    %v1370 = vshrl.u32 %v1369, 7
    %v1371 = vsub.s32 0, %v1370
    %v1372 = vrot.slane %v1367, %v1371
    %v1373 = vlaneseq
    %v1374 = vshrl.u32 %v1373, 7
    %v1375 = vsub.s32 1, %v1374
    %v1376 = vrot.slane %v1367, %v1375
    %1379 = vmatprep.subr.mxu0 %v1333
    %1380 = vmatpush1.msra.mxu0 %v1332
    %1381 = vmatprep.subr.mxu0 %v1331
    %1382 = vmatpush1.msra.mxu0 %v1330
    %1383 = vmatprep.subr.mxu0 %v1329
    %1384 = vmatpush1.msra.mxu0 %v1328
    %1385 = vmatprep.subr.mxu0 %v1327
    %1386 = vmatpush1.msra.mxu0 %v1326
    %1387 = vmatprep.subr.mxu0 %v1325
    %1388 = vmatpush1.msra.mxu0 %v1324
    %1389 = vmatprep.subr.mxu0 %v1323
    %1390 = vmatpush1.msra.mxu0 %v1322
    %1391 = vmatprep.subr.mxu0 %v1321
    %1392 = vmatpush1.msra.mxu0 %v1320
    %1393 = vmatprep.subr.mxu0 %v1319
    %1394 = vmatpush1.msra.mxu0 %v1318
    %1395 = vmatprep.subr.mxu0 %v1317
    %1396 = vmatpush1.msra.mxu0 %v1316
    %1397 = vmatprep.subr.mxu0 %v1315
    %1398 = vmatpush1.msra.mxu0 %v1314
    %1399 = vmatprep.subr.mxu0 %v1313
    %1400 = vmatpush1.msra.mxu0 %v1312
    %1401 = vmatprep.subr.mxu0 %v1311
    %1402 = vmatpush1.msra.mxu0 %v1310
    %1403 = vmatprep.subr.mxu0 %v1309
    %1404 = vmatpush1.msra.mxu0 %v1308
    %1405 = vmatprep.subr.mxu0 %v1307
    %1406 = vmatpush1.msra.mxu0 %v1306
    %1407 = vmatprep.subr.mxu0 %v1305
    %1408 = vmatpush1.msra.mxu0 %v1304
    %1409 = vmatprep.subr.mxu0 %v1303
    %1410 = vmatpush1.msra.mxu0 %v1302
    %1411 = vmatprep.subr.mxu0 %v1365
    %1412 = vmatpush2.msra.mxu0 %v1364
    %1413 = vmatprep.subr.mxu0 %v1363
    %1414 = vmatpush2.msra.mxu0 %v1362
    %1415 = vmatprep.subr.mxu0 %v1361
    %1416 = vmatpush2.msra.mxu0 %v1360
    %1417 = vmatprep.subr.mxu0 %v1359
    %1418 = vmatpush2.msra.mxu0 %v1358
    %1419 = vmatprep.subr.mxu0 %v1357
    %1420 = vmatpush2.msra.mxu0 %v1356
    %1421 = vmatprep.subr.mxu0 %v1355
    %1422 = vmatpush2.msra.mxu0 %v1354
    %1423 = vmatprep.subr.mxu0 %v1353
    %1424 = vmatpush2.msra.mxu0 %v1352
    %1425 = vmatprep.subr.mxu0 %v1351
    %1426 = vmatpush2.msra.mxu0 %v1350
    %1427 = vmatprep.subr.mxu0 %v1349
    %1428 = vmatpush2.msra.mxu0 %v1348
    %1429 = vmatprep.subr.mxu0 %v1347
    %1430 = vmatpush2.msra.mxu0 %v1346
    %1431 = vmatprep.subr.mxu0 %v1345
    %1432 = vmatpush2.msra.mxu0 %v1344
    %1433 = vmatprep.subr.mxu0 %v1343
    %1434 = vmatpush2.msra.mxu0 %v1342
    %1435 = vmatprep.subr.mxu0 %v1341
    %1436 = vmatpush2.msra.mxu0 %v1340
    %1437 = vmatprep.subr.mxu0 %v1339
    %1438 = vmatpush2.msra.mxu0 %v1338
    %1439 = vmatprep.subr.mxu0 %v1337
    %1440 = vmatpush2.msra.mxu0 %v1336
    %1441 = vmatprep.subr.mxu0 %v1335
    %1442 = vmatpush2.msra.mxu0 %v1334
    %1443 = vmatprep.mubr.f32.mxu0 %v1301
    %1444 = vmatmul.mubr.f32.gmra.mxu0 %v1300
    %v1445 = vpop.f32.mrf.mxu0
    %v1446 = vadd.f32 %v1372, %v1445
    %v1447 = vpop.f32.mrf.mxu0
    %v1448 = vadd.f32 %v1376, %v1447
    %1449 = vdwg.mxu0
    %v1450 = vsub.f32 0.0, %v1446
    %v1451 = vsub.f32 0.0, %v1448
    %v1452 = vmul.f32 %v1450, 1.442695
    %v1453 = vpow.pop %v1452
    %v1454 = vmul.f32 %v1451, 1.442695
    %v1455 = vpow.pop %v1454
    %v1456 = vadd.f32 %v1453, 1.0
    %v1457 = vadd.f32 %v1455, 1.0
    %v1458 = vrcp.pop %v1456
    %v1459 = vmul.f32 1.0, %v1458
    %v1460 = vrcp.pop %v1457
    %v1461 = vmul.f32 1.0, %v1460
    %v1462 = vmul.f32 %v1446, %v1459
    %v1463 = vmul.f32 %v1448, %v1461
    %s1464 = scalar_lea.vmem %s3, 256
    %v1465 = vld [vmem:[%s1464] sm:$0xff]
    %v1466 = vld [vmem:[%s1464 + $0x8] sm:$0xff]
    %v1467 = vld [vmem:[%s1464 + $0x10] sm:$0xff]
    %v1468 = vld [vmem:[%s1464 + $0x18] sm:$0xff]
    %v1469 = vld [vmem:[%s1464 + $0x20] sm:$0xff]
    %v1470 = vld [vmem:[%s1464 + $0x28] sm:$0xff]
    %v1471 = vld [vmem:[%s1464 + $0x30] sm:$0xff]
    %v1472 = vld [vmem:[%s1464 + $0x38] sm:$0xff]
    %v1473 = vld [vmem:[%s1464 + $0x40] sm:$0xff]
    %v1474 = vld [vmem:[%s1464 + $0x48] sm:$0xff]
    %v1475 = vld [vmem:[%s1464 + $0x50] sm:$0xff]
    %v1476 = vld [vmem:[%s1464 + $0x58] sm:$0xff]
    %v1477 = vld [vmem:[%s1464 + $0x60] sm:$0xff]
    %v1478 = vld [vmem:[%s1464 + $0x68] sm:$0xff]
    %v1479 = vld [vmem:[%s1464 + $0x70] sm:$0xff]
    %v1480 = vld [vmem:[%s1464 + $0x78] sm:$0xff]
    %v1481 = vld [vmem:[%s1464 + $0x80] sm:$0xff]
    %v1482 = vld [vmem:[%s1464 + $0x88] sm:$0xff]
    %v1483 = vld [vmem:[%s1464 + $0x90] sm:$0xff]
    %v1484 = vld [vmem:[%s1464 + $0x98] sm:$0xff]
    %v1485 = vld [vmem:[%s1464 + $0xa0] sm:$0xff]
    %v1486 = vld [vmem:[%s1464 + $0xa8] sm:$0xff]
    %v1487 = vld [vmem:[%s1464 + $0xb0] sm:$0xff]
    %v1488 = vld [vmem:[%s1464 + $0xb8] sm:$0xff]
    %v1489 = vld [vmem:[%s1464 + $0xc0] sm:$0xff]
    %v1490 = vld [vmem:[%s1464 + $0xc8] sm:$0xff]
    %v1491 = vld [vmem:[%s1464 + $0xd0] sm:$0xff]
    %v1492 = vld [vmem:[%s1464 + $0xd8] sm:$0xff]
    %v1493 = vld [vmem:[%s1464 + $0xe0] sm:$0xff]
    %v1494 = vld [vmem:[%s1464 + $0xe8] sm:$0xff]
    %v1495 = vld [vmem:[%s1464 + $0xf0] sm:$0xff]
    %v1496 = vld [vmem:[%s1464 + $0xf8] sm:$0xff]
    %v1497 = vld [vmem:[#allocation10 + $0x1] sm:$0x1]
    %v1498 = vlaneseq
    %v1499 = vshrl.u32 %v1498, 7
    %v1500 = vsub.s32 0, %v1499
    %v1501 = vrot.slane %v1497, %v1500
    %1502 = vmatprep.subr.mxu0 0.0
    %1503 = vmatpush1.msra.mxu0 %v1480
    %1504 = vmatprep.subr.mxu0 0.0
    %1505 = vmatpush1.msra.mxu0 %v1479
    %1506 = vmatprep.subr.mxu0 0.0
    %1507 = vmatpush1.msra.mxu0 %v1478
    %1508 = vmatprep.subr.mxu0 0.0
    %1509 = vmatpush1.msra.mxu0 %v1477
    %1510 = vmatprep.subr.mxu0 0.0
    %1511 = vmatpush1.msra.mxu0 %v1476
    %1512 = vmatprep.subr.mxu0 0.0
    %1513 = vmatpush1.msra.mxu0 %v1475
    %1514 = vmatprep.subr.mxu0 0.0
    %1515 = vmatpush1.msra.mxu0 %v1474
    %1516 = vmatprep.subr.mxu0 0.0
    %1517 = vmatpush1.msra.mxu0 %v1473
    %1518 = vmatprep.subr.mxu0 0.0
    %1519 = vmatpush1.msra.mxu0 %v1472
    %1520 = vmatprep.subr.mxu0 0.0
    %1521 = vmatpush1.msra.mxu0 %v1471
    %1522 = vmatprep.subr.mxu0 0.0
    %1523 = vmatpush1.msra.mxu0 %v1470
    %1524 = vmatprep.subr.mxu0 0.0
    %1525 = vmatpush1.msra.mxu0 %v1469
    %1526 = vmatprep.subr.mxu0 0.0
    %1527 = vmatpush1.msra.mxu0 %v1468
    %1528 = vmatprep.subr.mxu0 0.0
    %1529 = vmatpush1.msra.mxu0 %v1467
    %1530 = vmatprep.subr.mxu0 0.0
    %1531 = vmatpush1.msra.mxu0 %v1466
    %1532 = vmatprep.subr.mxu0 0.0
    %1533 = vmatpush1.msra.mxu0 %v1465
    %1534 = vmatprep.subr.mxu0 0.0
    %1535 = vmatpush2.msra.mxu0 %v1496
    %1536 = vmatprep.subr.mxu0 0.0
    %1537 = vmatpush2.msra.mxu0 %v1495
    %1538 = vmatprep.subr.mxu0 0.0
    %1539 = vmatpush2.msra.mxu0 %v1494
    %1540 = vmatprep.subr.mxu0 0.0
    %1541 = vmatpush2.msra.mxu0 %v1493
    %1542 = vmatprep.subr.mxu0 0.0
    %1543 = vmatpush2.msra.mxu0 %v1492
    %1544 = vmatprep.subr.mxu0 0.0
    %1545 = vmatpush2.msra.mxu0 %v1491
    %1546 = vmatprep.subr.mxu0 0.0
    %1547 = vmatpush2.msra.mxu0 %v1490
    %1548 = vmatprep.subr.mxu0 0.0
    %1549 = vmatpush2.msra.mxu0 %v1489
    %1550 = vmatprep.subr.mxu0 0.0
    %1551 = vmatpush2.msra.mxu0 %v1488
    %1552 = vmatprep.subr.mxu0 0.0
    %1553 = vmatpush2.msra.mxu0 %v1487
    %1554 = vmatprep.subr.mxu0 0.0
    %1555 = vmatpush2.msra.mxu0 %v1486
    %1556 = vmatprep.subr.mxu0 0.0
    %1557 = vmatpush2.msra.mxu0 %v1485
    %1558 = vmatprep.subr.mxu0 0.0
    %1559 = vmatpush2.msra.mxu0 %v1484
    %1560 = vmatprep.subr.mxu0 0.0
    %1561 = vmatpush2.msra.mxu0 %v1483
    %1562 = vmatprep.subr.mxu0 0.0
    %1563 = vmatpush2.msra.mxu0 %v1482
    %1564 = vmatprep.subr.mxu0 0.0
    %1565 = vmatpush2.msra.mxu0 %v1481
    %1566 = vmatprep.mubr.f32.mxu0 %v1463
    %1567 = vmatmul.mubr.f32.gmra.mxu0 %v1462
    %v1568 = vpop.f32.mrf.mxu0
    %v1569 = vadd.f32 %v1501, %v1568
    %v1570 = vpop.f32.mrf.mxu0
    %1571 = vdwg.mxu0
    %v1572 = vsub.f32 %v819, %v1569
    %v1573 = vmax.f32 %v1572, 0.0
    %v1574 = vand.u32 2147483647, %v1572
    %v1575 = vsub.f32 0.0, %v1574
    %v1576 = vmul.f32 %v1575, 1.442695
    %v1577 = vpow.pop %v1576
    %v1578 = vadd.f32 %v1577, 1.0
    %v1579 = vlog2.pop %v1578
    %v1580 = vmul.f32 %v1579, 0.6931472
    %v1581 = vmul.f32 -0.5, %v1577
    %v1582 = vadd.f32 %v1581, 1.0
    %v1583 = vmul.f32 %v1582, %v1577
    %v1584 = vand.u32 2147483647, %v1577
    %vm1585 = vcmp.lt.f32.partialorder %v1584, 0.0004427343
    %v1586 = vsel %vm1585, %v1583, %v1580
    %v1587 = vadd.f32 %v1573, %v1586
    %v1588 = vsub.f32 %v819, %v1587
    %v1589 = vsub.f32 %v1588, %v840
    %v1590 = vmax.f32 %v1589, 0.0
    %v1591 = vand.u32 2147483647, %v1589
    %v1592 = vsub.f32 0.0, %v1591
    %v1593 = vmul.f32 %v1592, 1.442695
    %v1594 = vpow.pop %v1593
    %v1595 = vadd.f32 %v1594, 1.0
    %v1596 = vlog2.pop %v1595
    %v1597 = vmul.f32 %v1596, 0.6931472
    %v1598 = vmul.f32 -0.5, %v1594
    %v1599 = vadd.f32 %v1598, 1.0
    %v1600 = vmul.f32 %v1599, %v1594
    %v1601 = vand.u32 2147483647, %v1594
    %vm1602 = vcmp.lt.f32.partialorder %v1601, 0.0004427343
    %v1603 = vsel %vm1602, %v1600, %v1597
    %v1604 = vadd.f32 %v1590, %v1603
    %v1605 = vadd.f32 %v840, %v1604
    %v1606 = vmul.f32 %v1605, 1.442695
    %v1607 = vpow.pop %v1606
    %v1608 = vsel %vm109, %v1607, %v1569
    %s1609 = scalar_lea.vmem [#allocation13], 8
    %1610 = vst.msk [vmem:[%s1609] sm:$0xff] %vm861, %v1608
    %s1611 = scalar_lea.vmem [#allocation2], 16
    %v1612 = vld [vmem:[%s1611] sm:$0xff]
    %s1613 = scalar_lea.vmem [#allocation5], 64
    %v1614 = vld [vmem:[%s1613] sm:$0xff]
    %v1615 = vld [vmem:[%s1613 + $0x8] sm:$0xff]
    %v1616 = vld [vmem:[%s1613 + $0x10] sm:$0x3f]
    %v1617 = vld [vmem:[%s1613 + $0x18] sm:$0x3f]
    %s1618 = scalar_lea.vmem [#allocation8], 16
    %v1619 = vld [vmem:[%s1618] ss:$4 sm:$0x3]
    %v1621 = vlaneseq
    %v1622 = vshrl.u32 %v1621, 7
    %v1623 = vsub.s32 0, %v1622
    %v1624 = vrot.slane %v1619, %v1623
    %v1625 = vlaneseq
    %v1626 = vshrl.u32 %v1625, 7
    %v1627 = vsub.s32 1, %v1626
    %v1628 = vrot.slane %v1619, %v1627
    %v1632 = vsel %vm127, %v1612, 0
    %v1635 = vsel %vm131, %v1616, 0
    %v1638 = vsel %vm131, %v1617, 0
    %1640 = vmatprep.subr.mxu0 0.0
    %1641 = vmatpush1.msra.mxu0 0.0
    %1642 = vmatprep.subr.mxu0 0.0
    %1643 = vmatpush1.msra.mxu0 0.0
    %1644 = vmatprep.subr.mxu0 0.0
    %1645 = vmatpush1.msra.mxu0 0.0
    %1646 = vmatprep.subr.mxu0 0.0
    %1647 = vmatpush1.msra.mxu0 0.0
    %1648 = vmatprep.subr.mxu0 0.0
    %1649 = vmatpush1.msra.mxu0 0.0
    %1650 = vmatprep.subr.mxu0 0.0
    %1651 = vmatpush1.msra.mxu0 0.0
    %1652 = vmatprep.subr.mxu0 0.0
    %1653 = vmatpush1.msra.mxu0 0.0
    %1654 = vmatprep.subr.mxu0 0.0
    %1655 = vmatpush1.msra.mxu0 0.0
    %1656 = vmatprep.subr.mxu0 0.0
    %1657 = vmatpush1.msra.mxu0 0.0
    %1658 = vmatprep.subr.mxu0 0.0
    %1659 = vmatpush1.msra.mxu0 0.0
    %1660 = vmatprep.subr.mxu0 0.0
    %1661 = vmatpush1.msra.mxu0 0.0
    %1662 = vmatprep.subr.mxu0 0.0
    %1663 = vmatpush1.msra.mxu0 0.0
    %1664 = vmatprep.subr.mxu0 0.0
    %1665 = vmatpush1.msra.mxu0 0.0
    %1666 = vmatprep.subr.mxu0 0.0
    %1667 = vmatpush1.msra.mxu0 0.0
    %1668 = vmatprep.subr.mxu0 %v1638
    %1669 = vmatpush1.msra.mxu0 %v1635
    %1670 = vmatprep.subr.mxu0 %v1615
    %1671 = vmatpush1.msra.mxu0 %v1614
    %1672 = vmatprep.subr.mxu0 0.0
    %1673 = vmatpush2.msra.mxu0 0.0
    %1674 = vmatprep.subr.mxu0 0.0
    %1675 = vmatpush2.msra.mxu0 0.0
    %1676 = vmatprep.subr.mxu0 0.0
    %1677 = vmatpush2.msra.mxu0 0.0
    %1678 = vmatprep.subr.mxu0 0.0
    %1679 = vmatpush2.msra.mxu0 0.0
    %1680 = vmatprep.subr.mxu0 0.0
    %1681 = vmatpush2.msra.mxu0 0.0
    %1682 = vmatprep.subr.mxu0 0.0
    %1683 = vmatpush2.msra.mxu0 0.0
    %1684 = vmatprep.subr.mxu0 0.0
    %1685 = vmatpush2.msra.mxu0 0.0
    %1686 = vmatprep.subr.mxu0 0.0
    %1687 = vmatpush2.msra.mxu0 0.0
    %1688 = vmatprep.subr.mxu0 0.0
    %1689 = vmatpush2.msra.mxu0 0.0
    %1690 = vmatprep.subr.mxu0 0.0
    %1691 = vmatpush2.msra.mxu0 0.0
    %1692 = vmatprep.subr.mxu0 0.0
    %1693 = vmatpush2.msra.mxu0 0.0
    %1694 = vmatprep.subr.mxu0 0.0
    %1695 = vmatpush2.msra.mxu0 0.0
    %1696 = vmatprep.subr.mxu0 0.0
    %1697 = vmatpush2.msra.mxu0 0.0
    %1698 = vmatprep.subr.mxu0 0.0
    %1699 = vmatpush2.msra.mxu0 0.0
    %1700 = vmatprep.subr.mxu0 0.0
    %1701 = vmatpush2.msra.mxu0 0.0
    %1702 = vmatprep.subr.mxu0 0.0
    %1703 = vmatpush2.msra.mxu0 0.0
    %1704 = vmatprep.mubr.f32.mxu0 0.0
    %1705 = vmatmul.mubr.f32.gmra.mxu0 %v1632
    %v1706 = vpop.f32.mrf.mxu0
    %v1707 = vadd.f32 %v1624, %v1706
    %v1708 = vpop.f32.mrf.mxu0
    %v1709 = vadd.f32 %v1628, %v1708
    %1710 = vdwg.mxu0
    %v1711 = vsub.f32 0.0, %v1707
    %v1712 = vsub.f32 0.0, %v1709
    %v1713 = vmul.f32 %v1711, 1.442695
    %v1714 = vpow.pop %v1713
    %v1715 = vmul.f32 %v1712, 1.442695
    %v1716 = vpow.pop %v1715
    %v1717 = vadd.f32 %v1714, 1.0
    %v1718 = vadd.f32 %v1716, 1.0
    %v1719 = vrcp.pop %v1717
    %v1720 = vmul.f32 1.0, %v1719
    %v1721 = vrcp.pop %v1718
    %v1722 = vmul.f32 1.0, %v1721
    %v1723 = vmul.f32 %v1707, %v1720
    %v1724 = vmul.f32 %v1709, %v1722
    %s1725 = scalar_lea.vmem [#allocation7], 3072
    %v1726 = vld [vmem:[%s1725] sm:$0xff]
    %v1727 = vld [vmem:[%s1725 + $0x8] sm:$0xff]
    %v1728 = vld [vmem:[%s1725 + $0x30] sm:$0xff]
    %v1729 = vld [vmem:[%s1725 + $0x38] sm:$0xff]
    %v1730 = vld [vmem:[%s1725 + $0x60] sm:$0xff]
    %v1731 = vld [vmem:[%s1725 + $0x68] sm:$0xff]
    %v1732 = vld [vmem:[%s1725 + $0x90] sm:$0xff]
    %v1733 = vld [vmem:[%s1725 + $0x98] sm:$0xff]
    %v1734 = vld [vmem:[%s1725 + $0xc0] sm:$0xff]
    %v1735 = vld [vmem:[%s1725 + $0xc8] sm:$0xff]
    %v1736 = vld [vmem:[%s1725 + $0xf0] sm:$0xff]
    %v1737 = vld [vmem:[%s1725 + $0xf8] sm:$0xff]
    %v1738 = vld [vmem:[%s1725 + $0x120] sm:$0xff]
    %v1739 = vld [vmem:[%s1725 + $0x128] sm:$0xff]
    %v1740 = vld [vmem:[%s1725 + $0x150] sm:$0xff]
    %v1741 = vld [vmem:[%s1725 + $0x158] sm:$0xff]
    %v1742 = vld [vmem:[%s1725 + $0x180] sm:$0xff]
    %v1743 = vld [vmem:[%s1725 + $0x188] sm:$0xff]
    %v1744 = vld [vmem:[%s1725 + $0x1b0] sm:$0xff]
    %v1745 = vld [vmem:[%s1725 + $0x1b8] sm:$0xff]
    %v1746 = vld [vmem:[%s1725 + $0x1e0] sm:$0xff]
    %v1747 = vld [vmem:[%s1725 + $0x1e8] sm:$0xff]
    %v1748 = vld [vmem:[%s1725 + $0x210] sm:$0xff]
    %v1749 = vld [vmem:[%s1725 + $0x218] sm:$0xff]
    %v1750 = vld [vmem:[%s1725 + $0x240] sm:$0xff]
    %v1751 = vld [vmem:[%s1725 + $0x248] sm:$0xff]
    %v1752 = vld [vmem:[%s1725 + $0x270] sm:$0xff]
    %v1753 = vld [vmem:[%s1725 + $0x278] sm:$0xff]
    %v1754 = vld [vmem:[%s1725 + $0x2a0] sm:$0xff]
    %v1755 = vld [vmem:[%s1725 + $0x2a8] sm:$0xff]
    %v1756 = vld [vmem:[%s1725 + $0x2d0] sm:$0xff]
    %v1757 = vld [vmem:[%s1725 + $0x2d8] sm:$0xff]
    %v1758 = vld [vmem:[%s1725 + $0x300] sm:$0xff]
    %v1759 = vld [vmem:[%s1725 + $0x308] sm:$0xff]
    %v1760 = vld [vmem:[%s1725 + $0x330] sm:$0xff]
    %v1761 = vld [vmem:[%s1725 + $0x338] sm:$0xff]
    %v1762 = vld [vmem:[%s1725 + $0x360] sm:$0xff]
    %v1763 = vld [vmem:[%s1725 + $0x368] sm:$0xff]
    %v1764 = vld [vmem:[%s1725 + $0x390] sm:$0xff]
    %v1765 = vld [vmem:[%s1725 + $0x398] sm:$0xff]
    %v1766 = vld [vmem:[%s1725 + $0x3c0] sm:$0xff]
    %v1767 = vld [vmem:[%s1725 + $0x3c8] sm:$0xff]
    %v1768 = vld [vmem:[%s1725 + $0x3f0] sm:$0xff]
    %v1769 = vld [vmem:[%s1725 + $0x3f8] sm:$0xff]
    %v1770 = vld [vmem:[%s1725 + $0x420] sm:$0xff]
    %v1771 = vld [vmem:[%s1725 + $0x428] sm:$0xff]
    %v1772 = vld [vmem:[%s1725 + $0x450] sm:$0xff]
    %v1773 = vld [vmem:[%s1725 + $0x458] sm:$0xff]
    %v1774 = vld [vmem:[%s1725 + $0x480] sm:$0xff]
    %v1775 = vld [vmem:[%s1725 + $0x488] sm:$0xff]
    %v1776 = vld [vmem:[%s1725 + $0x4b0] sm:$0xff]
    %v1777 = vld [vmem:[%s1725 + $0x4b8] sm:$0xff]
    %v1778 = vld [vmem:[%s1725 + $0x4e0] sm:$0xff]
    %v1779 = vld [vmem:[%s1725 + $0x4e8] sm:$0xff]
    %v1780 = vld [vmem:[%s1725 + $0x510] sm:$0xff]
    %v1781 = vld [vmem:[%s1725 + $0x518] sm:$0xff]
    %v1782 = vld [vmem:[%s1725 + $0x540] sm:$0xff]
    %v1783 = vld [vmem:[%s1725 + $0x548] sm:$0xff]
    %v1784 = vld [vmem:[%s1725 + $0x570] sm:$0xff]
    %v1785 = vld [vmem:[%s1725 + $0x578] sm:$0xff]
    %v1786 = vld [vmem:[%s1725 + $0x5a0] sm:$0xff]
    %v1787 = vld [vmem:[%s1725 + $0x5a8] sm:$0xff]
    %v1788 = vld [vmem:[%s1725 + $0x5d0] sm:$0xff]
    %v1789 = vld [vmem:[%s1725 + $0x5d8] sm:$0xff]
    %s1790 = scalar_lea.vmem %s1618, 1 [#allocation8]
    %v1791 = vld [vmem:[%s1790] ss:$4 sm:$0x3]
    %v1793 = vlaneseq
    %v1794 = vshrl.u32 %v1793, 7
    %v1795 = vsub.s32 0, %v1794
    %v1796 = vrot.slane %v1791, %v1795
    %v1797 = vlaneseq
    %v1798 = vshrl.u32 %v1797, 7
    %v1799 = vsub.s32 1, %v1798
    %v1800 = vrot.slane %v1791, %v1799
    %1803 = vmatprep.subr.mxu0 %v1757
    %1804 = vmatpush1.msra.mxu0 %v1756
    %1805 = vmatprep.subr.mxu0 %v1755
    %1806 = vmatpush1.msra.mxu0 %v1754
    %1807 = vmatprep.subr.mxu0 %v1753
    %1808 = vmatpush1.msra.mxu0 %v1752
    %1809 = vmatprep.subr.mxu0 %v1751
    %1810 = vmatpush1.msra.mxu0 %v1750
    %1811 = vmatprep.subr.mxu0 %v1749
    %1812 = vmatpush1.msra.mxu0 %v1748
    %1813 = vmatprep.subr.mxu0 %v1747
    %1814 = vmatpush1.msra.mxu0 %v1746
    %1815 = vmatprep.subr.mxu0 %v1745
    %1816 = vmatpush1.msra.mxu0 %v1744
    %1817 = vmatprep.subr.mxu0 %v1743
    %1818 = vmatpush1.msra.mxu0 %v1742
    %1819 = vmatprep.subr.mxu0 %v1741
    %1820 = vmatpush1.msra.mxu0 %v1740
    %1821 = vmatprep.subr.mxu0 %v1739
    %1822 = vmatpush1.msra.mxu0 %v1738
    %1823 = vmatprep.subr.mxu0 %v1737
    %1824 = vmatpush1.msra.mxu0 %v1736
    %1825 = vmatprep.subr.mxu0 %v1735
    %1826 = vmatpush1.msra.mxu0 %v1734
    %1827 = vmatprep.subr.mxu0 %v1733
    %1828 = vmatpush1.msra.mxu0 %v1732
    %1829 = vmatprep.subr.mxu0 %v1731
    %1830 = vmatpush1.msra.mxu0 %v1730
    %1831 = vmatprep.subr.mxu0 %v1729
    %1832 = vmatpush1.msra.mxu0 %v1728
    %1833 = vmatprep.subr.mxu0 %v1727
    %1834 = vmatpush1.msra.mxu0 %v1726
    %1835 = vmatprep.subr.mxu0 %v1789
    %1836 = vmatpush2.msra.mxu0 %v1788
    %1837 = vmatprep.subr.mxu0 %v1787
    %1838 = vmatpush2.msra.mxu0 %v1786
    %1839 = vmatprep.subr.mxu0 %v1785
    %1840 = vmatpush2.msra.mxu0 %v1784
    %1841 = vmatprep.subr.mxu0 %v1783
    %1842 = vmatpush2.msra.mxu0 %v1782
    %1843 = vmatprep.subr.mxu0 %v1781
    %1844 = vmatpush2.msra.mxu0 %v1780
    %1845 = vmatprep.subr.mxu0 %v1779
    %1846 = vmatpush2.msra.mxu0 %v1778
    %1847 = vmatprep.subr.mxu0 %v1777
    %1848 = vmatpush2.msra.mxu0 %v1776
    %1849 = vmatprep.subr.mxu0 %v1775
    %1850 = vmatpush2.msra.mxu0 %v1774
    %1851 = vmatprep.subr.mxu0 %v1773
    %1852 = vmatpush2.msra.mxu0 %v1772
    %1853 = vmatprep.subr.mxu0 %v1771
    %1854 = vmatpush2.msra.mxu0 %v1770
    %1855 = vmatprep.subr.mxu0 %v1769
    %1856 = vmatpush2.msra.mxu0 %v1768
    %1857 = vmatprep.subr.mxu0 %v1767
    %1858 = vmatpush2.msra.mxu0 %v1766
    %1859 = vmatprep.subr.mxu0 %v1765
    %1860 = vmatpush2.msra.mxu0 %v1764
    %1861 = vmatprep.subr.mxu0 %v1763
    %1862 = vmatpush2.msra.mxu0 %v1762
    %1863 = vmatprep.subr.mxu0 %v1761
    %1864 = vmatpush2.msra.mxu0 %v1760
    %1865 = vmatprep.subr.mxu0 %v1759
    %1866 = vmatpush2.msra.mxu0 %v1758
    %1867 = vmatprep.mubr.f32.mxu0 %v1724
    %1868 = vmatmul.mubr.f32.gmra.mxu0 %v1723
    %v1869 = vpop.f32.mrf.mxu0
    %v1870 = vadd.f32 %v1796, %v1869
    %v1871 = vpop.f32.mrf.mxu0
    %v1872 = vadd.f32 %v1800, %v1871
    %1873 = vdwg.mxu0
    %v1874 = vsub.f32 0.0, %v1870
    %v1875 = vsub.f32 0.0, %v1872
    %v1876 = vmul.f32 %v1874, 1.442695
    %v1877 = vpow.pop %v1876
    %v1878 = vmul.f32 %v1875, 1.442695
    %v1879 = vpow.pop %v1878
    %v1880 = vadd.f32 %v1877, 1.0
    %v1881 = vadd.f32 %v1879, 1.0
    %v1882 = vrcp.pop %v1880
    %v1883 = vmul.f32 1.0, %v1882
    %v1884 = vrcp.pop %v1881
    %v1885 = vmul.f32 1.0, %v1884
    %v1886 = vmul.f32 %v1870, %v1883
    %v1887 = vmul.f32 %v1872, %v1885
    %v1888 = vld [vmem:[%s1725 + $0x10] sm:$0xff]
    %v1889 = vld [vmem:[%s1725 + $0x18] sm:$0xff]
    %v1890 = vld [vmem:[%s1725 + $0x40] sm:$0xff]
    %v1891 = vld [vmem:[%s1725 + $0x48] sm:$0xff]
    %v1892 = vld [vmem:[%s1725 + $0x70] sm:$0xff]
    %v1893 = vld [vmem:[%s1725 + $0x78] sm:$0xff]
    %v1894 = vld [vmem:[%s1725 + $0xa0] sm:$0xff]
    %v1895 = vld [vmem:[%s1725 + $0xa8] sm:$0xff]
    %v1896 = vld [vmem:[%s1725 + $0xd0] sm:$0xff]
    %v1897 = vld [vmem:[%s1725 + $0xd8] sm:$0xff]
    %v1898 = vld [vmem:[%s1725 + $0x100] sm:$0xff]
    %v1899 = vld [vmem:[%s1725 + $0x108] sm:$0xff]
    %v1900 = vld [vmem:[%s1725 + $0x130] sm:$0xff]
    %v1901 = vld [vmem:[%s1725 + $0x138] sm:$0xff]
    %v1902 = vld [vmem:[%s1725 + $0x160] sm:$0xff]
    %v1903 = vld [vmem:[%s1725 + $0x168] sm:$0xff]
    %v1904 = vld [vmem:[%s1725 + $0x190] sm:$0xff]
    %v1905 = vld [vmem:[%s1725 + $0x198] sm:$0xff]
    %v1906 = vld [vmem:[%s1725 + $0x1c0] sm:$0xff]
    %v1907 = vld [vmem:[%s1725 + $0x1c8] sm:$0xff]
    %v1908 = vld [vmem:[%s1725 + $0x1f0] sm:$0xff]
    %v1909 = vld [vmem:[%s1725 + $0x1f8] sm:$0xff]
    %v1910 = vld [vmem:[%s1725 + $0x220] sm:$0xff]
    %v1911 = vld [vmem:[%s1725 + $0x228] sm:$0xff]
    %v1912 = vld [vmem:[%s1725 + $0x250] sm:$0xff]
    %v1913 = vld [vmem:[%s1725 + $0x258] sm:$0xff]
    %v1914 = vld [vmem:[%s1725 + $0x280] sm:$0xff]
    %v1915 = vld [vmem:[%s1725 + $0x288] sm:$0xff]
    %v1916 = vld [vmem:[%s1725 + $0x2b0] sm:$0xff]
    %v1917 = vld [vmem:[%s1725 + $0x2b8] sm:$0xff]
    %v1918 = vld [vmem:[%s1725 + $0x2e0] sm:$0xff]
    %v1919 = vld [vmem:[%s1725 + $0x2e8] sm:$0xff]
    %v1920 = vld [vmem:[%s1725 + $0x310] sm:$0xff]
    %v1921 = vld [vmem:[%s1725 + $0x318] sm:$0xff]
    %v1922 = vld [vmem:[%s1725 + $0x340] sm:$0xff]
    %v1923 = vld [vmem:[%s1725 + $0x348] sm:$0xff]
    %v1924 = vld [vmem:[%s1725 + $0x370] sm:$0xff]
    %v1925 = vld [vmem:[%s1725 + $0x378] sm:$0xff]
    %v1926 = vld [vmem:[%s1725 + $0x3a0] sm:$0xff]
    %v1927 = vld [vmem:[%s1725 + $0x3a8] sm:$0xff]
    %v1928 = vld [vmem:[%s1725 + $0x3d0] sm:$0xff]
    %v1929 = vld [vmem:[%s1725 + $0x3d8] sm:$0xff]
    %v1930 = vld [vmem:[%s1725 + $0x400] sm:$0xff]
    %v1931 = vld [vmem:[%s1725 + $0x408] sm:$0xff]
    %v1932 = vld [vmem:[%s1725 + $0x430] sm:$0xff]
    %v1933 = vld [vmem:[%s1725 + $0x438] sm:$0xff]
    %v1934 = vld [vmem:[%s1725 + $0x460] sm:$0xff]
    %v1935 = vld [vmem:[%s1725 + $0x468] sm:$0xff]
    %v1936 = vld [vmem:[%s1725 + $0x490] sm:$0xff]
    %v1937 = vld [vmem:[%s1725 + $0x498] sm:$0xff]
    %v1938 = vld [vmem:[%s1725 + $0x4c0] sm:$0xff]
    %v1939 = vld [vmem:[%s1725 + $0x4c8] sm:$0xff]
    %v1940 = vld [vmem:[%s1725 + $0x4f0] sm:$0xff]
    %v1941 = vld [vmem:[%s1725 + $0x4f8] sm:$0xff]
    %v1942 = vld [vmem:[%s1725 + $0x520] sm:$0xff]
    %v1943 = vld [vmem:[%s1725 + $0x528] sm:$0xff]
    %v1944 = vld [vmem:[%s1725 + $0x550] sm:$0xff]
    %v1945 = vld [vmem:[%s1725 + $0x558] sm:$0xff]
    %v1946 = vld [vmem:[%s1725 + $0x580] sm:$0xff]
    %v1947 = vld [vmem:[%s1725 + $0x588] sm:$0xff]
    %v1948 = vld [vmem:[%s1725 + $0x5b0] sm:$0xff]
    %v1949 = vld [vmem:[%s1725 + $0x5b8] sm:$0xff]
    %v1950 = vld [vmem:[%s1725 + $0x5e0] sm:$0xff]
    %v1951 = vld [vmem:[%s1725 + $0x5e8] sm:$0xff]
    %s1952 = scalar_lea.vmem %s1618, 2 [#allocation8]
    %v1953 = vld [vmem:[%s1952] ss:$4 sm:$0x3]
    %v1955 = vlaneseq
    %v1956 = vshrl.u32 %v1955, 7
    %v1957 = vsub.s32 0, %v1956
    %v1958 = vrot.slane %v1953, %v1957
    %v1959 = vlaneseq
    %v1960 = vshrl.u32 %v1959, 7
    %v1961 = vsub.s32 1, %v1960
    %v1962 = vrot.slane %v1953, %v1961
    %1965 = vmatprep.subr.mxu0 %v1919
    %1966 = vmatpush1.msra.mxu0 %v1918
    %1967 = vmatprep.subr.mxu0 %v1917
    %1968 = vmatpush1.msra.mxu0 %v1916
    %1969 = vmatprep.subr.mxu0 %v1915
    %1970 = vmatpush1.msra.mxu0 %v1914
    %1971 = vmatprep.subr.mxu0 %v1913
    %1972 = vmatpush1.msra.mxu0 %v1912
    %1973 = vmatprep.subr.mxu0 %v1911
    %1974 = vmatpush1.msra.mxu0 %v1910
    %1975 = vmatprep.subr.mxu0 %v1909
    %1976 = vmatpush1.msra.mxu0 %v1908
    %1977 = vmatprep.subr.mxu0 %v1907
    %1978 = vmatpush1.msra.mxu0 %v1906
    %1979 = vmatprep.subr.mxu0 %v1905
    %1980 = vmatpush1.msra.mxu0 %v1904
    %1981 = vmatprep.subr.mxu0 %v1903
    %1982 = vmatpush1.msra.mxu0 %v1902
    %1983 = vmatprep.subr.mxu0 %v1901
    %1984 = vmatpush1.msra.mxu0 %v1900
    %1985 = vmatprep.subr.mxu0 %v1899
    %1986 = vmatpush1.msra.mxu0 %v1898
    %1987 = vmatprep.subr.mxu0 %v1897
    %1988 = vmatpush1.msra.mxu0 %v1896
    %1989 = vmatprep.subr.mxu0 %v1895
    %1990 = vmatpush1.msra.mxu0 %v1894
    %1991 = vmatprep.subr.mxu0 %v1893
    %1992 = vmatpush1.msra.mxu0 %v1892
    %1993 = vmatprep.subr.mxu0 %v1891
    %1994 = vmatpush1.msra.mxu0 %v1890
    %1995 = vmatprep.subr.mxu0 %v1889
    %1996 = vmatpush1.msra.mxu0 %v1888
    %1997 = vmatprep.subr.mxu0 %v1951
    %1998 = vmatpush2.msra.mxu0 %v1950
    %1999 = vmatprep.subr.mxu0 %v1949
    %2000 = vmatpush2.msra.mxu0 %v1948
    %2001 = vmatprep.subr.mxu0 %v1947
    %2002 = vmatpush2.msra.mxu0 %v1946
    %2003 = vmatprep.subr.mxu0 %v1945
    %2004 = vmatpush2.msra.mxu0 %v1944
    %2005 = vmatprep.subr.mxu0 %v1943
    %2006 = vmatpush2.msra.mxu0 %v1942
    %2007 = vmatprep.subr.mxu0 %v1941
    %2008 = vmatpush2.msra.mxu0 %v1940
    %2009 = vmatprep.subr.mxu0 %v1939
    %2010 = vmatpush2.msra.mxu0 %v1938
    %2011 = vmatprep.subr.mxu0 %v1937
    %2012 = vmatpush2.msra.mxu0 %v1936
    %2013 = vmatprep.subr.mxu0 %v1935
    %2014 = vmatpush2.msra.mxu0 %v1934
    %2015 = vmatprep.subr.mxu0 %v1933
    %2016 = vmatpush2.msra.mxu0 %v1932
    %2017 = vmatprep.subr.mxu0 %v1931
    %2018 = vmatpush2.msra.mxu0 %v1930
    %2019 = vmatprep.subr.mxu0 %v1929
    %2020 = vmatpush2.msra.mxu0 %v1928
    %2021 = vmatprep.subr.mxu0 %v1927
    %2022 = vmatpush2.msra.mxu0 %v1926
    %2023 = vmatprep.subr.mxu0 %v1925
    %2024 = vmatpush2.msra.mxu0 %v1924
    %2025 = vmatprep.subr.mxu0 %v1923
    %2026 = vmatpush2.msra.mxu0 %v1922
    %2027 = vmatprep.subr.mxu0 %v1921
    %2028 = vmatpush2.msra.mxu0 %v1920
    %2029 = vmatprep.mubr.f32.mxu0 %v1887
    %2030 = vmatmul.mubr.f32.gmra.mxu0 %v1886
    %v2031 = vpop.f32.mrf.mxu0
    %v2032 = vadd.f32 %v1958, %v2031
    %v2033 = vpop.f32.mrf.mxu0
    %v2034 = vadd.f32 %v1962, %v2033
    %2035 = vdwg.mxu0
    %v2036 = vsub.f32 0.0, %v2032
    %v2037 = vsub.f32 0.0, %v2034
    %v2038 = vmul.f32 %v2036, 1.442695
    %v2039 = vpow.pop %v2038
    %v2040 = vmul.f32 %v2037, 1.442695
    %v2041 = vpow.pop %v2040
    %v2042 = vadd.f32 %v2039, 1.0
    %v2043 = vadd.f32 %v2041, 1.0
    %v2044 = vrcp.pop %v2042
    %v2045 = vmul.f32 1.0, %v2044
    %v2046 = vrcp.pop %v2043
    %v2047 = vmul.f32 1.0, %v2046
    %v2048 = vmul.f32 %v2032, %v2045
    %v2049 = vmul.f32 %v2034, %v2047
    %v2050 = vld [vmem:[%s1725 + $0x20] sm:$0xff]
    %v2051 = vld [vmem:[%s1725 + $0x28] sm:$0xff]
    %v2052 = vld [vmem:[%s1725 + $0x50] sm:$0xff]
    %v2053 = vld [vmem:[%s1725 + $0x58] sm:$0xff]
    %v2054 = vld [vmem:[%s1725 + $0x80] sm:$0xff]
    %v2055 = vld [vmem:[%s1725 + $0x88] sm:$0xff]
    %v2056 = vld [vmem:[%s1725 + $0xb0] sm:$0xff]
    %v2057 = vld [vmem:[%s1725 + $0xb8] sm:$0xff]
    %v2058 = vld [vmem:[%s1725 + $0xe0] sm:$0xff]
    %v2059 = vld [vmem:[%s1725 + $0xe8] sm:$0xff]
    %v2060 = vld [vmem:[%s1725 + $0x110] sm:$0xff]
    %v2061 = vld [vmem:[%s1725 + $0x118] sm:$0xff]
    %v2062 = vld [vmem:[%s1725 + $0x140] sm:$0xff]
    %v2063 = vld [vmem:[%s1725 + $0x148] sm:$0xff]
    %v2064 = vld [vmem:[%s1725 + $0x170] sm:$0xff]
    %v2065 = vld [vmem:[%s1725 + $0x178] sm:$0xff]
    %v2066 = vld [vmem:[%s1725 + $0x1a0] sm:$0xff]
    %v2067 = vld [vmem:[%s1725 + $0x1a8] sm:$0xff]
    %v2068 = vld [vmem:[%s1725 + $0x1d0] sm:$0xff]
    %v2069 = vld [vmem:[%s1725 + $0x1d8] sm:$0xff]
    %v2070 = vld [vmem:[%s1725 + $0x200] sm:$0xff]
    %v2071 = vld [vmem:[%s1725 + $0x208] sm:$0xff]
    %v2072 = vld [vmem:[%s1725 + $0x230] sm:$0xff]
    %v2073 = vld [vmem:[%s1725 + $0x238] sm:$0xff]
    %v2074 = vld [vmem:[%s1725 + $0x260] sm:$0xff]
    %v2075 = vld [vmem:[%s1725 + $0x268] sm:$0xff]
    %v2076 = vld [vmem:[%s1725 + $0x290] sm:$0xff]
    %v2077 = vld [vmem:[%s1725 + $0x298] sm:$0xff]
    %v2078 = vld [vmem:[%s1725 + $0x2c0] sm:$0xff]
    %v2079 = vld [vmem:[%s1725 + $0x2c8] sm:$0xff]
    %v2080 = vld [vmem:[%s1725 + $0x2f0] sm:$0xff]
    %v2081 = vld [vmem:[%s1725 + $0x2f8] sm:$0xff]
    %v2082 = vld [vmem:[%s1725 + $0x320] sm:$0xff]
    %v2083 = vld [vmem:[%s1725 + $0x328] sm:$0xff]
    %v2084 = vld [vmem:[%s1725 + $0x350] sm:$0xff]
    %v2085 = vld [vmem:[%s1725 + $0x358] sm:$0xff]
    %v2086 = vld [vmem:[%s1725 + $0x380] sm:$0xff]
    %v2087 = vld [vmem:[%s1725 + $0x388] sm:$0xff]
    %v2088 = vld [vmem:[%s1725 + $0x3b0] sm:$0xff]
    %v2089 = vld [vmem:[%s1725 + $0x3b8] sm:$0xff]
    %v2090 = vld [vmem:[%s1725 + $0x3e0] sm:$0xff]
    %v2091 = vld [vmem:[%s1725 + $0x3e8] sm:$0xff]
    %v2092 = vld [vmem:[%s1725 + $0x410] sm:$0xff]
    %v2093 = vld [vmem:[%s1725 + $0x418] sm:$0xff]
    %v2094 = vld [vmem:[%s1725 + $0x440] sm:$0xff]
    %v2095 = vld [vmem:[%s1725 + $0x448] sm:$0xff]
    %v2096 = vld [vmem:[%s1725 + $0x470] sm:$0xff]
    %v2097 = vld [vmem:[%s1725 + $0x478] sm:$0xff]
    %v2098 = vld [vmem:[%s1725 + $0x4a0] sm:$0xff]
    %v2099 = vld [vmem:[%s1725 + $0x4a8] sm:$0xff]
    %v2100 = vld [vmem:[%s1725 + $0x4d0] sm:$0xff]
    %v2101 = vld [vmem:[%s1725 + $0x4d8] sm:$0xff]
    %v2102 = vld [vmem:[%s1725 + $0x500] sm:$0xff]
    %v2103 = vld [vmem:[%s1725 + $0x508] sm:$0xff]
    %v2104 = vld [vmem:[%s1725 + $0x530] sm:$0xff]
    %v2105 = vld [vmem:[%s1725 + $0x538] sm:$0xff]
    %v2106 = vld [vmem:[%s1725 + $0x560] sm:$0xff]
    %v2107 = vld [vmem:[%s1725 + $0x568] sm:$0xff]
    %v2108 = vld [vmem:[%s1725 + $0x590] sm:$0xff]
    %v2109 = vld [vmem:[%s1725 + $0x598] sm:$0xff]
    %v2110 = vld [vmem:[%s1725 + $0x5c0] sm:$0xff]
    %v2111 = vld [vmem:[%s1725 + $0x5c8] sm:$0xff]
    %v2112 = vld [vmem:[%s1725 + $0x5f0] sm:$0xff]
    %v2113 = vld [vmem:[%s1725 + $0x5f8] sm:$0xff]
    %s2114 = scalar_lea.vmem %s1618, 3 [#allocation8]
    %v2115 = vld [vmem:[%s2114] ss:$4 sm:$0x3]
    %v2117 = vlaneseq
    %v2118 = vshrl.u32 %v2117, 7
    %v2119 = vsub.s32 0, %v2118
    %v2120 = vrot.slane %v2115, %v2119
    %v2121 = vlaneseq
    %v2122 = vshrl.u32 %v2121, 7
    %v2123 = vsub.s32 1, %v2122
    %v2124 = vrot.slane %v2115, %v2123
    %2127 = vmatprep.subr.mxu0 %v2081
    %2128 = vmatpush1.msra.mxu0 %v2080
    %2129 = vmatprep.subr.mxu0 %v2079
    %2130 = vmatpush1.msra.mxu0 %v2078
    %2131 = vmatprep.subr.mxu0 %v2077
    %2132 = vmatpush1.msra.mxu0 %v2076
    %2133 = vmatprep.subr.mxu0 %v2075
    %2134 = vmatpush1.msra.mxu0 %v2074
    %2135 = vmatprep.subr.mxu0 %v2073
    %2136 = vmatpush1.msra.mxu0 %v2072
    %2137 = vmatprep.subr.mxu0 %v2071
    %2138 = vmatpush1.msra.mxu0 %v2070
    %2139 = vmatprep.subr.mxu0 %v2069
    %2140 = vmatpush1.msra.mxu0 %v2068
    %2141 = vmatprep.subr.mxu0 %v2067
    %2142 = vmatpush1.msra.mxu0 %v2066
    %2143 = vmatprep.subr.mxu0 %v2065
    %2144 = vmatpush1.msra.mxu0 %v2064
    %2145 = vmatprep.subr.mxu0 %v2063
    %2146 = vmatpush1.msra.mxu0 %v2062
    %2147 = vmatprep.subr.mxu0 %v2061
    %2148 = vmatpush1.msra.mxu0 %v2060
    %2149 = vmatprep.subr.mxu0 %v2059
    %2150 = vmatpush1.msra.mxu0 %v2058
    %2151 = vmatprep.subr.mxu0 %v2057
    %2152 = vmatpush1.msra.mxu0 %v2056
    %2153 = vmatprep.subr.mxu0 %v2055
    %2154 = vmatpush1.msra.mxu0 %v2054
    %2155 = vmatprep.subr.mxu0 %v2053
    %2156 = vmatpush1.msra.mxu0 %v2052
    %2157 = vmatprep.subr.mxu0 %v2051
    %2158 = vmatpush1.msra.mxu0 %v2050
    %2159 = vmatprep.subr.mxu0 %v2113
    %2160 = vmatpush2.msra.mxu0 %v2112
    %2161 = vmatprep.subr.mxu0 %v2111
    %2162 = vmatpush2.msra.mxu0 %v2110
    %2163 = vmatprep.subr.mxu0 %v2109
    %2164 = vmatpush2.msra.mxu0 %v2108
    %2165 = vmatprep.subr.mxu0 %v2107
    %2166 = vmatpush2.msra.mxu0 %v2106
    %2167 = vmatprep.subr.mxu0 %v2105
    %2168 = vmatpush2.msra.mxu0 %v2104
    %2169 = vmatprep.subr.mxu0 %v2103
    %2170 = vmatpush2.msra.mxu0 %v2102
    %2171 = vmatprep.subr.mxu0 %v2101
    %2172 = vmatpush2.msra.mxu0 %v2100
    %2173 = vmatprep.subr.mxu0 %v2099
    %2174 = vmatpush2.msra.mxu0 %v2098
    %2175 = vmatprep.subr.mxu0 %v2097
    %2176 = vmatpush2.msra.mxu0 %v2096
    %2177 = vmatprep.subr.mxu0 %v2095
    %2178 = vmatpush2.msra.mxu0 %v2094
    %2179 = vmatprep.subr.mxu0 %v2093
    %2180 = vmatpush2.msra.mxu0 %v2092
    %2181 = vmatprep.subr.mxu0 %v2091
    %2182 = vmatpush2.msra.mxu0 %v2090
    %2183 = vmatprep.subr.mxu0 %v2089
    %2184 = vmatpush2.msra.mxu0 %v2088
    %2185 = vmatprep.subr.mxu0 %v2087
    %2186 = vmatpush2.msra.mxu0 %v2086
    %2187 = vmatprep.subr.mxu0 %v2085
    %2188 = vmatpush2.msra.mxu0 %v2084
    %2189 = vmatprep.subr.mxu0 %v2083
    %2190 = vmatpush2.msra.mxu0 %v2082
    %2191 = vmatprep.mubr.f32.mxu0 %v2049
    %2192 = vmatmul.mubr.f32.gmra.mxu0 %v2048
    %v2193 = vpop.f32.mrf.mxu0
    %v2194 = vadd.f32 %v2120, %v2193
    %v2195 = vpop.f32.mrf.mxu0
    %v2196 = vadd.f32 %v2124, %v2195
    %2197 = vdwg.mxu0
    %v2198 = vsub.f32 0.0, %v2194
    %v2199 = vsub.f32 0.0, %v2196
    %v2200 = vmul.f32 %v2198, 1.442695
    %v2201 = vpow.pop %v2200
    %v2202 = vmul.f32 %v2199, 1.442695
    %v2203 = vpow.pop %v2202
    %v2204 = vadd.f32 %v2201, 1.0
    %v2205 = vadd.f32 %v2203, 1.0
    %v2206 = vrcp.pop %v2204
    %v2207 = vmul.f32 1.0, %v2206
    %v2208 = vrcp.pop %v2205
    %v2209 = vmul.f32 1.0, %v2208
    %v2210 = vmul.f32 %v2194, %v2207
    %v2211 = vmul.f32 %v2196, %v2209
    %s2212 = scalar_lea.vmem %s3, 512
    %v2213 = vld [vmem:[%s2212] sm:$0xff]
    %v2214 = vld [vmem:[%s2212 + $0x8] sm:$0xff]
    %v2215 = vld [vmem:[%s2212 + $0x10] sm:$0xff]
    %v2216 = vld [vmem:[%s2212 + $0x18] sm:$0xff]
    %v2217 = vld [vmem:[%s2212 + $0x20] sm:$0xff]
    %v2218 = vld [vmem:[%s2212 + $0x28] sm:$0xff]
    %v2219 = vld [vmem:[%s2212 + $0x30] sm:$0xff]
    %v2220 = vld [vmem:[%s2212 + $0x38] sm:$0xff]
    %v2221 = vld [vmem:[%s2212 + $0x40] sm:$0xff]
    %v2222 = vld [vmem:[%s2212 + $0x48] sm:$0xff]
    %v2223 = vld [vmem:[%s2212 + $0x50] sm:$0xff]
    %v2224 = vld [vmem:[%s2212 + $0x58] sm:$0xff]
    %v2225 = vld [vmem:[%s2212 + $0x60] sm:$0xff]
    %v2226 = vld [vmem:[%s2212 + $0x68] sm:$0xff]
    %v2227 = vld [vmem:[%s2212 + $0x70] sm:$0xff]
    %v2228 = vld [vmem:[%s2212 + $0x78] sm:$0xff]
    %v2229 = vld [vmem:[%s2212 + $0x80] sm:$0xff]
    %v2230 = vld [vmem:[%s2212 + $0x88] sm:$0xff]
    %v2231 = vld [vmem:[%s2212 + $0x90] sm:$0xff]
    %v2232 = vld [vmem:[%s2212 + $0x98] sm:$0xff]
    %v2233 = vld [vmem:[%s2212 + $0xa0] sm:$0xff]
    %v2234 = vld [vmem:[%s2212 + $0xa8] sm:$0xff]
    %v2235 = vld [vmem:[%s2212 + $0xb0] sm:$0xff]
    %v2236 = vld [vmem:[%s2212 + $0xb8] sm:$0xff]
    %v2237 = vld [vmem:[%s2212 + $0xc0] sm:$0xff]
    %v2238 = vld [vmem:[%s2212 + $0xc8] sm:$0xff]
    %v2239 = vld [vmem:[%s2212 + $0xd0] sm:$0xff]
    %v2240 = vld [vmem:[%s2212 + $0xd8] sm:$0xff]
    %v2241 = vld [vmem:[%s2212 + $0xe0] sm:$0xff]
    %v2242 = vld [vmem:[%s2212 + $0xe8] sm:$0xff]
    %v2243 = vld [vmem:[%s2212 + $0xf0] sm:$0xff]
    %v2244 = vld [vmem:[%s2212 + $0xf8] sm:$0xff]
    %v2245 = vld [vmem:[#allocation10 + $0x2] sm:$0x1]
    %v2246 = vlaneseq
    %v2247 = vshrl.u32 %v2246, 7
    %v2248 = vsub.s32 0, %v2247
    %v2249 = vrot.slane %v2245, %v2248
    %2250 = vmatprep.subr.mxu0 0.0
    %2251 = vmatpush1.msra.mxu0 %v2228
    %2252 = vmatprep.subr.mxu0 0.0
    %2253 = vmatpush1.msra.mxu0 %v2227
    %2254 = vmatprep.subr.mxu0 0.0
    %2255 = vmatpush1.msra.mxu0 %v2226
    %2256 = vmatprep.subr.mxu0 0.0
    %2257 = vmatpush1.msra.mxu0 %v2225
    %2258 = vmatprep.subr.mxu0 0.0
    %2259 = vmatpush1.msra.mxu0 %v2224
    %2260 = vmatprep.subr.mxu0 0.0
    %2261 = vmatpush1.msra.mxu0 %v2223
    %2262 = vmatprep.subr.mxu0 0.0
    %2263 = vmatpush1.msra.mxu0 %v2222
    %2264 = vmatprep.subr.mxu0 0.0
    %2265 = vmatpush1.msra.mxu0 %v2221
    %2266 = vmatprep.subr.mxu0 0.0
    %2267 = vmatpush1.msra.mxu0 %v2220
    %2268 = vmatprep.subr.mxu0 0.0
    %2269 = vmatpush1.msra.mxu0 %v2219
    %2270 = vmatprep.subr.mxu0 0.0
    %2271 = vmatpush1.msra.mxu0 %v2218
    %2272 = vmatprep.subr.mxu0 0.0
    %2273 = vmatpush1.msra.mxu0 %v2217
    %2274 = vmatprep.subr.mxu0 0.0
    %2275 = vmatpush1.msra.mxu0 %v2216
    %2276 = vmatprep.subr.mxu0 0.0
    %2277 = vmatpush1.msra.mxu0 %v2215
    %2278 = vmatprep.subr.mxu0 0.0
    %2279 = vmatpush1.msra.mxu0 %v2214
    %2280 = vmatprep.subr.mxu0 0.0
    %2281 = vmatpush1.msra.mxu0 %v2213
    %2282 = vmatprep.subr.mxu0 0.0
    %2283 = vmatpush2.msra.mxu0 %v2244
    %2284 = vmatprep.subr.mxu0 0.0
    %2285 = vmatpush2.msra.mxu0 %v2243
    %2286 = vmatprep.subr.mxu0 0.0
    %2287 = vmatpush2.msra.mxu0 %v2242
    %2288 = vmatprep.subr.mxu0 0.0
    %2289 = vmatpush2.msra.mxu0 %v2241
    %2290 = vmatprep.subr.mxu0 0.0
    %2291 = vmatpush2.msra.mxu0 %v2240
    %2292 = vmatprep.subr.mxu0 0.0
    %2293 = vmatpush2.msra.mxu0 %v2239
    %2294 = vmatprep.subr.mxu0 0.0
    %2295 = vmatpush2.msra.mxu0 %v2238
    %2296 = vmatprep.subr.mxu0 0.0
    %2297 = vmatpush2.msra.mxu0 %v2237
    %2298 = vmatprep.subr.mxu0 0.0
    %2299 = vmatpush2.msra.mxu0 %v2236
    %2300 = vmatprep.subr.mxu0 0.0
    %2301 = vmatpush2.msra.mxu0 %v2235
    %2302 = vmatprep.subr.mxu0 0.0
    %2303 = vmatpush2.msra.mxu0 %v2234
    %2304 = vmatprep.subr.mxu0 0.0
    %2305 = vmatpush2.msra.mxu0 %v2233
    %2306 = vmatprep.subr.mxu0 0.0
    %2307 = vmatpush2.msra.mxu0 %v2232
    %2308 = vmatprep.subr.mxu0 0.0
    %2309 = vmatpush2.msra.mxu0 %v2231
    %2310 = vmatprep.subr.mxu0 0.0
    %2311 = vmatpush2.msra.mxu0 %v2230
    %2312 = vmatprep.subr.mxu0 0.0
    %2313 = vmatpush2.msra.mxu0 %v2229
    %2314 = vmatprep.mubr.f32.mxu0 %v2211
    %2315 = vmatmul.mubr.f32.gmra.mxu0 %v2210
    %v2316 = vpop.f32.mrf.mxu0
    %v2317 = vadd.f32 %v2249, %v2316
    %v2318 = vpop.f32.mrf.mxu0
    %2319 = vdwg.mxu0
    %v2320 = vsub.f32 %v819, %v2317
    %v2321 = vmax.f32 %v2320, 0.0
    %v2322 = vand.u32 2147483647, %v2320
    %v2323 = vsub.f32 0.0, %v2322
    %v2324 = vmul.f32 %v2323, 1.442695
    %v2325 = vpow.pop %v2324
    %v2326 = vadd.f32 %v2325, 1.0
    %v2327 = vlog2.pop %v2326
    %v2328 = vmul.f32 %v2327, 0.6931472
    %v2329 = vmul.f32 -0.5, %v2325
    %v2330 = vadd.f32 %v2329, 1.0
    %v2331 = vmul.f32 %v2330, %v2325
    %v2332 = vand.u32 2147483647, %v2325
    %vm2333 = vcmp.lt.f32.partialorder %v2332, 0.0004427343
    %v2334 = vsel %vm2333, %v2331, %v2328
    %v2335 = vadd.f32 %v2321, %v2334
    %v2336 = vsub.f32 %v819, %v2335
    %v2337 = vsub.f32 %v2336, %v840
    %v2338 = vmax.f32 %v2337, 0.0
    %v2339 = vand.u32 2147483647, %v2337
    %v2340 = vsub.f32 0.0, %v2339
    %v2341 = vmul.f32 %v2340, 1.442695
    %v2342 = vpow.pop %v2341
    %v2343 = vadd.f32 %v2342, 1.0
    %v2344 = vlog2.pop %v2343
    %v2345 = vmul.f32 %v2344, 0.6931472
    %v2346 = vmul.f32 -0.5, %v2342
    %v2347 = vadd.f32 %v2346, 1.0
    %v2348 = vmul.f32 %v2347, %v2342
    %v2349 = vand.u32 2147483647, %v2342
    %vm2350 = vcmp.lt.f32.partialorder %v2349, 0.0004427343
    %v2351 = vsel %vm2350, %v2348, %v2345
    %v2352 = vadd.f32 %v2338, %v2351
    %v2353 = vadd.f32 %v840, %v2352
    %v2354 = vmul.f32 %v2353, 1.442695
    %v2355 = vpow.pop %v2354
    %v2356 = vsel %vm109, %v2355, %v2317
    %s2357 = scalar_lea.vmem [#allocation13], 16
    %2358 = vst.msk [vmem:[%s2357] sm:$0xff] %vm861, %v2356
    %s2359 = scalar_lea.vmem [#allocation2], 24
    %v2360 = vld [vmem:[%s2359] sm:$0xff]
    %s2361 = scalar_lea.vmem [#allocation5], 96
    %v2362 = vld [vmem:[%s2361] sm:$0xff]
    %v2363 = vld [vmem:[%s2361 + $0x8] sm:$0xff]
    %v2364 = vld [vmem:[%s2361 + $0x10] sm:$0x3f]
    %v2365 = vld [vmem:[%s2361 + $0x18] sm:$0x3f]
    %s2366 = scalar_lea.vmem [#allocation8], 24
    %v2367 = vld [vmem:[%s2366] ss:$4 sm:$0x3]
    %v2369 = vlaneseq
    %v2370 = vshrl.u32 %v2369, 7
    %v2371 = vsub.s32 0, %v2370
    %v2372 = vrot.slane %v2367, %v2371
    %v2373 = vlaneseq
    %v2374 = vshrl.u32 %v2373, 7
    %v2375 = vsub.s32 1, %v2374
    %v2376 = vrot.slane %v2367, %v2375
    %v2380 = vsel %vm127, %v2360, 0
    %v2383 = vsel %vm131, %v2364, 0
    %v2386 = vsel %vm131, %v2365, 0
    %2388 = vmatprep.subr.mxu0 0.0
    %2389 = vmatpush1.msra.mxu0 0.0
    %2390 = vmatprep.subr.mxu0 0.0
    %2391 = vmatpush1.msra.mxu0 0.0
    %2392 = vmatprep.subr.mxu0 0.0
    %2393 = vmatpush1.msra.mxu0 0.0
    %2394 = vmatprep.subr.mxu0 0.0
    %2395 = vmatpush1.msra.mxu0 0.0
    %2396 = vmatprep.subr.mxu0 0.0
    %2397 = vmatpush1.msra.mxu0 0.0
    %2398 = vmatprep.subr.mxu0 0.0
    %2399 = vmatpush1.msra.mxu0 0.0
    %2400 = vmatprep.subr.mxu0 0.0
    %2401 = vmatpush1.msra.mxu0 0.0
    %2402 = vmatprep.subr.mxu0 0.0
    %2403 = vmatpush1.msra.mxu0 0.0
    %2404 = vmatprep.subr.mxu0 0.0
    %2405 = vmatpush1.msra.mxu0 0.0
    %2406 = vmatprep.subr.mxu0 0.0
    %2407 = vmatpush1.msra.mxu0 0.0
    %2408 = vmatprep.subr.mxu0 0.0
    %2409 = vmatpush1.msra.mxu0 0.0
    %2410 = vmatprep.subr.mxu0 0.0
    %2411 = vmatpush1.msra.mxu0 0.0
    %2412 = vmatprep.subr.mxu0 0.0
    %2413 = vmatpush1.msra.mxu0 0.0
    %2414 = vmatprep.subr.mxu0 0.0
    %2415 = vmatpush1.msra.mxu0 0.0
    %2416 = vmatprep.subr.mxu0 %v2386
    %2417 = vmatpush1.msra.mxu0 %v2383
    %2418 = vmatprep.subr.mxu0 %v2363
    %2419 = vmatpush1.msra.mxu0 %v2362
    %2420 = vmatprep.subr.mxu0 0.0
    %2421 = vmatpush2.msra.mxu0 0.0
    %2422 = vmatprep.subr.mxu0 0.0
    %2423 = vmatpush2.msra.mxu0 0.0
    %2424 = vmatprep.subr.mxu0 0.0
    %2425 = vmatpush2.msra.mxu0 0.0
    %2426 = vmatprep.subr.mxu0 0.0
    %2427 = vmatpush2.msra.mxu0 0.0
    %2428 = vmatprep.subr.mxu0 0.0
    %2429 = vmatpush2.msra.mxu0 0.0
    %2430 = vmatprep.subr.mxu0 0.0
    %2431 = vmatpush2.msra.mxu0 0.0
    %2432 = vmatprep.subr.mxu0 0.0
    %2433 = vmatpush2.msra.mxu0 0.0
    %2434 = vmatprep.subr.mxu0 0.0
    %2435 = vmatpush2.msra.mxu0 0.0
    %2436 = vmatprep.subr.mxu0 0.0
    %2437 = vmatpush2.msra.mxu0 0.0
    %2438 = vmatprep.subr.mxu0 0.0
    %2439 = vmatpush2.msra.mxu0 0.0
    %2440 = vmatprep.subr.mxu0 0.0
    %2441 = vmatpush2.msra.mxu0 0.0
    %2442 = vmatprep.subr.mxu0 0.0
    %2443 = vmatpush2.msra.mxu0 0.0
    %2444 = vmatprep.subr.mxu0 0.0
    %2445 = vmatpush2.msra.mxu0 0.0
    %2446 = vmatprep.subr.mxu0 0.0
    %2447 = vmatpush2.msra.mxu0 0.0
    %2448 = vmatprep.subr.mxu0 0.0
    %2449 = vmatpush2.msra.mxu0 0.0
    %2450 = vmatprep.subr.mxu0 0.0
    %2451 = vmatpush2.msra.mxu0 0.0
    %2452 = vmatprep.mubr.f32.mxu0 0.0
    %2453 = vmatmul.mubr.f32.gmra.mxu0 %v2380
    %v2454 = vpop.f32.mrf.mxu0
    %v2455 = vadd.f32 %v2372, %v2454
    %v2456 = vpop.f32.mrf.mxu0
    %v2457 = vadd.f32 %v2376, %v2456
    %2458 = vdwg.mxu0
    %v2459 = vsub.f32 0.0, %v2455
    %v2460 = vsub.f32 0.0, %v2457
    %v2461 = vmul.f32 %v2459, 1.442695
    %v2462 = vpow.pop %v2461
    %v2463 = vmul.f32 %v2460, 1.442695
    %v2464 = vpow.pop %v2463
    %v2465 = vadd.f32 %v2462, 1.0
    %v2466 = vadd.f32 %v2464, 1.0
    %v2467 = vrcp.pop %v2465
    %v2468 = vmul.f32 1.0, %v2467
    %v2469 = vrcp.pop %v2466
    %v2470 = vmul.f32 1.0, %v2469
    %v2471 = vmul.f32 %v2455, %v2468
    %v2472 = vmul.f32 %v2457, %v2470
    %s2473 = scalar_lea.vmem [#allocation7], 4608
    %v2474 = vld [vmem:[%s2473] sm:$0xff]
    %v2475 = vld [vmem:[%s2473 + $0x8] sm:$0xff]
    %v2476 = vld [vmem:[%s2473 + $0x30] sm:$0xff]
    %v2477 = vld [vmem:[%s2473 + $0x38] sm:$0xff]
    %v2478 = vld [vmem:[%s2473 + $0x60] sm:$0xff]
    %v2479 = vld [vmem:[%s2473 + $0x68] sm:$0xff]
    %v2480 = vld [vmem:[%s2473 + $0x90] sm:$0xff]
    %v2481 = vld [vmem:[%s2473 + $0x98] sm:$0xff]
    %v2482 = vld [vmem:[%s2473 + $0xc0] sm:$0xff]
    %v2483 = vld [vmem:[%s2473 + $0xc8] sm:$0xff]
    %v2484 = vld [vmem:[%s2473 + $0xf0] sm:$0xff]
    %v2485 = vld [vmem:[%s2473 + $0xf8] sm:$0xff]
    %v2486 = vld [vmem:[%s2473 + $0x120] sm:$0xff]
    %v2487 = vld [vmem:[%s2473 + $0x128] sm:$0xff]
    %v2488 = vld [vmem:[%s2473 + $0x150] sm:$0xff]
    %v2489 = vld [vmem:[%s2473 + $0x158] sm:$0xff]
    %v2490 = vld [vmem:[%s2473 + $0x180] sm:$0xff]
    %v2491 = vld [vmem:[%s2473 + $0x188] sm:$0xff]
    %v2492 = vld [vmem:[%s2473 + $0x1b0] sm:$0xff]
    %v2493 = vld [vmem:[%s2473 + $0x1b8] sm:$0xff]
    %v2494 = vld [vmem:[%s2473 + $0x1e0] sm:$0xff]
    %v2495 = vld [vmem:[%s2473 + $0x1e8] sm:$0xff]
    %v2496 = vld [vmem:[%s2473 + $0x210] sm:$0xff]
    %v2497 = vld [vmem:[%s2473 + $0x218] sm:$0xff]
    %v2498 = vld [vmem:[%s2473 + $0x240] sm:$0xff]
    %v2499 = vld [vmem:[%s2473 + $0x248] sm:$0xff]
    %v2500 = vld [vmem:[%s2473 + $0x270] sm:$0xff]
    %v2501 = vld [vmem:[%s2473 + $0x278] sm:$0xff]
    %v2502 = vld [vmem:[%s2473 + $0x2a0] sm:$0xff]
    %v2503 = vld [vmem:[%s2473 + $0x2a8] sm:$0xff]
    %v2504 = vld [vmem:[%s2473 + $0x2d0] sm:$0xff]
    %v2505 = vld [vmem:[%s2473 + $0x2d8] sm:$0xff]
    %v2506 = vld [vmem:[%s2473 + $0x300] sm:$0xff]
    %v2507 = vld [vmem:[%s2473 + $0x308] sm:$0xff]
    %v2508 = vld [vmem:[%s2473 + $0x330] sm:$0xff]
    %v2509 = vld [vmem:[%s2473 + $0x338] sm:$0xff]
    %v2510 = vld [vmem:[%s2473 + $0x360] sm:$0xff]
    %v2511 = vld [vmem:[%s2473 + $0x368] sm:$0xff]
    %v2512 = vld [vmem:[%s2473 + $0x390] sm:$0xff]
    %v2513 = vld [vmem:[%s2473 + $0x398] sm:$0xff]
    %v2514 = vld [vmem:[%s2473 + $0x3c0] sm:$0xff]
    %v2515 = vld [vmem:[%s2473 + $0x3c8] sm:$0xff]
    %v2516 = vld [vmem:[%s2473 + $0x3f0] sm:$0xff]
    %v2517 = vld [vmem:[%s2473 + $0x3f8] sm:$0xff]
    %v2518 = vld [vmem:[%s2473 + $0x420] sm:$0xff]
    %v2519 = vld [vmem:[%s2473 + $0x428] sm:$0xff]
    %v2520 = vld [vmem:[%s2473 + $0x450] sm:$0xff]
    %v2521 = vld [vmem:[%s2473 + $0x458] sm:$0xff]
    %v2522 = vld [vmem:[%s2473 + $0x480] sm:$0xff]
    %v2523 = vld [vmem:[%s2473 + $0x488] sm:$0xff]
    %v2524 = vld [vmem:[%s2473 + $0x4b0] sm:$0xff]
    %v2525 = vld [vmem:[%s2473 + $0x4b8] sm:$0xff]
    %v2526 = vld [vmem:[%s2473 + $0x4e0] sm:$0xff]
    %v2527 = vld [vmem:[%s2473 + $0x4e8] sm:$0xff]
    %v2528 = vld [vmem:[%s2473 + $0x510] sm:$0xff]
    %v2529 = vld [vmem:[%s2473 + $0x518] sm:$0xff]
    %v2530 = vld [vmem:[%s2473 + $0x540] sm:$0xff]
    %v2531 = vld [vmem:[%s2473 + $0x548] sm:$0xff]
    %v2532 = vld [vmem:[%s2473 + $0x570] sm:$0xff]
    %v2533 = vld [vmem:[%s2473 + $0x578] sm:$0xff]
    %v2534 = vld [vmem:[%s2473 + $0x5a0] sm:$0xff]
    %v2535 = vld [vmem:[%s2473 + $0x5a8] sm:$0xff]
    %v2536 = vld [vmem:[%s2473 + $0x5d0] sm:$0xff]
    %v2537 = vld [vmem:[%s2473 + $0x5d8] sm:$0xff]
    %s2538 = scalar_lea.vmem %s2366, 1 [#allocation8]
    %v2539 = vld [vmem:[%s2538] ss:$4 sm:$0x3]
    %v2541 = vlaneseq
    %v2542 = vshrl.u32 %v2541, 7
    %v2543 = vsub.s32 0, %v2542
    %v2544 = vrot.slane %v2539, %v2543
    %v2545 = vlaneseq
    %v2546 = vshrl.u32 %v2545, 7
    %v2547 = vsub.s32 1, %v2546
    %v2548 = vrot.slane %v2539, %v2547
    %2551 = vmatprep.subr.mxu0 %v2505
    %2552 = vmatpush1.msra.mxu0 %v2504
    %2553 = vmatprep.subr.mxu0 %v2503
    %2554 = vmatpush1.msra.mxu0 %v2502
    %2555 = vmatprep.subr.mxu0 %v2501
    %2556 = vmatpush1.msra.mxu0 %v2500
    %2557 = vmatprep.subr.mxu0 %v2499
    %2558 = vmatpush1.msra.mxu0 %v2498
    %2559 = vmatprep.subr.mxu0 %v2497
    %2560 = vmatpush1.msra.mxu0 %v2496
    %2561 = vmatprep.subr.mxu0 %v2495
    %2562 = vmatpush1.msra.mxu0 %v2494
    %2563 = vmatprep.subr.mxu0 %v2493
    %2564 = vmatpush1.msra.mxu0 %v2492
    %2565 = vmatprep.subr.mxu0 %v2491
    %2566 = vmatpush1.msra.mxu0 %v2490
    %2567 = vmatprep.subr.mxu0 %v2489
    %2568 = vmatpush1.msra.mxu0 %v2488
    %2569 = vmatprep.subr.mxu0 %v2487
    %2570 = vmatpush1.msra.mxu0 %v2486
    %2571 = vmatprep.subr.mxu0 %v2485
    %2572 = vmatpush1.msra.mxu0 %v2484
    %2573 = vmatprep.subr.mxu0 %v2483
    %2574 = vmatpush1.msra.mxu0 %v2482
    %2575 = vmatprep.subr.mxu0 %v2481
    %2576 = vmatpush1.msra.mxu0 %v2480
    %2577 = vmatprep.subr.mxu0 %v2479
    %2578 = vmatpush1.msra.mxu0 %v2478
    %2579 = vmatprep.subr.mxu0 %v2477
    %2580 = vmatpush1.msra.mxu0 %v2476
    %2581 = vmatprep.subr.mxu0 %v2475
    %2582 = vmatpush1.msra.mxu0 %v2474
    %2583 = vmatprep.subr.mxu0 %v2537
    %2584 = vmatpush2.msra.mxu0 %v2536
    %2585 = vmatprep.subr.mxu0 %v2535
    %2586 = vmatpush2.msra.mxu0 %v2534
    %2587 = vmatprep.subr.mxu0 %v2533
    %2588 = vmatpush2.msra.mxu0 %v2532
    %2589 = vmatprep.subr.mxu0 %v2531
    %2590 = vmatpush2.msra.mxu0 %v2530
    %2591 = vmatprep.subr.mxu0 %v2529
    %2592 = vmatpush2.msra.mxu0 %v2528
    %2593 = vmatprep.subr.mxu0 %v2527
    %2594 = vmatpush2.msra.mxu0 %v2526
    %2595 = vmatprep.subr.mxu0 %v2525
    %2596 = vmatpush2.msra.mxu0 %v2524
    %2597 = vmatprep.subr.mxu0 %v2523
    %2598 = vmatpush2.msra.mxu0 %v2522
    %2599 = vmatprep.subr.mxu0 %v2521
    %2600 = vmatpush2.msra.mxu0 %v2520
    %2601 = vmatprep.subr.mxu0 %v2519
    %2602 = vmatpush2.msra.mxu0 %v2518
    %2603 = vmatprep.subr.mxu0 %v2517
    %2604 = vmatpush2.msra.mxu0 %v2516
    %2605 = vmatprep.subr.mxu0 %v2515
    %2606 = vmatpush2.msra.mxu0 %v2514
    %2607 = vmatprep.subr.mxu0 %v2513
    %2608 = vmatpush2.msra.mxu0 %v2512
    %2609 = vmatprep.subr.mxu0 %v2511
    %2610 = vmatpush2.msra.mxu0 %v2510
    %2611 = vmatprep.subr.mxu0 %v2509
    %2612 = vmatpush2.msra.mxu0 %v2508
    %2613 = vmatprep.subr.mxu0 %v2507
    %2614 = vmatpush2.msra.mxu0 %v2506
    %2615 = vmatprep.mubr.f32.mxu0 %v2472
    %2616 = vmatmul.mubr.f32.gmra.mxu0 %v2471
    %v2617 = vpop.f32.mrf.mxu0
    %v2618 = vadd.f32 %v2544, %v2617
    %v2619 = vpop.f32.mrf.mxu0
    %v2620 = vadd.f32 %v2548, %v2619
    %2621 = vdwg.mxu0
    %v2622 = vsub.f32 0.0, %v2618
    %v2623 = vsub.f32 0.0, %v2620
    %v2624 = vmul.f32 %v2622, 1.442695
    %v2625 = vpow.pop %v2624
    %v2626 = vmul.f32 %v2623, 1.442695
    %v2627 = vpow.pop %v2626
    %v2628 = vadd.f32 %v2625, 1.0
    %v2629 = vadd.f32 %v2627, 1.0
    %v2630 = vrcp.pop %v2628
    %v2631 = vmul.f32 1.0, %v2630
    %v2632 = vrcp.pop %v2629
    %v2633 = vmul.f32 1.0, %v2632
    %v2634 = vmul.f32 %v2618, %v2631
    %v2635 = vmul.f32 %v2620, %v2633
    %v2636 = vld [vmem:[%s2473 + $0x10] sm:$0xff]
    %v2637 = vld [vmem:[%s2473 + $0x18] sm:$0xff]
    %v2638 = vld [vmem:[%s2473 + $0x40] sm:$0xff]
    %v2639 = vld [vmem:[%s2473 + $0x48] sm:$0xff]
    %v2640 = vld [vmem:[%s2473 + $0x70] sm:$0xff]
    %v2641 = vld [vmem:[%s2473 + $0x78] sm:$0xff]
    %v2642 = vld [vmem:[%s2473 + $0xa0] sm:$0xff]
    %v2643 = vld [vmem:[%s2473 + $0xa8] sm:$0xff]
    %v2644 = vld [vmem:[%s2473 + $0xd0] sm:$0xff]
    %v2645 = vld [vmem:[%s2473 + $0xd8] sm:$0xff]
    %v2646 = vld [vmem:[%s2473 + $0x100] sm:$0xff]
    %v2647 = vld [vmem:[%s2473 + $0x108] sm:$0xff]
    %v2648 = vld [vmem:[%s2473 + $0x130] sm:$0xff]
    %v2649 = vld [vmem:[%s2473 + $0x138] sm:$0xff]
    %v2650 = vld [vmem:[%s2473 + $0x160] sm:$0xff]
    %v2651 = vld [vmem:[%s2473 + $0x168] sm:$0xff]
    %v2652 = vld [vmem:[%s2473 + $0x190] sm:$0xff]
    %v2653 = vld [vmem:[%s2473 + $0x198] sm:$0xff]
    %v2654 = vld [vmem:[%s2473 + $0x1c0] sm:$0xff]
    %v2655 = vld [vmem:[%s2473 + $0x1c8] sm:$0xff]
    %v2656 = vld [vmem:[%s2473 + $0x1f0] sm:$0xff]
    %v2657 = vld [vmem:[%s2473 + $0x1f8] sm:$0xff]
    %v2658 = vld [vmem:[%s2473 + $0x220] sm:$0xff]
    %v2659 = vld [vmem:[%s2473 + $0x228] sm:$0xff]
    %v2660 = vld [vmem:[%s2473 + $0x250] sm:$0xff]
    %v2661 = vld [vmem:[%s2473 + $0x258] sm:$0xff]
    %v2662 = vld [vmem:[%s2473 + $0x280] sm:$0xff]
    %v2663 = vld [vmem:[%s2473 + $0x288] sm:$0xff]
    %v2664 = vld [vmem:[%s2473 + $0x2b0] sm:$0xff]
    %v2665 = vld [vmem:[%s2473 + $0x2b8] sm:$0xff]
    %v2666 = vld [vmem:[%s2473 + $0x2e0] sm:$0xff]
    %v2667 = vld [vmem:[%s2473 + $0x2e8] sm:$0xff]
    %v2668 = vld [vmem:[%s2473 + $0x310] sm:$0xff]
    %v2669 = vld [vmem:[%s2473 + $0x318] sm:$0xff]
    %v2670 = vld [vmem:[%s2473 + $0x340] sm:$0xff]
    %v2671 = vld [vmem:[%s2473 + $0x348] sm:$0xff]
    %v2672 = vld [vmem:[%s2473 + $0x370] sm:$0xff]
    %v2673 = vld [vmem:[%s2473 + $0x378] sm:$0xff]
    %v2674 = vld [vmem:[%s2473 + $0x3a0] sm:$0xff]
    %v2675 = vld [vmem:[%s2473 + $0x3a8] sm:$0xff]
    %v2676 = vld [vmem:[%s2473 + $0x3d0] sm:$0xff]
    %v2677 = vld [vmem:[%s2473 + $0x3d8] sm:$0xff]
    %v2678 = vld [vmem:[%s2473 + $0x400] sm:$0xff]
    %v2679 = vld [vmem:[%s2473 + $0x408] sm:$0xff]
    %v2680 = vld [vmem:[%s2473 + $0x430] sm:$0xff]
    %v2681 = vld [vmem:[%s2473 + $0x438] sm:$0xff]
    %v2682 = vld [vmem:[%s2473 + $0x460] sm:$0xff]
    %v2683 = vld [vmem:[%s2473 + $0x468] sm:$0xff]
    %v2684 = vld [vmem:[%s2473 + $0x490] sm:$0xff]
    %v2685 = vld [vmem:[%s2473 + $0x498] sm:$0xff]
    %v2686 = vld [vmem:[%s2473 + $0x4c0] sm:$0xff]
    %v2687 = vld [vmem:[%s2473 + $0x4c8] sm:$0xff]
    %v2688 = vld [vmem:[%s2473 + $0x4f0] sm:$0xff]
    %v2689 = vld [vmem:[%s2473 + $0x4f8] sm:$0xff]
    %v2690 = vld [vmem:[%s2473 + $0x520] sm:$0xff]
    %v2691 = vld [vmem:[%s2473 + $0x528] sm:$0xff]
    %v2692 = vld [vmem:[%s2473 + $0x550] sm:$0xff]
    %v2693 = vld [vmem:[%s2473 + $0x558] sm:$0xff]
    %v2694 = vld [vmem:[%s2473 + $0x580] sm:$0xff]
    %v2695 = vld [vmem:[%s2473 + $0x588] sm:$0xff]
    %v2696 = vld [vmem:[%s2473 + $0x5b0] sm:$0xff]
    %v2697 = vld [vmem:[%s2473 + $0x5b8] sm:$0xff]
    %v2698 = vld [vmem:[%s2473 + $0x5e0] sm:$0xff]
    %v2699 = vld [vmem:[%s2473 + $0x5e8] sm:$0xff]
    %s2700 = scalar_lea.vmem %s2366, 2 [#allocation8]
    %v2701 = vld [vmem:[%s2700] ss:$4 sm:$0x3]
    %v2703 = vlaneseq
    %v2704 = vshrl.u32 %v2703, 7
    %v2705 = vsub.s32 0, %v2704
    %v2706 = vrot.slane %v2701, %v2705
    %v2707 = vlaneseq
    %v2708 = vshrl.u32 %v2707, 7
    %v2709 = vsub.s32 1, %v2708
    %v2710 = vrot.slane %v2701, %v2709
    %2713 = vmatprep.subr.mxu0 %v2667
    %2714 = vmatpush1.msra.mxu0 %v2666
    %2715 = vmatprep.subr.mxu0 %v2665
    %2716 = vmatpush1.msra.mxu0 %v2664
    %2717 = vmatprep.subr.mxu0 %v2663
    %2718 = vmatpush1.msra.mxu0 %v2662
    %2719 = vmatprep.subr.mxu0 %v2661
    %2720 = vmatpush1.msra.mxu0 %v2660
    %2721 = vmatprep.subr.mxu0 %v2659
    %2722 = vmatpush1.msra.mxu0 %v2658
    %2723 = vmatprep.subr.mxu0 %v2657
    %2724 = vmatpush1.msra.mxu0 %v2656
    %2725 = vmatprep.subr.mxu0 %v2655
    %2726 = vmatpush1.msra.mxu0 %v2654
    %2727 = vmatprep.subr.mxu0 %v2653
    %2728 = vmatpush1.msra.mxu0 %v2652
    %2729 = vmatprep.subr.mxu0 %v2651
    %2730 = vmatpush1.msra.mxu0 %v2650
    %2731 = vmatprep.subr.mxu0 %v2649
    %2732 = vmatpush1.msra.mxu0 %v2648
    %2733 = vmatprep.subr.mxu0 %v2647
    %2734 = vmatpush1.msra.mxu0 %v2646
    %2735 = vmatprep.subr.mxu0 %v2645
    %2736 = vmatpush1.msra.mxu0 %v2644
    %2737 = vmatprep.subr.mxu0 %v2643
    %2738 = vmatpush1.msra.mxu0 %v2642
    %2739 = vmatprep.subr.mxu0 %v2641
    %2740 = vmatpush1.msra.mxu0 %v2640
    %2741 = vmatprep.subr.mxu0 %v2639
    %2742 = vmatpush1.msra.mxu0 %v2638
    %2743 = vmatprep.subr.mxu0 %v2637
    %2744 = vmatpush1.msra.mxu0 %v2636
    %2745 = vmatprep.subr.mxu0 %v2699
    %2746 = vmatpush2.msra.mxu0 %v2698
    %2747 = vmatprep.subr.mxu0 %v2697
    %2748 = vmatpush2.msra.mxu0 %v2696
    %2749 = vmatprep.subr.mxu0 %v2695
    %2750 = vmatpush2.msra.mxu0 %v2694
    %2751 = vmatprep.subr.mxu0 %v2693
    %2752 = vmatpush2.msra.mxu0 %v2692
    %2753 = vmatprep.subr.mxu0 %v2691
    %2754 = vmatpush2.msra.mxu0 %v2690
    %2755 = vmatprep.subr.mxu0 %v2689
    %2756 = vmatpush2.msra.mxu0 %v2688
    %2757 = vmatprep.subr.mxu0 %v2687
    %2758 = vmatpush2.msra.mxu0 %v2686
    %2759 = vmatprep.subr.mxu0 %v2685
    %2760 = vmatpush2.msra.mxu0 %v2684
    %2761 = vmatprep.subr.mxu0 %v2683
    %2762 = vmatpush2.msra.mxu0 %v2682
    %2763 = vmatprep.subr.mxu0 %v2681
    %2764 = vmatpush2.msra.mxu0 %v2680
    %2765 = vmatprep.subr.mxu0 %v2679
    %2766 = vmatpush2.msra.mxu0 %v2678
    %2767 = vmatprep.subr.mxu0 %v2677
    %2768 = vmatpush2.msra.mxu0 %v2676
    %2769 = vmatprep.subr.mxu0 %v2675
    %2770 = vmatpush2.msra.mxu0 %v2674
    %2771 = vmatprep.subr.mxu0 %v2673
    %2772 = vmatpush2.msra.mxu0 %v2672
    %2773 = vmatprep.subr.mxu0 %v2671
    %2774 = vmatpush2.msra.mxu0 %v2670
    %2775 = vmatprep.subr.mxu0 %v2669
    %2776 = vmatpush2.msra.mxu0 %v2668
    %2777 = vmatprep.mubr.f32.mxu0 %v2635
    %2778 = vmatmul.mubr.f32.gmra.mxu0 %v2634
    %v2779 = vpop.f32.mrf.mxu0
    %v2780 = vadd.f32 %v2706, %v2779
    %v2781 = vpop.f32.mrf.mxu0
    %v2782 = vadd.f32 %v2710, %v2781
    %2783 = vdwg.mxu0
    %v2784 = vsub.f32 0.0, %v2780
    %v2785 = vsub.f32 0.0, %v2782
    %v2786 = vmul.f32 %v2784, 1.442695
    %v2787 = vpow.pop %v2786
    %v2788 = vmul.f32 %v2785, 1.442695
    %v2789 = vpow.pop %v2788
    %v2790 = vadd.f32 %v2787, 1.0
    %v2791 = vadd.f32 %v2789, 1.0
    %v2792 = vrcp.pop %v2790
    %v2793 = vmul.f32 1.0, %v2792
    %v2794 = vrcp.pop %v2791
    %v2795 = vmul.f32 1.0, %v2794
    %v2796 = vmul.f32 %v2780, %v2793
    %v2797 = vmul.f32 %v2782, %v2795
    %v2798 = vld [vmem:[%s2473 + $0x20] sm:$0xff]
    %v2799 = vld [vmem:[%s2473 + $0x28] sm:$0xff]
    %v2800 = vld [vmem:[%s2473 + $0x50] sm:$0xff]
    %v2801 = vld [vmem:[%s2473 + $0x58] sm:$0xff]
    %v2802 = vld [vmem:[%s2473 + $0x80] sm:$0xff]
    %v2803 = vld [vmem:[%s2473 + $0x88] sm:$0xff]
    %v2804 = vld [vmem:[%s2473 + $0xb0] sm:$0xff]
    %v2805 = vld [vmem:[%s2473 + $0xb8] sm:$0xff]
    %v2806 = vld [vmem:[%s2473 + $0xe0] sm:$0xff]
    %v2807 = vld [vmem:[%s2473 + $0xe8] sm:$0xff]
    %v2808 = vld [vmem:[%s2473 + $0x110] sm:$0xff]
    %v2809 = vld [vmem:[%s2473 + $0x118] sm:$0xff]
    %v2810 = vld [vmem:[%s2473 + $0x140] sm:$0xff]
    %v2811 = vld [vmem:[%s2473 + $0x148] sm:$0xff]
    %v2812 = vld [vmem:[%s2473 + $0x170] sm:$0xff]
    %v2813 = vld [vmem:[%s2473 + $0x178] sm:$0xff]
    %v2814 = vld [vmem:[%s2473 + $0x1a0] sm:$0xff]
    %v2815 = vld [vmem:[%s2473 + $0x1a8] sm:$0xff]
    %v2816 = vld [vmem:[%s2473 + $0x1d0] sm:$0xff]
    %v2817 = vld [vmem:[%s2473 + $0x1d8] sm:$0xff]
    %v2818 = vld [vmem:[%s2473 + $0x200] sm:$0xff]
    %v2819 = vld [vmem:[%s2473 + $0x208] sm:$0xff]
    %v2820 = vld [vmem:[%s2473 + $0x230] sm:$0xff]
    %v2821 = vld [vmem:[%s2473 + $0x238] sm:$0xff]
    %v2822 = vld [vmem:[%s2473 + $0x260] sm:$0xff]
    %v2823 = vld [vmem:[%s2473 + $0x268] sm:$0xff]
    %v2824 = vld [vmem:[%s2473 + $0x290] sm:$0xff]
    %v2825 = vld [vmem:[%s2473 + $0x298] sm:$0xff]
    %v2826 = vld [vmem:[%s2473 + $0x2c0] sm:$0xff]
    %v2827 = vld [vmem:[%s2473 + $0x2c8] sm:$0xff]
    %v2828 = vld [vmem:[%s2473 + $0x2f0] sm:$0xff]
    %v2829 = vld [vmem:[%s2473 + $0x2f8] sm:$0xff]
    %v2830 = vld [vmem:[%s2473 + $0x320] sm:$0xff]
    %v2831 = vld [vmem:[%s2473 + $0x328] sm:$0xff]
    %v2832 = vld [vmem:[%s2473 + $0x350] sm:$0xff]
    %v2833 = vld [vmem:[%s2473 + $0x358] sm:$0xff]
    %v2834 = vld [vmem:[%s2473 + $0x380] sm:$0xff]
    %v2835 = vld [vmem:[%s2473 + $0x388] sm:$0xff]
    %v2836 = vld [vmem:[%s2473 + $0x3b0] sm:$0xff]
    %v2837 = vld [vmem:[%s2473 + $0x3b8] sm:$0xff]
    %v2838 = vld [vmem:[%s2473 + $0x3e0] sm:$0xff]
    %v2839 = vld [vmem:[%s2473 + $0x3e8] sm:$0xff]
    %v2840 = vld [vmem:[%s2473 + $0x410] sm:$0xff]
    %v2841 = vld [vmem:[%s2473 + $0x418] sm:$0xff]
    %v2842 = vld [vmem:[%s2473 + $0x440] sm:$0xff]
    %v2843 = vld [vmem:[%s2473 + $0x448] sm:$0xff]
    %v2844 = vld [vmem:[%s2473 + $0x470] sm:$0xff]
    %v2845 = vld [vmem:[%s2473 + $0x478] sm:$0xff]
    %v2846 = vld [vmem:[%s2473 + $0x4a0] sm:$0xff]
    %v2847 = vld [vmem:[%s2473 + $0x4a8] sm:$0xff]
    %v2848 = vld [vmem:[%s2473 + $0x4d0] sm:$0xff]
    %v2849 = vld [vmem:[%s2473 + $0x4d8] sm:$0xff]
    %v2850 = vld [vmem:[%s2473 + $0x500] sm:$0xff]
    %v2851 = vld [vmem:[%s2473 + $0x508] sm:$0xff]
    %v2852 = vld [vmem:[%s2473 + $0x530] sm:$0xff]
    %v2853 = vld [vmem:[%s2473 + $0x538] sm:$0xff]
    %v2854 = vld [vmem:[%s2473 + $0x560] sm:$0xff]
    %v2855 = vld [vmem:[%s2473 + $0x568] sm:$0xff]
    %v2856 = vld [vmem:[%s2473 + $0x590] sm:$0xff]
    %v2857 = vld [vmem:[%s2473 + $0x598] sm:$0xff]
    %v2858 = vld [vmem:[%s2473 + $0x5c0] sm:$0xff]
    %v2859 = vld [vmem:[%s2473 + $0x5c8] sm:$0xff]
    %v2860 = vld [vmem:[%s2473 + $0x5f0] sm:$0xff]
    %v2861 = vld [vmem:[%s2473 + $0x5f8] sm:$0xff]
    %s2862 = scalar_lea.vmem %s2366, 3 [#allocation8]
    %v2863 = vld [vmem:[%s2862] ss:$4 sm:$0x3]
    %v2865 = vlaneseq
    %v2866 = vshrl.u32 %v2865, 7
    %v2867 = vsub.s32 0, %v2866
    %v2868 = vrot.slane %v2863, %v2867
    %v2869 = vlaneseq
    %v2870 = vshrl.u32 %v2869, 7
    %v2871 = vsub.s32 1, %v2870
    %v2872 = vrot.slane %v2863, %v2871
    %2875 = vmatprep.subr.mxu0 %v2829
    %2876 = vmatpush1.msra.mxu0 %v2828
    %2877 = vmatprep.subr.mxu0 %v2827
    %2878 = vmatpush1.msra.mxu0 %v2826
    %2879 = vmatprep.subr.mxu0 %v2825
    %2880 = vmatpush1.msra.mxu0 %v2824
    %2881 = vmatprep.subr.mxu0 %v2823
    %2882 = vmatpush1.msra.mxu0 %v2822
    %2883 = vmatprep.subr.mxu0 %v2821
    %2884 = vmatpush1.msra.mxu0 %v2820
    %2885 = vmatprep.subr.mxu0 %v2819
    %2886 = vmatpush1.msra.mxu0 %v2818
    %2887 = vmatprep.subr.mxu0 %v2817
    %2888 = vmatpush1.msra.mxu0 %v2816
    %2889 = vmatprep.subr.mxu0 %v2815
    %2890 = vmatpush1.msra.mxu0 %v2814
    %2891 = vmatprep.subr.mxu0 %v2813
    %2892 = vmatpush1.msra.mxu0 %v2812
    %2893 = vmatprep.subr.mxu0 %v2811
    %2894 = vmatpush1.msra.mxu0 %v2810
    %2895 = vmatprep.subr.mxu0 %v2809
    %2896 = vmatpush1.msra.mxu0 %v2808
    %2897 = vmatprep.subr.mxu0 %v2807
    %2898 = vmatpush1.msra.mxu0 %v2806
    %2899 = vmatprep.subr.mxu0 %v2805
    %2900 = vmatpush1.msra.mxu0 %v2804
    %2901 = vmatprep.subr.mxu0 %v2803
    %2902 = vmatpush1.msra.mxu0 %v2802
    %2903 = vmatprep.subr.mxu0 %v2801
    %2904 = vmatpush1.msra.mxu0 %v2800
    %2905 = vmatprep.subr.mxu0 %v2799
    %2906 = vmatpush1.msra.mxu0 %v2798
    %2907 = vmatprep.subr.mxu0 %v2861
    %2908 = vmatpush2.msra.mxu0 %v2860
    %2909 = vmatprep.subr.mxu0 %v2859
    %2910 = vmatpush2.msra.mxu0 %v2858
    %2911 = vmatprep.subr.mxu0 %v2857
    %2912 = vmatpush2.msra.mxu0 %v2856
    %2913 = vmatprep.subr.mxu0 %v2855
    %2914 = vmatpush2.msra.mxu0 %v2854
    %2915 = vmatprep.subr.mxu0 %v2853
    %2916 = vmatpush2.msra.mxu0 %v2852
    %2917 = vmatprep.subr.mxu0 %v2851
    %2918 = vmatpush2.msra.mxu0 %v2850
    %2919 = vmatprep.subr.mxu0 %v2849
    %2920 = vmatpush2.msra.mxu0 %v2848
    %2921 = vmatprep.subr.mxu0 %v2847
    %2922 = vmatpush2.msra.mxu0 %v2846
    %2923 = vmatprep.subr.mxu0 %v2845
    %2924 = vmatpush2.msra.mxu0 %v2844
    %2925 = vmatprep.subr.mxu0 %v2843
    %2926 = vmatpush2.msra.mxu0 %v2842
    %2927 = vmatprep.subr.mxu0 %v2841
    %2928 = vmatpush2.msra.mxu0 %v2840
    %2929 = vmatprep.subr.mxu0 %v2839
    %2930 = vmatpush2.msra.mxu0 %v2838
    %2931 = vmatprep.subr.mxu0 %v2837
    %2932 = vmatpush2.msra.mxu0 %v2836
    %2933 = vmatprep.subr.mxu0 %v2835
    %2934 = vmatpush2.msra.mxu0 %v2834
    %2935 = vmatprep.subr.mxu0 %v2833
    %2936 = vmatpush2.msra.mxu0 %v2832
    %2937 = vmatprep.subr.mxu0 %v2831
    %2938 = vmatpush2.msra.mxu0 %v2830
    %2939 = vmatprep.mubr.f32.mxu0 %v2797
    %2940 = vmatmul.mubr.f32.gmra.mxu0 %v2796
    %v2941 = vpop.f32.mrf.mxu0
    %v2942 = vadd.f32 %v2868, %v2941
    %v2943 = vpop.f32.mrf.mxu0
    %v2944 = vadd.f32 %v2872, %v2943
    %2945 = vdwg.mxu0
    %v2946 = vsub.f32 0.0, %v2942
    %v2947 = vsub.f32 0.0, %v2944
    %v2948 = vmul.f32 %v2946, 1.442695
    %v2949 = vpow.pop %v2948
    %v2950 = vmul.f32 %v2947, 1.442695
    %v2951 = vpow.pop %v2950
    %v2952 = vadd.f32 %v2949, 1.0
    %v2953 = vadd.f32 %v2951, 1.0
    %v2954 = vrcp.pop %v2952
    %v2955 = vmul.f32 1.0, %v2954
    %v2956 = vrcp.pop %v2953
    %v2957 = vmul.f32 1.0, %v2956
    %v2958 = vmul.f32 %v2942, %v2955
    %v2959 = vmul.f32 %v2944, %v2957
    %s2960 = scalar_lea.vmem %s3, 768
    %v2961 = vld [vmem:[%s2960] sm:$0xff]
    %v2962 = vld [vmem:[%s2960 + $0x8] sm:$0xff]
    %v2963 = vld [vmem:[%s2960 + $0x10] sm:$0xff]
    %v2964 = vld [vmem:[%s2960 + $0x18] sm:$0xff]
    %v2965 = vld [vmem:[%s2960 + $0x20] sm:$0xff]
    %v2966 = vld [vmem:[%s2960 + $0x28] sm:$0xff]
    %v2967 = vld [vmem:[%s2960 + $0x30] sm:$0xff]
    %v2968 = vld [vmem:[%s2960 + $0x38] sm:$0xff]
    %v2969 = vld [vmem:[%s2960 + $0x40] sm:$0xff]
    %v2970 = vld [vmem:[%s2960 + $0x48] sm:$0xff]
    %v2971 = vld [vmem:[%s2960 + $0x50] sm:$0xff]
    %v2972 = vld [vmem:[%s2960 + $0x58] sm:$0xff]
    %v2973 = vld [vmem:[%s2960 + $0x60] sm:$0xff]
    %v2974 = vld [vmem:[%s2960 + $0x68] sm:$0xff]
    %v2975 = vld [vmem:[%s2960 + $0x70] sm:$0xff]
    %v2976 = vld [vmem:[%s2960 + $0x78] sm:$0xff]
    %v2977 = vld [vmem:[%s2960 + $0x80] sm:$0xff]
    %v2978 = vld [vmem:[%s2960 + $0x88] sm:$0xff]
    %v2979 = vld [vmem:[%s2960 + $0x90] sm:$0xff]
    %v2980 = vld [vmem:[%s2960 + $0x98] sm:$0xff]
    %v2981 = vld [vmem:[%s2960 + $0xa0] sm:$0xff]
    %v2982 = vld [vmem:[%s2960 + $0xa8] sm:$0xff]
    %v2983 = vld [vmem:[%s2960 + $0xb0] sm:$0xff]
    %v2984 = vld [vmem:[%s2960 + $0xb8] sm:$0xff]
    %v2985 = vld [vmem:[%s2960 + $0xc0] sm:$0xff]
    %v2986 = vld [vmem:[%s2960 + $0xc8] sm:$0xff]
    %v2987 = vld [vmem:[%s2960 + $0xd0] sm:$0xff]
    %v2988 = vld [vmem:[%s2960 + $0xd8] sm:$0xff]
    %v2989 = vld [vmem:[%s2960 + $0xe0] sm:$0xff]
    %v2990 = vld [vmem:[%s2960 + $0xe8] sm:$0xff]
    %v2991 = vld [vmem:[%s2960 + $0xf0] sm:$0xff]
    %v2992 = vld [vmem:[%s2960 + $0xf8] sm:$0xff]
    %v2993 = vld [vmem:[#allocation10 + $0x3] sm:$0x1]
    %v2994 = vlaneseq
    %v2995 = vshrl.u32 %v2994, 7
    %v2996 = vsub.s32 0, %v2995
    %v2997 = vrot.slane %v2993, %v2996
    %2998 = vmatprep.subr.mxu0 0.0
    %2999 = vmatpush1.msra.mxu0 %v2976
    %3000 = vmatprep.subr.mxu0 0.0
    %3001 = vmatpush1.msra.mxu0 %v2975
    %3002 = vmatprep.subr.mxu0 0.0
    %3003 = vmatpush1.msra.mxu0 %v2974
    %3004 = vmatprep.subr.mxu0 0.0
    %3005 = vmatpush1.msra.mxu0 %v2973
    %3006 = vmatprep.subr.mxu0 0.0
    %3007 = vmatpush1.msra.mxu0 %v2972
    %3008 = vmatprep.subr.mxu0 0.0
    %3009 = vmatpush1.msra.mxu0 %v2971
    %3010 = vmatprep.subr.mxu0 0.0
    %3011 = vmatpush1.msra.mxu0 %v2970
    %3012 = vmatprep.subr.mxu0 0.0
    %3013 = vmatpush1.msra.mxu0 %v2969
    %3014 = vmatprep.subr.mxu0 0.0
    %3015 = vmatpush1.msra.mxu0 %v2968
    %3016 = vmatprep.subr.mxu0 0.0
    %3017 = vmatpush1.msra.mxu0 %v2967
    %3018 = vmatprep.subr.mxu0 0.0
    %3019 = vmatpush1.msra.mxu0 %v2966
    %3020 = vmatprep.subr.mxu0 0.0
    %3021 = vmatpush1.msra.mxu0 %v2965
    %3022 = vmatprep.subr.mxu0 0.0
    %3023 = vmatpush1.msra.mxu0 %v2964
    %3024 = vmatprep.subr.mxu0 0.0
    %3025 = vmatpush1.msra.mxu0 %v2963
    %3026 = vmatprep.subr.mxu0 0.0
    %3027 = vmatpush1.msra.mxu0 %v2962
    %3028 = vmatprep.subr.mxu0 0.0
    %3029 = vmatpush1.msra.mxu0 %v2961
    %3030 = vmatprep.subr.mxu0 0.0
    %3031 = vmatpush2.msra.mxu0 %v2992
    %3032 = vmatprep.subr.mxu0 0.0
    %3033 = vmatpush2.msra.mxu0 %v2991
    %3034 = vmatprep.subr.mxu0 0.0
    %3035 = vmatpush2.msra.mxu0 %v2990
    %3036 = vmatprep.subr.mxu0 0.0
    %3037 = vmatpush2.msra.mxu0 %v2989
    %3038 = vmatprep.subr.mxu0 0.0
    %3039 = vmatpush2.msra.mxu0 %v2988
    %3040 = vmatprep.subr.mxu0 0.0
    %3041 = vmatpush2.msra.mxu0 %v2987
    %3042 = vmatprep.subr.mxu0 0.0
    %3043 = vmatpush2.msra.mxu0 %v2986
    %3044 = vmatprep.subr.mxu0 0.0
    %3045 = vmatpush2.msra.mxu0 %v2985
    %3046 = vmatprep.subr.mxu0 0.0
    %3047 = vmatpush2.msra.mxu0 %v2984
    %3048 = vmatprep.subr.mxu0 0.0
    %3049 = vmatpush2.msra.mxu0 %v2983
    %3050 = vmatprep.subr.mxu0 0.0
    %3051 = vmatpush2.msra.mxu0 %v2982
    %3052 = vmatprep.subr.mxu0 0.0
    %3053 = vmatpush2.msra.mxu0 %v2981
    %3054 = vmatprep.subr.mxu0 0.0
    %3055 = vmatpush2.msra.mxu0 %v2980
    %3056 = vmatprep.subr.mxu0 0.0
    %3057 = vmatpush2.msra.mxu0 %v2979
    %3058 = vmatprep.subr.mxu0 0.0
    %3059 = vmatpush2.msra.mxu0 %v2978
    %3060 = vmatprep.subr.mxu0 0.0
    %3061 = vmatpush2.msra.mxu0 %v2977
    %3062 = vmatprep.mubr.f32.mxu0 %v2959
    %3063 = vmatmul.mubr.f32.gmra.mxu0 %v2958
    %v3064 = vpop.f32.mrf.mxu0
    %v3065 = vadd.f32 %v2997, %v3064
    %v3066 = vpop.f32.mrf.mxu0
    %3067 = vdwg.mxu0
    %v3068 = vsub.f32 %v819, %v3065
    %v3069 = vmax.f32 %v3068, 0.0
    %v3070 = vand.u32 2147483647, %v3068
    %v3071 = vsub.f32 0.0, %v3070
    %v3072 = vmul.f32 %v3071, 1.442695
    %v3073 = vpow.pop %v3072
    %v3074 = vadd.f32 %v3073, 1.0
    %v3075 = vlog2.pop %v3074
    %v3076 = vmul.f32 %v3075, 0.6931472
    %v3077 = vmul.f32 -0.5, %v3073
    %v3078 = vadd.f32 %v3077, 1.0
    %v3079 = vmul.f32 %v3078, %v3073
    %v3080 = vand.u32 2147483647, %v3073
    %vm3081 = vcmp.lt.f32.partialorder %v3080, 0.0004427343
    %v3082 = vsel %vm3081, %v3079, %v3076
    %v3083 = vadd.f32 %v3069, %v3082
    %v3084 = vsub.f32 %v819, %v3083
    %v3085 = vsub.f32 %v3084, %v840
    %v3086 = vmax.f32 %v3085, 0.0
    %v3087 = vand.u32 2147483647, %v3085
    %v3088 = vsub.f32 0.0, %v3087
    %v3089 = vmul.f32 %v3088, 1.442695
    %v3090 = vpow.pop %v3089
    %v3091 = vadd.f32 %v3090, 1.0
    %v3092 = vlog2.pop %v3091
    %v3093 = vmul.f32 %v3092, 0.6931472
    %v3094 = vmul.f32 -0.5, %v3090
    %v3095 = vadd.f32 %v3094, 1.0
    %v3096 = vmul.f32 %v3095, %v3090
    %v3097 = vand.u32 2147483647, %v3090
    %vm3098 = vcmp.lt.f32.partialorder %v3097, 0.0004427343
    %v3099 = vsel %vm3098, %v3096, %v3093
    %v3100 = vadd.f32 %v3086, %v3099
    %v3101 = vadd.f32 %v840, %v3100
    %v3102 = vmul.f32 %v3101, 1.442695
    %v3103 = vpow.pop %v3102
    %v3104 = vsel %vm109, %v3103, %v3065
    %s3105 = scalar_lea.vmem [#allocation13], 24
    %3106 = vst.msk [vmem:[%s3105] sm:$0xff] %vm861, %v3104
    %s3107 = scalar_lea.vmem [#allocation2], 32
    %v3108 = vld [vmem:[%s3107] sm:$0xff]
    %s3109 = scalar_lea.vmem [#allocation5], 128
    %v3110 = vld [vmem:[%s3109] sm:$0xff]
    %v3111 = vld [vmem:[%s3109 + $0x8] sm:$0xff]
    %v3112 = vld [vmem:[%s3109 + $0x10] sm:$0x3f]
    %v3113 = vld [vmem:[%s3109 + $0x18] sm:$0x3f]
    %s3114 = scalar_lea.vmem [#allocation8], 32
    %v3115 = vld [vmem:[%s3114] ss:$4 sm:$0x3]
    %v3117 = vlaneseq
    %v3118 = vshrl.u32 %v3117, 7
    %v3119 = vsub.s32 0, %v3118
    %v3120 = vrot.slane %v3115, %v3119
    %v3121 = vlaneseq
    %v3122 = vshrl.u32 %v3121, 7
    %v3123 = vsub.s32 1, %v3122
    %v3124 = vrot.slane %v3115, %v3123
    %v3128 = vsel %vm127, %v3108, 0
    %v3131 = vsel %vm131, %v3112, 0
    %v3134 = vsel %vm131, %v3113, 0
    %3136 = vmatprep.subr.mxu0 0.0
    %3137 = vmatpush1.msra.mxu0 0.0
    %3138 = vmatprep.subr.mxu0 0.0
    %3139 = vmatpush1.msra.mxu0 0.0
    %3140 = vmatprep.subr.mxu0 0.0
    %3141 = vmatpush1.msra.mxu0 0.0
    %3142 = vmatprep.subr.mxu0 0.0
    %3143 = vmatpush1.msra.mxu0 0.0
    %3144 = vmatprep.subr.mxu0 0.0
    %3145 = vmatpush1.msra.mxu0 0.0
    %3146 = vmatprep.subr.mxu0 0.0
    %3147 = vmatpush1.msra.mxu0 0.0
    %3148 = vmatprep.subr.mxu0 0.0
    %3149 = vmatpush1.msra.mxu0 0.0
    %3150 = vmatprep.subr.mxu0 0.0
    %3151 = vmatpush1.msra.mxu0 0.0
    %3152 = vmatprep.subr.mxu0 0.0
    %3153 = vmatpush1.msra.mxu0 0.0
    %3154 = vmatprep.subr.mxu0 0.0
    %3155 = vmatpush1.msra.mxu0 0.0
    %3156 = vmatprep.subr.mxu0 0.0
    %3157 = vmatpush1.msra.mxu0 0.0
    %3158 = vmatprep.subr.mxu0 0.0
    %3159 = vmatpush1.msra.mxu0 0.0
    %3160 = vmatprep.subr.mxu0 0.0
    %3161 = vmatpush1.msra.mxu0 0.0
    %3162 = vmatprep.subr.mxu0 0.0
    %3163 = vmatpush1.msra.mxu0 0.0
    %3164 = vmatprep.subr.mxu0 %v3134
    %3165 = vmatpush1.msra.mxu0 %v3131
    %3166 = vmatprep.subr.mxu0 %v3111
    %3167 = vmatpush1.msra.mxu0 %v3110
    %3168 = vmatprep.subr.mxu0 0.0
    %3169 = vmatpush2.msra.mxu0 0.0
    %3170 = vmatprep.subr.mxu0 0.0
    %3171 = vmatpush2.msra.mxu0 0.0
    %3172 = vmatprep.subr.mxu0 0.0
    %3173 = vmatpush2.msra.mxu0 0.0
    %3174 = vmatprep.subr.mxu0 0.0
    %3175 = vmatpush2.msra.mxu0 0.0
    %3176 = vmatprep.subr.mxu0 0.0
    %3177 = vmatpush2.msra.mxu0 0.0
    %3178 = vmatprep.subr.mxu0 0.0
    %3179 = vmatpush2.msra.mxu0 0.0
    %3180 = vmatprep.subr.mxu0 0.0
    %3181 = vmatpush2.msra.mxu0 0.0
    %3182 = vmatprep.subr.mxu0 0.0
    %3183 = vmatpush2.msra.mxu0 0.0
    %3184 = vmatprep.subr.mxu0 0.0
    %3185 = vmatpush2.msra.mxu0 0.0
    %3186 = vmatprep.subr.mxu0 0.0
    %3187 = vmatpush2.msra.mxu0 0.0
    %3188 = vmatprep.subr.mxu0 0.0
    %3189 = vmatpush2.msra.mxu0 0.0
    %3190 = vmatprep.subr.mxu0 0.0
    %3191 = vmatpush2.msra.mxu0 0.0
    %3192 = vmatprep.subr.mxu0 0.0
    %3193 = vmatpush2.msra.mxu0 0.0
    %3194 = vmatprep.subr.mxu0 0.0
    %3195 = vmatpush2.msra.mxu0 0.0
    %3196 = vmatprep.subr.mxu0 0.0
    %3197 = vmatpush2.msra.mxu0 0.0
    %3198 = vmatprep.subr.mxu0 0.0
    %3199 = vmatpush2.msra.mxu0 0.0
    %3200 = vmatprep.mubr.f32.mxu0 0.0
    %3201 = vmatmul.mubr.f32.gmra.mxu0 %v3128
    %v3202 = vpop.f32.mrf.mxu0
    %v3203 = vadd.f32 %v3120, %v3202
    %v3204 = vpop.f32.mrf.mxu0
    %v3205 = vadd.f32 %v3124, %v3204
    %3206 = vdwg.mxu0
    %v3207 = vsub.f32 0.0, %v3203
    %v3208 = vsub.f32 0.0, %v3205
    %v3209 = vmul.f32 %v3207, 1.442695
    %v3210 = vpow.pop %v3209
    %v3211 = vmul.f32 %v3208, 1.442695
    %v3212 = vpow.pop %v3211
    %v3213 = vadd.f32 %v3210, 1.0
    %v3214 = vadd.f32 %v3212, 1.0
    %v3215 = vrcp.pop %v3213
    %v3216 = vmul.f32 1.0, %v3215
    %v3217 = vrcp.pop %v3214
    %v3218 = vmul.f32 1.0, %v3217
    %v3219 = vmul.f32 %v3203, %v3216
    %v3220 = vmul.f32 %v3205, %v3218
    %s3221 = scalar_lea.vmem [#allocation7], 6144
    %v3222 = vld [vmem:[%s3221] sm:$0xff]
    %v3223 = vld [vmem:[%s3221 + $0x8] sm:$0xff]
    %v3224 = vld [vmem:[%s3221 + $0x30] sm:$0xff]
    %v3225 = vld [vmem:[%s3221 + $0x38] sm:$0xff]
    %v3226 = vld [vmem:[%s3221 + $0x60] sm:$0xff]
    %v3227 = vld [vmem:[%s3221 + $0x68] sm:$0xff]
    %v3228 = vld [vmem:[%s3221 + $0x90] sm:$0xff]
    %v3229 = vld [vmem:[%s3221 + $0x98] sm:$0xff]
    %v3230 = vld [vmem:[%s3221 + $0xc0] sm:$0xff]
    %v3231 = vld [vmem:[%s3221 + $0xc8] sm:$0xff]
    %v3232 = vld [vmem:[%s3221 + $0xf0] sm:$0xff]
    %v3233 = vld [vmem:[%s3221 + $0xf8] sm:$0xff]
    %v3234 = vld [vmem:[%s3221 + $0x120] sm:$0xff]
    %v3235 = vld [vmem:[%s3221 + $0x128] sm:$0xff]
    %v3236 = vld [vmem:[%s3221 + $0x150] sm:$0xff]
    %v3237 = vld [vmem:[%s3221 + $0x158] sm:$0xff]
    %v3238 = vld [vmem:[%s3221 + $0x180] sm:$0xff]
    %v3239 = vld [vmem:[%s3221 + $0x188] sm:$0xff]
    %v3240 = vld [vmem:[%s3221 + $0x1b0] sm:$0xff]
    %v3241 = vld [vmem:[%s3221 + $0x1b8] sm:$0xff]
    %v3242 = vld [vmem:[%s3221 + $0x1e0] sm:$0xff]
    %v3243 = vld [vmem:[%s3221 + $0x1e8] sm:$0xff]
    %v3244 = vld [vmem:[%s3221 + $0x210] sm:$0xff]
    %v3245 = vld [vmem:[%s3221 + $0x218] sm:$0xff]
    %v3246 = vld [vmem:[%s3221 + $0x240] sm:$0xff]
    %v3247 = vld [vmem:[%s3221 + $0x248] sm:$0xff]
    %v3248 = vld [vmem:[%s3221 + $0x270] sm:$0xff]
    %v3249 = vld [vmem:[%s3221 + $0x278] sm:$0xff]
    %v3250 = vld [vmem:[%s3221 + $0x2a0] sm:$0xff]
    %v3251 = vld [vmem:[%s3221 + $0x2a8] sm:$0xff]
    %v3252 = vld [vmem:[%s3221 + $0x2d0] sm:$0xff]
    %v3253 = vld [vmem:[%s3221 + $0x2d8] sm:$0xff]
    %v3254 = vld [vmem:[%s3221 + $0x300] sm:$0xff]
    %v3255 = vld [vmem:[%s3221 + $0x308] sm:$0xff]
    %v3256 = vld [vmem:[%s3221 + $0x330] sm:$0xff]
    %v3257 = vld [vmem:[%s3221 + $0x338] sm:$0xff]
    %v3258 = vld [vmem:[%s3221 + $0x360] sm:$0xff]
    %v3259 = vld [vmem:[%s3221 + $0x368] sm:$0xff]
    %v3260 = vld [vmem:[%s3221 + $0x390] sm:$0xff]
    %v3261 = vld [vmem:[%s3221 + $0x398] sm:$0xff]
    %v3262 = vld [vmem:[%s3221 + $0x3c0] sm:$0xff]
    %v3263 = vld [vmem:[%s3221 + $0x3c8] sm:$0xff]
    %v3264 = vld [vmem:[%s3221 + $0x3f0] sm:$0xff]
    %v3265 = vld [vmem:[%s3221 + $0x3f8] sm:$0xff]
    %v3266 = vld [vmem:[%s3221 + $0x420] sm:$0xff]
    %v3267 = vld [vmem:[%s3221 + $0x428] sm:$0xff]
    %v3268 = vld [vmem:[%s3221 + $0x450] sm:$0xff]
    %v3269 = vld [vmem:[%s3221 + $0x458] sm:$0xff]
    %v3270 = vld [vmem:[%s3221 + $0x480] sm:$0xff]
    %v3271 = vld [vmem:[%s3221 + $0x488] sm:$0xff]
    %v3272 = vld [vmem:[%s3221 + $0x4b0] sm:$0xff]
    %v3273 = vld [vmem:[%s3221 + $0x4b8] sm:$0xff]
    %v3274 = vld [vmem:[%s3221 + $0x4e0] sm:$0xff]
    %v3275 = vld [vmem:[%s3221 + $0x4e8] sm:$0xff]
    %v3276 = vld [vmem:[%s3221 + $0x510] sm:$0xff]
    %v3277 = vld [vmem:[%s3221 + $0x518] sm:$0xff]
    %v3278 = vld [vmem:[%s3221 + $0x540] sm:$0xff]
    %v3279 = vld [vmem:[%s3221 + $0x548] sm:$0xff]
    %v3280 = vld [vmem:[%s3221 + $0x570] sm:$0xff]
    %v3281 = vld [vmem:[%s3221 + $0x578] sm:$0xff]
    %v3282 = vld [vmem:[%s3221 + $0x5a0] sm:$0xff]
    %v3283 = vld [vmem:[%s3221 + $0x5a8] sm:$0xff]
    %v3284 = vld [vmem:[%s3221 + $0x5d0] sm:$0xff]
    %v3285 = vld [vmem:[%s3221 + $0x5d8] sm:$0xff]
    %s3286 = scalar_lea.vmem %s3114, 1 [#allocation8]
    %v3287 = vld [vmem:[%s3286] ss:$4 sm:$0x3]
    %v3289 = vlaneseq
    %v3290 = vshrl.u32 %v3289, 7
    %v3291 = vsub.s32 0, %v3290
    %v3292 = vrot.slane %v3287, %v3291
    %v3293 = vlaneseq
    %v3294 = vshrl.u32 %v3293, 7
    %v3295 = vsub.s32 1, %v3294
    %v3296 = vrot.slane %v3287, %v3295
    %3299 = vmatprep.subr.mxu0 %v3253
    %3300 = vmatpush1.msra.mxu0 %v3252
    %3301 = vmatprep.subr.mxu0 %v3251
    %3302 = vmatpush1.msra.mxu0 %v3250
    %3303 = vmatprep.subr.mxu0 %v3249
    %3304 = vmatpush1.msra.mxu0 %v3248
    %3305 = vmatprep.subr.mxu0 %v3247
    %3306 = vmatpush1.msra.mxu0 %v3246
    %3307 = vmatprep.subr.mxu0 %v3245
    %3308 = vmatpush1.msra.mxu0 %v3244
    %3309 = vmatprep.subr.mxu0 %v3243
    %3310 = vmatpush1.msra.mxu0 %v3242
    %3311 = vmatprep.subr.mxu0 %v3241
    %3312 = vmatpush1.msra.mxu0 %v3240
    %3313 = vmatprep.subr.mxu0 %v3239
    %3314 = vmatpush1.msra.mxu0 %v3238
    %3315 = vmatprep.subr.mxu0 %v3237
    %3316 = vmatpush1.msra.mxu0 %v3236
    %3317 = vmatprep.subr.mxu0 %v3235
    %3318 = vmatpush1.msra.mxu0 %v3234
    %3319 = vmatprep.subr.mxu0 %v3233
    %3320 = vmatpush1.msra.mxu0 %v3232
    %3321 = vmatprep.subr.mxu0 %v3231
    %3322 = vmatpush1.msra.mxu0 %v3230
    %3323 = vmatprep.subr.mxu0 %v3229
    %3324 = vmatpush1.msra.mxu0 %v3228
    %3325 = vmatprep.subr.mxu0 %v3227
    %3326 = vmatpush1.msra.mxu0 %v3226
    %3327 = vmatprep.subr.mxu0 %v3225
    %3328 = vmatpush1.msra.mxu0 %v3224
    %3329 = vmatprep.subr.mxu0 %v3223
    %3330 = vmatpush1.msra.mxu0 %v3222
    %3331 = vmatprep.subr.mxu0 %v3285
    %3332 = vmatpush2.msra.mxu0 %v3284
    %3333 = vmatprep.subr.mxu0 %v3283
    %3334 = vmatpush2.msra.mxu0 %v3282
    %3335 = vmatprep.subr.mxu0 %v3281
    %3336 = vmatpush2.msra.mxu0 %v3280
    %3337 = vmatprep.subr.mxu0 %v3279
    %3338 = vmatpush2.msra.mxu0 %v3278
    %3339 = vmatprep.subr.mxu0 %v3277
    %3340 = vmatpush2.msra.mxu0 %v3276
    %3341 = vmatprep.subr.mxu0 %v3275
    %3342 = vmatpush2.msra.mxu0 %v3274
    %3343 = vmatprep.subr.mxu0 %v3273
    %3344 = vmatpush2.msra.mxu0 %v3272
    %3345 = vmatprep.subr.mxu0 %v3271
    %3346 = vmatpush2.msra.mxu0 %v3270
    %3347 = vmatprep.subr.mxu0 %v3269
    %3348 = vmatpush2.msra.mxu0 %v3268
    %3349 = vmatprep.subr.mxu0 %v3267
    %3350 = vmatpush2.msra.mxu0 %v3266
    %3351 = vmatprep.subr.mxu0 %v3265
    %3352 = vmatpush2.msra.mxu0 %v3264
    %3353 = vmatprep.subr.mxu0 %v3263
    %3354 = vmatpush2.msra.mxu0 %v3262
    %3355 = vmatprep.subr.mxu0 %v3261
    %3356 = vmatpush2.msra.mxu0 %v3260
    %3357 = vmatprep.subr.mxu0 %v3259
    %3358 = vmatpush2.msra.mxu0 %v3258
    %3359 = vmatprep.subr.mxu0 %v3257
    %3360 = vmatpush2.msra.mxu0 %v3256
    %3361 = vmatprep.subr.mxu0 %v3255
    %3362 = vmatpush2.msra.mxu0 %v3254
    %3363 = vmatprep.mubr.f32.mxu0 %v3220
    %3364 = vmatmul.mubr.f32.gmra.mxu0 %v3219
    %v3365 = vpop.f32.mrf.mxu0
    %v3366 = vadd.f32 %v3292, %v3365
    %v3367 = vpop.f32.mrf.mxu0
    %v3368 = vadd.f32 %v3296, %v3367
    %3369 = vdwg.mxu0
    %v3370 = vsub.f32 0.0, %v3366
    %v3371 = vsub.f32 0.0, %v3368
    %v3372 = vmul.f32 %v3370, 1.442695
    %v3373 = vpow.pop %v3372
    %v3374 = vmul.f32 %v3371, 1.442695
    %v3375 = vpow.pop %v3374
    %v3376 = vadd.f32 %v3373, 1.0
    %v3377 = vadd.f32 %v3375, 1.0
    %v3378 = vrcp.pop %v3376
    %v3379 = vmul.f32 1.0, %v3378
    %v3380 = vrcp.pop %v3377
    %v3381 = vmul.f32 1.0, %v3380
    %v3382 = vmul.f32 %v3366, %v3379
    %v3383 = vmul.f32 %v3368, %v3381
    %v3384 = vld [vmem:[%s3221 + $0x10] sm:$0xff]
    %v3385 = vld [vmem:[%s3221 + $0x18] sm:$0xff]
    %v3386 = vld [vmem:[%s3221 + $0x40] sm:$0xff]
    %v3387 = vld [vmem:[%s3221 + $0x48] sm:$0xff]
    %v3388 = vld [vmem:[%s3221 + $0x70] sm:$0xff]
    %v3389 = vld [vmem:[%s3221 + $0x78] sm:$0xff]
    %v3390 = vld [vmem:[%s3221 + $0xa0] sm:$0xff]
    %v3391 = vld [vmem:[%s3221 + $0xa8] sm:$0xff]
    %v3392 = vld [vmem:[%s3221 + $0xd0] sm:$0xff]
    %v3393 = vld [vmem:[%s3221 + $0xd8] sm:$0xff]
    %v3394 = vld [vmem:[%s3221 + $0x100] sm:$0xff]
    %v3395 = vld [vmem:[%s3221 + $0x108] sm:$0xff]
    %v3396 = vld [vmem:[%s3221 + $0x130] sm:$0xff]
    %v3397 = vld [vmem:[%s3221 + $0x138] sm:$0xff]
    %v3398 = vld [vmem:[%s3221 + $0x160] sm:$0xff]
    %v3399 = vld [vmem:[%s3221 + $0x168] sm:$0xff]
    %v3400 = vld [vmem:[%s3221 + $0x190] sm:$0xff]
    %v3401 = vld [vmem:[%s3221 + $0x198] sm:$0xff]
    %v3402 = vld [vmem:[%s3221 + $0x1c0] sm:$0xff]
    %v3403 = vld [vmem:[%s3221 + $0x1c8] sm:$0xff]
    %v3404 = vld [vmem:[%s3221 + $0x1f0] sm:$0xff]
    %v3405 = vld [vmem:[%s3221 + $0x1f8] sm:$0xff]
    %v3406 = vld [vmem:[%s3221 + $0x220] sm:$0xff]
    %v3407 = vld [vmem:[%s3221 + $0x228] sm:$0xff]
    %v3408 = vld [vmem:[%s3221 + $0x250] sm:$0xff]
    %v3409 = vld [vmem:[%s3221 + $0x258] sm:$0xff]
    %v3410 = vld [vmem:[%s3221 + $0x280] sm:$0xff]
    %v3411 = vld [vmem:[%s3221 + $0x288] sm:$0xff]
    %v3412 = vld [vmem:[%s3221 + $0x2b0] sm:$0xff]
    %v3413 = vld [vmem:[%s3221 + $0x2b8] sm:$0xff]
    %v3414 = vld [vmem:[%s3221 + $0x2e0] sm:$0xff]
    %v3415 = vld [vmem:[%s3221 + $0x2e8] sm:$0xff]
    %v3416 = vld [vmem:[%s3221 + $0x310] sm:$0xff]
    %v3417 = vld [vmem:[%s3221 + $0x318] sm:$0xff]
    %v3418 = vld [vmem:[%s3221 + $0x340] sm:$0xff]
    %v3419 = vld [vmem:[%s3221 + $0x348] sm:$0xff]
    %v3420 = vld [vmem:[%s3221 + $0x370] sm:$0xff]
    %v3421 = vld [vmem:[%s3221 + $0x378] sm:$0xff]
    %v3422 = vld [vmem:[%s3221 + $0x3a0] sm:$0xff]
    %v3423 = vld [vmem:[%s3221 + $0x3a8] sm:$0xff]
    %v3424 = vld [vmem:[%s3221 + $0x3d0] sm:$0xff]
    %v3425 = vld [vmem:[%s3221 + $0x3d8] sm:$0xff]
    %v3426 = vld [vmem:[%s3221 + $0x400] sm:$0xff]
    %v3427 = vld [vmem:[%s3221 + $0x408] sm:$0xff]
    %v3428 = vld [vmem:[%s3221 + $0x430] sm:$0xff]
    %v3429 = vld [vmem:[%s3221 + $0x438] sm:$0xff]
    %v3430 = vld [vmem:[%s3221 + $0x460] sm:$0xff]
    %v3431 = vld [vmem:[%s3221 + $0x468] sm:$0xff]
    %v3432 = vld [vmem:[%s3221 + $0x490] sm:$0xff]
    %v3433 = vld [vmem:[%s3221 + $0x498] sm:$0xff]
    %v3434 = vld [vmem:[%s3221 + $0x4c0] sm:$0xff]
    %v3435 = vld [vmem:[%s3221 + $0x4c8] sm:$0xff]
    %v3436 = vld [vmem:[%s3221 + $0x4f0] sm:$0xff]
    %v3437 = vld [vmem:[%s3221 + $0x4f8] sm:$0xff]
    %v3438 = vld [vmem:[%s3221 + $0x520] sm:$0xff]
    %v3439 = vld [vmem:[%s3221 + $0x528] sm:$0xff]
    %v3440 = vld [vmem:[%s3221 + $0x550] sm:$0xff]
    %v3441 = vld [vmem:[%s3221 + $0x558] sm:$0xff]
    %v3442 = vld [vmem:[%s3221 + $0x580] sm:$0xff]
    %v3443 = vld [vmem:[%s3221 + $0x588] sm:$0xff]
    %v3444 = vld [vmem:[%s3221 + $0x5b0] sm:$0xff]
    %v3445 = vld [vmem:[%s3221 + $0x5b8] sm:$0xff]
    %v3446 = vld [vmem:[%s3221 + $0x5e0] sm:$0xff]
    %v3447 = vld [vmem:[%s3221 + $0x5e8] sm:$0xff]
    %s3448 = scalar_lea.vmem %s3114, 2 [#allocation8]
    %v3449 = vld [vmem:[%s3448] ss:$4 sm:$0x3]
    %v3451 = vlaneseq
    %v3452 = vshrl.u32 %v3451, 7
    %v3453 = vsub.s32 0, %v3452
    %v3454 = vrot.slane %v3449, %v3453
    %v3455 = vlaneseq
    %v3456 = vshrl.u32 %v3455, 7
    %v3457 = vsub.s32 1, %v3456
    %v3458 = vrot.slane %v3449, %v3457
    %3461 = vmatprep.subr.mxu0 %v3415
    %3462 = vmatpush1.msra.mxu0 %v3414
    %3463 = vmatprep.subr.mxu0 %v3413
    %3464 = vmatpush1.msra.mxu0 %v3412
    %3465 = vmatprep.subr.mxu0 %v3411
    %3466 = vmatpush1.msra.mxu0 %v3410
    %3467 = vmatprep.subr.mxu0 %v3409
    %3468 = vmatpush1.msra.mxu0 %v3408
    %3469 = vmatprep.subr.mxu0 %v3407
    %3470 = vmatpush1.msra.mxu0 %v3406
    %3471 = vmatprep.subr.mxu0 %v3405
    %3472 = vmatpush1.msra.mxu0 %v3404
    %3473 = vmatprep.subr.mxu0 %v3403
    %3474 = vmatpush1.msra.mxu0 %v3402
    %3475 = vmatprep.subr.mxu0 %v3401
    %3476 = vmatpush1.msra.mxu0 %v3400
    %3477 = vmatprep.subr.mxu0 %v3399
    %3478 = vmatpush1.msra.mxu0 %v3398
    %3479 = vmatprep.subr.mxu0 %v3397
    %3480 = vmatpush1.msra.mxu0 %v3396
    %3481 = vmatprep.subr.mxu0 %v3395
    %3482 = vmatpush1.msra.mxu0 %v3394
    %3483 = vmatprep.subr.mxu0 %v3393
    %3484 = vmatpush1.msra.mxu0 %v3392
    %3485 = vmatprep.subr.mxu0 %v3391
    %3486 = vmatpush1.msra.mxu0 %v3390
    %3487 = vmatprep.subr.mxu0 %v3389
    %3488 = vmatpush1.msra.mxu0 %v3388
    %3489 = vmatprep.subr.mxu0 %v3387
    %3490 = vmatpush1.msra.mxu0 %v3386
    %3491 = vmatprep.subr.mxu0 %v3385
    %3492 = vmatpush1.msra.mxu0 %v3384
    %3493 = vmatprep.subr.mxu0 %v3447
    %3494 = vmatpush2.msra.mxu0 %v3446
    %3495 = vmatprep.subr.mxu0 %v3445
    %3496 = vmatpush2.msra.mxu0 %v3444
    %3497 = vmatprep.subr.mxu0 %v3443
    %3498 = vmatpush2.msra.mxu0 %v3442
    %3499 = vmatprep.subr.mxu0 %v3441
    %3500 = vmatpush2.msra.mxu0 %v3440
    %3501 = vmatprep.subr.mxu0 %v3439
    %3502 = vmatpush2.msra.mxu0 %v3438
    %3503 = vmatprep.subr.mxu0 %v3437
    %3504 = vmatpush2.msra.mxu0 %v3436
    %3505 = vmatprep.subr.mxu0 %v3435
    %3506 = vmatpush2.msra.mxu0 %v3434
    %3507 = vmatprep.subr.mxu0 %v3433
    %3508 = vmatpush2.msra.mxu0 %v3432
    %3509 = vmatprep.subr.mxu0 %v3431
    %3510 = vmatpush2.msra.mxu0 %v3430
    %3511 = vmatprep.subr.mxu0 %v3429
    %3512 = vmatpush2.msra.mxu0 %v3428
    %3513 = vmatprep.subr.mxu0 %v3427
    %3514 = vmatpush2.msra.mxu0 %v3426
    %3515 = vmatprep.subr.mxu0 %v3425
    %3516 = vmatpush2.msra.mxu0 %v3424
    %3517 = vmatprep.subr.mxu0 %v3423
    %3518 = vmatpush2.msra.mxu0 %v3422
    %3519 = vmatprep.subr.mxu0 %v3421
    %3520 = vmatpush2.msra.mxu0 %v3420
    %3521 = vmatprep.subr.mxu0 %v3419
    %3522 = vmatpush2.msra.mxu0 %v3418
    %3523 = vmatprep.subr.mxu0 %v3417
    %3524 = vmatpush2.msra.mxu0 %v3416
    %3525 = vmatprep.mubr.f32.mxu0 %v3383
    %3526 = vmatmul.mubr.f32.gmra.mxu0 %v3382
    %v3527 = vpop.f32.mrf.mxu0
    %v3528 = vadd.f32 %v3454, %v3527
    %v3529 = vpop.f32.mrf.mxu0
    %v3530 = vadd.f32 %v3458, %v3529
    %3531 = vdwg.mxu0
    %v3532 = vsub.f32 0.0, %v3528
    %v3533 = vsub.f32 0.0, %v3530
    %v3534 = vmul.f32 %v3532, 1.442695
    %v3535 = vpow.pop %v3534
    %v3536 = vmul.f32 %v3533, 1.442695
    %v3537 = vpow.pop %v3536
    %v3538 = vadd.f32 %v3535, 1.0
    %v3539 = vadd.f32 %v3537, 1.0
    %v3540 = vrcp.pop %v3538
    %v3541 = vmul.f32 1.0, %v3540
    %v3542 = vrcp.pop %v3539
    %v3543 = vmul.f32 1.0, %v3542
    %v3544 = vmul.f32 %v3528, %v3541
    %v3545 = vmul.f32 %v3530, %v3543
    %v3546 = vld [vmem:[%s3221 + $0x20] sm:$0xff]
    %v3547 = vld [vmem:[%s3221 + $0x28] sm:$0xff]
    %v3548 = vld [vmem:[%s3221 + $0x50] sm:$0xff]
    %v3549 = vld [vmem:[%s3221 + $0x58] sm:$0xff]
    %v3550 = vld [vmem:[%s3221 + $0x80] sm:$0xff]
    %v3551 = vld [vmem:[%s3221 + $0x88] sm:$0xff]
    %v3552 = vld [vmem:[%s3221 + $0xb0] sm:$0xff]
    %v3553 = vld [vmem:[%s3221 + $0xb8] sm:$0xff]
    %v3554 = vld [vmem:[%s3221 + $0xe0] sm:$0xff]
    %v3555 = vld [vmem:[%s3221 + $0xe8] sm:$0xff]
    %v3556 = vld [vmem:[%s3221 + $0x110] sm:$0xff]
    %v3557 = vld [vmem:[%s3221 + $0x118] sm:$0xff]
    %v3558 = vld [vmem:[%s3221 + $0x140] sm:$0xff]
    %v3559 = vld [vmem:[%s3221 + $0x148] sm:$0xff]
    %v3560 = vld [vmem:[%s3221 + $0x170] sm:$0xff]
    %v3561 = vld [vmem:[%s3221 + $0x178] sm:$0xff]
    %v3562 = vld [vmem:[%s3221 + $0x1a0] sm:$0xff]
    %v3563 = vld [vmem:[%s3221 + $0x1a8] sm:$0xff]
    %v3564 = vld [vmem:[%s3221 + $0x1d0] sm:$0xff]
    %v3565 = vld [vmem:[%s3221 + $0x1d8] sm:$0xff]
    %v3566 = vld [vmem:[%s3221 + $0x200] sm:$0xff]
    %v3567 = vld [vmem:[%s3221 + $0x208] sm:$0xff]
    %v3568 = vld [vmem:[%s3221 + $0x230] sm:$0xff]
    %v3569 = vld [vmem:[%s3221 + $0x238] sm:$0xff]
    %v3570 = vld [vmem:[%s3221 + $0x260] sm:$0xff]
    %v3571 = vld [vmem:[%s3221 + $0x268] sm:$0xff]
    %v3572 = vld [vmem:[%s3221 + $0x290] sm:$0xff]
    %v3573 = vld [vmem:[%s3221 + $0x298] sm:$0xff]
    %v3574 = vld [vmem:[%s3221 + $0x2c0] sm:$0xff]
    %v3575 = vld [vmem:[%s3221 + $0x2c8] sm:$0xff]
    %v3576 = vld [vmem:[%s3221 + $0x2f0] sm:$0xff]
    %v3577 = vld [vmem:[%s3221 + $0x2f8] sm:$0xff]
    %v3578 = vld [vmem:[%s3221 + $0x320] sm:$0xff]
    %v3579 = vld [vmem:[%s3221 + $0x328] sm:$0xff]
    %v3580 = vld [vmem:[%s3221 + $0x350] sm:$0xff]
    %v3581 = vld [vmem:[%s3221 + $0x358] sm:$0xff]
    %v3582 = vld [vmem:[%s3221 + $0x380] sm:$0xff]
    %v3583 = vld [vmem:[%s3221 + $0x388] sm:$0xff]
    %v3584 = vld [vmem:[%s3221 + $0x3b0] sm:$0xff]
    %v3585 = vld [vmem:[%s3221 + $0x3b8] sm:$0xff]
    %v3586 = vld [vmem:[%s3221 + $0x3e0] sm:$0xff]
    %v3587 = vld [vmem:[%s3221 + $0x3e8] sm:$0xff]
    %v3588 = vld [vmem:[%s3221 + $0x410] sm:$0xff]
    %v3589 = vld [vmem:[%s3221 + $0x418] sm:$0xff]
    %v3590 = vld [vmem:[%s3221 + $0x440] sm:$0xff]
    %v3591 = vld [vmem:[%s3221 + $0x448] sm:$0xff]
    %v3592 = vld [vmem:[%s3221 + $0x470] sm:$0xff]
    %v3593 = vld [vmem:[%s3221 + $0x478] sm:$0xff]
    %v3594 = vld [vmem:[%s3221 + $0x4a0] sm:$0xff]
    %v3595 = vld [vmem:[%s3221 + $0x4a8] sm:$0xff]
    %v3596 = vld [vmem:[%s3221 + $0x4d0] sm:$0xff]
    %v3597 = vld [vmem:[%s3221 + $0x4d8] sm:$0xff]
    %v3598 = vld [vmem:[%s3221 + $0x500] sm:$0xff]
    %v3599 = vld [vmem:[%s3221 + $0x508] sm:$0xff]
    %v3600 = vld [vmem:[%s3221 + $0x530] sm:$0xff]
    %v3601 = vld [vmem:[%s3221 + $0x538] sm:$0xff]
    %v3602 = vld [vmem:[%s3221 + $0x560] sm:$0xff]
    %v3603 = vld [vmem:[%s3221 + $0x568] sm:$0xff]
    %v3604 = vld [vmem:[%s3221 + $0x590] sm:$0xff]
    %v3605 = vld [vmem:[%s3221 + $0x598] sm:$0xff]
    %v3606 = vld [vmem:[%s3221 + $0x5c0] sm:$0xff]
    %v3607 = vld [vmem:[%s3221 + $0x5c8] sm:$0xff]
    %v3608 = vld [vmem:[%s3221 + $0x5f0] sm:$0xff]
    %v3609 = vld [vmem:[%s3221 + $0x5f8] sm:$0xff]
    %s3610 = scalar_lea.vmem %s3114, 3 [#allocation8]
    %v3611 = vld [vmem:[%s3610] ss:$4 sm:$0x3]
    %v3613 = vlaneseq
    %v3614 = vshrl.u32 %v3613, 7
    %v3615 = vsub.s32 0, %v3614
    %v3616 = vrot.slane %v3611, %v3615
    %v3617 = vlaneseq
    %v3618 = vshrl.u32 %v3617, 7
    %v3619 = vsub.s32 1, %v3618
    %v3620 = vrot.slane %v3611, %v3619
    %3623 = vmatprep.subr.mxu0 %v3577
    %3624 = vmatpush1.msra.mxu0 %v3576
    %3625 = vmatprep.subr.mxu0 %v3575
    %3626 = vmatpush1.msra.mxu0 %v3574
    %3627 = vmatprep.subr.mxu0 %v3573
    %3628 = vmatpush1.msra.mxu0 %v3572
    %3629 = vmatprep.subr.mxu0 %v3571
    %3630 = vmatpush1.msra.mxu0 %v3570
    %3631 = vmatprep.subr.mxu0 %v3569
    %3632 = vmatpush1.msra.mxu0 %v3568
    %3633 = vmatprep.subr.mxu0 %v3567
    %3634 = vmatpush1.msra.mxu0 %v3566
    %3635 = vmatprep.subr.mxu0 %v3565
    %3636 = vmatpush1.msra.mxu0 %v3564
    %3637 = vmatprep.subr.mxu0 %v3563
    %3638 = vmatpush1.msra.mxu0 %v3562
    %3639 = vmatprep.subr.mxu0 %v3561
    %3640 = vmatpush1.msra.mxu0 %v3560
    %3641 = vmatprep.subr.mxu0 %v3559
    %3642 = vmatpush1.msra.mxu0 %v3558
    %3643 = vmatprep.subr.mxu0 %v3557
    %3644 = vmatpush1.msra.mxu0 %v3556
    %3645 = vmatprep.subr.mxu0 %v3555
    %3646 = vmatpush1.msra.mxu0 %v3554
    %3647 = vmatprep.subr.mxu0 %v3553
    %3648 = vmatpush1.msra.mxu0 %v3552
    %3649 = vmatprep.subr.mxu0 %v3551
    %3650 = vmatpush1.msra.mxu0 %v3550
    %3651 = vmatprep.subr.mxu0 %v3549
    %3652 = vmatpush1.msra.mxu0 %v3548
    %3653 = vmatprep.subr.mxu0 %v3547
    %3654 = vmatpush1.msra.mxu0 %v3546
    %3655 = vmatprep.subr.mxu0 %v3609
    %3656 = vmatpush2.msra.mxu0 %v3608
    %3657 = vmatprep.subr.mxu0 %v3607
    %3658 = vmatpush2.msra.mxu0 %v3606
    %3659 = vmatprep.subr.mxu0 %v3605
    %3660 = vmatpush2.msra.mxu0 %v3604
    %3661 = vmatprep.subr.mxu0 %v3603
    %3662 = vmatpush2.msra.mxu0 %v3602
    %3663 = vmatprep.subr.mxu0 %v3601
    %3664 = vmatpush2.msra.mxu0 %v3600
    %3665 = vmatprep.subr.mxu0 %v3599
    %3666 = vmatpush2.msra.mxu0 %v3598
    %3667 = vmatprep.subr.mxu0 %v3597
    %3668 = vmatpush2.msra.mxu0 %v3596
    %3669 = vmatprep.subr.mxu0 %v3595
    %3670 = vmatpush2.msra.mxu0 %v3594
    %3671 = vmatprep.subr.mxu0 %v3593
    %3672 = vmatpush2.msra.mxu0 %v3592
    %3673 = vmatprep.subr.mxu0 %v3591
    %3674 = vmatpush2.msra.mxu0 %v3590
    %3675 = vmatprep.subr.mxu0 %v3589
    %3676 = vmatpush2.msra.mxu0 %v3588
    %3677 = vmatprep.subr.mxu0 %v3587
    %3678 = vmatpush2.msra.mxu0 %v3586
    %3679 = vmatprep.subr.mxu0 %v3585
    %3680 = vmatpush2.msra.mxu0 %v3584
    %3681 = vmatprep.subr.mxu0 %v3583
    %3682 = vmatpush2.msra.mxu0 %v3582
    %3683 = vmatprep.subr.mxu0 %v3581
    %3684 = vmatpush2.msra.mxu0 %v3580
    %3685 = vmatprep.subr.mxu0 %v3579
    %3686 = vmatpush2.msra.mxu0 %v3578
    %3687 = vmatprep.mubr.f32.mxu0 %v3545
    %3688 = vmatmul.mubr.f32.gmra.mxu0 %v3544
    %v3689 = vpop.f32.mrf.mxu0
    %v3690 = vadd.f32 %v3616, %v3689
    %v3691 = vpop.f32.mrf.mxu0
    %v3692 = vadd.f32 %v3620, %v3691
    %3693 = vdwg.mxu0
    %v3694 = vsub.f32 0.0, %v3690
    %v3695 = vsub.f32 0.0, %v3692
    %v3696 = vmul.f32 %v3694, 1.442695
    %v3697 = vpow.pop %v3696
    %v3698 = vmul.f32 %v3695, 1.442695
    %v3699 = vpow.pop %v3698
    %v3700 = vadd.f32 %v3697, 1.0
    %v3701 = vadd.f32 %v3699, 1.0
    %v3702 = vrcp.pop %v3700
    %v3703 = vmul.f32 1.0, %v3702
    %v3704 = vrcp.pop %v3701
    %v3705 = vmul.f32 1.0, %v3704
    %v3706 = vmul.f32 %v3690, %v3703
    %v3707 = vmul.f32 %v3692, %v3705
    %s3708 = scalar_lea.vmem %s3, 1024
    %v3709 = vld [vmem:[%s3708] sm:$0xff]
    %v3710 = vld [vmem:[%s3708 + $0x8] sm:$0xff]
    %v3711 = vld [vmem:[%s3708 + $0x10] sm:$0xff]
    %v3712 = vld [vmem:[%s3708 + $0x18] sm:$0xff]
    %v3713 = vld [vmem:[%s3708 + $0x20] sm:$0xff]
    %v3714 = vld [vmem:[%s3708 + $0x28] sm:$0xff]
    %v3715 = vld [vmem:[%s3708 + $0x30] sm:$0xff]
    %v3716 = vld [vmem:[%s3708 + $0x38] sm:$0xff]
    %v3717 = vld [vmem:[%s3708 + $0x40] sm:$0xff]
    %v3718 = vld [vmem:[%s3708 + $0x48] sm:$0xff]
    %v3719 = vld [vmem:[%s3708 + $0x50] sm:$0xff]
    %v3720 = vld [vmem:[%s3708 + $0x58] sm:$0xff]
    %v3721 = vld [vmem:[%s3708 + $0x60] sm:$0xff]
    %v3722 = vld [vmem:[%s3708 + $0x68] sm:$0xff]
    %v3723 = vld [vmem:[%s3708 + $0x70] sm:$0xff]
    %v3724 = vld [vmem:[%s3708 + $0x78] sm:$0xff]
    %v3725 = vld [vmem:[%s3708 + $0x80] sm:$0xff]
    %v3726 = vld [vmem:[%s3708 + $0x88] sm:$0xff]
    %v3727 = vld [vmem:[%s3708 + $0x90] sm:$0xff]
    %v3728 = vld [vmem:[%s3708 + $0x98] sm:$0xff]
    %v3729 = vld [vmem:[%s3708 + $0xa0] sm:$0xff]
    %v3730 = vld [vmem:[%s3708 + $0xa8] sm:$0xff]
    %v3731 = vld [vmem:[%s3708 + $0xb0] sm:$0xff]
    %v3732 = vld [vmem:[%s3708 + $0xb8] sm:$0xff]
    %v3733 = vld [vmem:[%s3708 + $0xc0] sm:$0xff]
    %v3734 = vld [vmem:[%s3708 + $0xc8] sm:$0xff]
    %v3735 = vld [vmem:[%s3708 + $0xd0] sm:$0xff]
    %v3736 = vld [vmem:[%s3708 + $0xd8] sm:$0xff]
    %v3737 = vld [vmem:[%s3708 + $0xe0] sm:$0xff]
    %v3738 = vld [vmem:[%s3708 + $0xe8] sm:$0xff]
    %v3739 = vld [vmem:[%s3708 + $0xf0] sm:$0xff]
    %v3740 = vld [vmem:[%s3708 + $0xf8] sm:$0xff]
    %v3741 = vld [vmem:[#allocation10 + $0x4] sm:$0x1]
    %v3742 = vlaneseq
    %v3743 = vshrl.u32 %v3742, 7
    %v3744 = vsub.s32 0, %v3743
    %v3745 = vrot.slane %v3741, %v3744
    %3746 = vmatprep.subr.mxu0 0.0
    %3747 = vmatpush1.msra.mxu0 %v3724
    %3748 = vmatprep.subr.mxu0 0.0
    %3749 = vmatpush1.msra.mxu0 %v3723
    %3750 = vmatprep.subr.mxu0 0.0
    %3751 = vmatpush1.msra.mxu0 %v3722
    %3752 = vmatprep.subr.mxu0 0.0
    %3753 = vmatpush1.msra.mxu0 %v3721
    %3754 = vmatprep.subr.mxu0 0.0
    %3755 = vmatpush1.msra.mxu0 %v3720
    %3756 = vmatprep.subr.mxu0 0.0
    %3757 = vmatpush1.msra.mxu0 %v3719
    %3758 = vmatprep.subr.mxu0 0.0
    %3759 = vmatpush1.msra.mxu0 %v3718
    %3760 = vmatprep.subr.mxu0 0.0
    %3761 = vmatpush1.msra.mxu0 %v3717
    %3762 = vmatprep.subr.mxu0 0.0
    %3763 = vmatpush1.msra.mxu0 %v3716
    %3764 = vmatprep.subr.mxu0 0.0
    %3765 = vmatpush1.msra.mxu0 %v3715
    %3766 = vmatprep.subr.mxu0 0.0
    %3767 = vmatpush1.msra.mxu0 %v3714
    %3768 = vmatprep.subr.mxu0 0.0
    %3769 = vmatpush1.msra.mxu0 %v3713
    %3770 = vmatprep.subr.mxu0 0.0
    %3771 = vmatpush1.msra.mxu0 %v3712
    %3772 = vmatprep.subr.mxu0 0.0
    %3773 = vmatpush1.msra.mxu0 %v3711
    %3774 = vmatprep.subr.mxu0 0.0
    %3775 = vmatpush1.msra.mxu0 %v3710
    %3776 = vmatprep.subr.mxu0 0.0
    %3777 = vmatpush1.msra.mxu0 %v3709
    %3778 = vmatprep.subr.mxu0 0.0
    %3779 = vmatpush2.msra.mxu0 %v3740
    %3780 = vmatprep.subr.mxu0 0.0
    %3781 = vmatpush2.msra.mxu0 %v3739
    %3782 = vmatprep.subr.mxu0 0.0
    %3783 = vmatpush2.msra.mxu0 %v3738
    %3784 = vmatprep.subr.mxu0 0.0
    %3785 = vmatpush2.msra.mxu0 %v3737
    %3786 = vmatprep.subr.mxu0 0.0
    %3787 = vmatpush2.msra.mxu0 %v3736
    %3788 = vmatprep.subr.mxu0 0.0
    %3789 = vmatpush2.msra.mxu0 %v3735
    %3790 = vmatprep.subr.mxu0 0.0
    %3791 = vmatpush2.msra.mxu0 %v3734
    %3792 = vmatprep.subr.mxu0 0.0
    %3793 = vmatpush2.msra.mxu0 %v3733
    %3794 = vmatprep.subr.mxu0 0.0
    %3795 = vmatpush2.msra.mxu0 %v3732
    %3796 = vmatprep.subr.mxu0 0.0
    %3797 = vmatpush2.msra.mxu0 %v3731
    %3798 = vmatprep.subr.mxu0 0.0
    %3799 = vmatpush2.msra.mxu0 %v3730
    %3800 = vmatprep.subr.mxu0 0.0
    %3801 = vmatpush2.msra.mxu0 %v3729
    %3802 = vmatprep.subr.mxu0 0.0
    %3803 = vmatpush2.msra.mxu0 %v3728
    %3804 = vmatprep.subr.mxu0 0.0
    %3805 = vmatpush2.msra.mxu0 %v3727
    %3806 = vmatprep.subr.mxu0 0.0
    %3807 = vmatpush2.msra.mxu0 %v3726
    %3808 = vmatprep.subr.mxu0 0.0
    %3809 = vmatpush2.msra.mxu0 %v3725
    %3810 = vmatprep.mubr.f32.mxu0 %v3707
    %3811 = vmatmul.mubr.f32.gmra.mxu0 %v3706
    %v3812 = vpop.f32.mrf.mxu0
    %v3813 = vadd.f32 %v3745, %v3812
    %v3814 = vpop.f32.mrf.mxu0
    %3815 = vdwg.mxu0
    %v3816 = vsub.f32 %v819, %v3813
    %v3817 = vmax.f32 %v3816, 0.0
    %v3818 = vand.u32 2147483647, %v3816
    %v3819 = vsub.f32 0.0, %v3818
    %v3820 = vmul.f32 %v3819, 1.442695
    %v3821 = vpow.pop %v3820
    %v3822 = vadd.f32 %v3821, 1.0
    %v3823 = vlog2.pop %v3822
    %v3824 = vmul.f32 %v3823, 0.6931472
    %v3825 = vmul.f32 -0.5, %v3821
    %v3826 = vadd.f32 %v3825, 1.0
    %v3827 = vmul.f32 %v3826, %v3821
    %v3828 = vand.u32 2147483647, %v3821
    %vm3829 = vcmp.lt.f32.partialorder %v3828, 0.0004427343
    %v3830 = vsel %vm3829, %v3827, %v3824
    %v3831 = vadd.f32 %v3817, %v3830
    %v3832 = vsub.f32 %v819, %v3831
    %v3833 = vsub.f32 %v3832, %v840
    %v3834 = vmax.f32 %v3833, 0.0
    %v3835 = vand.u32 2147483647, %v3833
    %v3836 = vsub.f32 0.0, %v3835
    %v3837 = vmul.f32 %v3836, 1.442695
    %v3838 = vpow.pop %v3837
    %v3839 = vadd.f32 %v3838, 1.0
    %v3840 = vlog2.pop %v3839
    %v3841 = vmul.f32 %v3840, 0.6931472
    %v3842 = vmul.f32 -0.5, %v3838
    %v3843 = vadd.f32 %v3842, 1.0
    %v3844 = vmul.f32 %v3843, %v3838
    %v3845 = vand.u32 2147483647, %v3838
    %vm3846 = vcmp.lt.f32.partialorder %v3845, 0.0004427343
    %v3847 = vsel %vm3846, %v3844, %v3841
    %v3848 = vadd.f32 %v3834, %v3847
    %v3849 = vadd.f32 %v840, %v3848
    %v3850 = vmul.f32 %v3849, 1.442695
    %v3851 = vpow.pop %v3850
    %v3852 = vsel %vm109, %v3851, %v3813
    %s3853 = scalar_lea.vmem [#allocation13], 32
    %3854 = vst.msk [vmem:[%s3853] sm:$0xff] %vm861, %v3852
    // Predicated region
    $region54: #{tpu_custom_call.1} parent=1 // pred_check
      _
    $region55: #{tpu_custom_call.1} parent=1 // pred_check_branch
      %3856 = sbr.rel (0) target = $region57
    $region56: #{tpu_custom_call.1} parent=1 // pred_region
      %s3858 = ssub.s32 640, 640
      %3859 = vsyncadd [#allocation4], %s3858
      %s3860 = sshll.u32 [#allocation13], 4
      %s3861 = int_to_ptr.vmem [resolvable:$true] %s3860
      %3866 = dma.vmem_to_hbm [thread:$0]  %s3861, 640, %s7, [#allocation4], 128, 128, 8
    $region57: #{tpu_custom_call.1} parent=1 // pred_fallthru
      _
    // Predicated region
    $region58: #{tpu_custom_call.1} parent=1 // pred_check
      _
    $region59: #{tpu_custom_call.1} parent=1 // pred_check_branch
      %3868 = sbr.rel (0) target = $region61
    $region60: #{tpu_custom_call.1} parent=1 // pred_region
      %3869 = dma.done [#allocation4], 640
    $region61: #{tpu_custom_call.1} parent=1 // pred_fallthru
      _
    %3870 = vsyncpa [#allocation3], 1
    %3871 = vsyncpa [#allocation6], 1
    %3872 = vsyncpa [#allocation9], 1
    %3873 = vsyncpa [#allocation12], 1
    %3874 = vsyncpa [#allocation4], 1

</llo_original>
